<compile_context>
chip_gen: v7x
topology: tpu7x:2x2x1
jax: 0.10.0
libtpu: 0.0.40
codegen_flags: <defaults>
</compile_context>

<pallas_src>
import functools

import jax
import jax.numpy as jnp
import numpy as np
from jax.experimental import pallas as pl
from jax.experimental.pallas import tpu as pltpu


def _down_kernel(x_ref, w1_ref, b1_ref, g1_ref, be1_ref, m1_ref,
                 w2_ref, b2_ref, g2_ref, be2_ref, m2_ref, o_ref,
                 *, Hh, Wh, Cin, Cmid, Cout, eps, compute_dtype):
    """One batch element per grid step.  x block: (1, Cin, 2*Hh, 2*Wh)."""
    f32 = jnp.float32
    Wp = Wh + 2                 # padded row width
    Lw = Hh * Wp                # "wide" (row-padded) spatial length
    Nv = Hh * Wh                # valid spatial length

    # ---- MaxPool2d(kernel=2, stride=2): dense load, pair W then H ----------
    x = x_ref[...].reshape(Cin, 2 * Hh, 2 * Wh)
    xw = x.reshape(Cin, 2 * Hh, Wh, 2)
    pw = jnp.maximum(xw[:, :, :, 0], xw[:, :, :, 1])          # (Cin, 2Hh, Wh)
    ph = pw.reshape(Cin, Hh, 2, Wh)
    pooled = jnp.maximum(ph[:, :, 0, :], ph[:, :, 1, :])      # (Cin, Hh, Wh)

    def padded_flat(act3):
        """(C, Hh, Wh) -> zero-1-padded image, flattened to (C, Hp*Wp + 2).

        The +2 trailing zeros absorb the overrun of the (ky,kx)=(2,2) tap
        slice; values read there only land in discarded junk columns.
        """
        c = act3.shape[0]
        zc = jnp.zeros((c, Hh, 1), act3.dtype)
        aw = jnp.concatenate([zc, act3, zc], axis=2)          # (C, Hh, Wp)
        rf = aw.reshape(c, Lw)
        zt = jnp.zeros((c, Wp), act3.dtype)
        zb = jnp.zeros((c, Wp + 2), act3.dtype)
        return jnp.concatenate([zt, rf, zb], axis=1)          # (C, (Hh+2)*Wp+2)

    def conv_relu_gn(pflat, w_ref, b_ref, m_ref, g_ref, be_ref, c_out):
        # 3x3 conv as 9 weight-stationary matmuls over contiguous lane slices
        # of the flattened padded image (no per-tap gather / concat).
        acc = jnp.zeros((c_out, Lw), f32)
        for dy in range(3):                                   # static unroll
            for dx in range(3):
                off = dy * Wp + dx
                acc = acc + jnp.dot(w_ref[dy * 3 + dx],
                                    pflat[:, off:off + Lw],
                                    preferred_element_type=f32)
        acc = jnp.maximum(acc + b_ref[...], 0.0)              # bias + ReLU
        # Drop the 2 row-wrap junk columns per row -> valid interior.
        h = acc.reshape(c_out, Hh, Wp)[:, :, :Wh].reshape(c_out, Nv)

        # GroupNorm, one pass: per-channel sums (lane reduce) then a tiny
        # (C,C)x(C,2) matmul with the host-precomputed group-averaging matrix
        # (1/(group_size*HW) baked in).  Note: E[x^2]-mu^2 form; fine in f32
        # at typical post-ReLU activation scales.
        s1 = jnp.sum(h, axis=1, keepdims=True)                # (c_out, 1)
        s2 = jnp.sum(h * h, axis=1, keepdims=True)            # (c_out, 1)
        stats = jnp.concatenate([s1, s2], axis=1)             # (c_out, 2)
        gm = jnp.dot(m_ref[...], stats, preferred_element_type=f32)
        mu = gm[:, 0:1]
        var = gm[:, 1:2] - mu * mu
        inv = jax.lax.rsqrt(var + eps)                        # EUP
        scale = inv * g_ref[...]
        shift = be_ref[...] - mu * scale
        return h * scale + shift                              # (c_out, Nv) f32

    # ---- Conv1 -> ReLU -> GroupNorm ----
    p1 = padded_flat(pooled.astype(compute_dtype))
    h1 = conv_relu_gn(p1, w1_ref, b1_ref, m1_ref, g1_ref, be1_ref, Cmid)

    # ---- Conv2 -> ReLU -> GroupNorm ----
    p2 = padded_flat(h1.reshape(Cmid, Hh, Wh).astype(compute_dtype))
    h2 = conv_relu_gn(p2, w2_ref, b2_ref, m2_ref, g2_ref, be2_ref, Cout)

    # Channel-first, lane-dense store: (1, Cout, Hh*Wh).
    o_ref[...] = h2.reshape(1, Cout, Nv).astype(o_ref.dtype)


def down_pallas(x_nchw, params, *, compute_dtype=jnp.bfloat16,
                out_dtype=jnp.float32):
    B, Cin, H, W = x_nchw.shape
    assert H % 2 == 0 and W % 2 == 0
    Hh, Wh = H // 2, W // 2
    Hp, Wp = Hh + 2, Wh + 2
    Nv = Hh * Wh

    w1_oihw, b1 = params["w1"], params["b1"]
    w2_oihw, b2 = params["w2"], params["b2"]
    Cmid, Cout = w1_oihw.shape[0], w2_oihw.shape[0]
    groups1 = max(1, Cmid // 32)
    groups2 = max(1, Cout // 32)
    assert Cmid % groups1 == 0, "mid_channels must be divisible by its groups"
    assert Cout % groups2 == 0, "out_channels must be divisible by its groups"

    f32 = jnp.float32
    # Per-tap weight matrices: OIHW -> (9, Cout, Cin), tap index t = ky*3 + kx.
    w1t = jnp.transpose(w1_oihw, (2, 3, 0, 1)).reshape(9, Cmid, Cin)
    w2t = jnp.transpose(w2_oihw, (2, 3, 0, 1)).reshape(9, Cout, Cmid)
    w1t = w1t.astype(compute_dtype)
    w2t = w2t.astype(compute_dtype)
    b1c = b1.reshape(Cmid, 1).astype(f32)
    g1c = params["gamma1"].reshape(Cmid, 1).astype(f32)
    be1c = params["beta1"].reshape(Cmid, 1).astype(f32)
    b2c = b2.reshape(Cout, 1).astype(f32)
    g2c = params["gamma2"].reshape(Cout, 1).astype(f32)
    be2c = params["beta2"].reshape(Cout, 1).astype(f32)

    # Host-precomputed group-averaging matrices (1/(group_size*HW) baked in).
    def group_matrix(C, G):
        cg = C // G
        gid = np.arange(C) // cg
        m = (gid[:, None] == gid[None, :]).astype(np.float32) / float(cg * Nv)
        return jnp.asarray(m)

    M1 = group_matrix(Cmid, groups1)
    M2 = group_matrix(Cout, groups2)

    kernel = functools.partial(
        _down_kernel, Hh=Hh, Wh=Wh, Cin=Cin, Cmid=Cmid, Cout=Cout,
        eps=1e-5, compute_dtype=compute_dtype)

    def full_spec(arr):
        nd = arr.ndim
        return pl.BlockSpec(arr.shape, lambda b, _nd=nd: (0,) * _nd)

    # VMEM budget: hardware-derived cap (v7x has only 64 MiB/TC), generous
    # estimate of live bytes, headroom for Mosaic internal scratch.
    try:
        vmem_cap = int(pltpu.get_tpu_info().vmem_capacity_bytes)
    except Exception:
        vmem_cap = 64 * 2**20
    itemc = jnp.dtype(compute_dtype).itemsize
    itemo = jnp.dtype(out_dtype).itemsize
    itemx = jnp.dtype(x_nchw.dtype).itemsize
    act_bytes = Cin * H * W * itemx + Cout * Nv * itemo          # in/out blocks
    live_bytes = ((Cin + Cmid) * (Hp * Wp + 2) * itemc           # padded flats
                  + (Cmid + Cout) * Hh * Wp * 4                  # f32 accs
                  + (Cmid + Cout) * Nv * 4)                      # GN outputs
    param_bytes = ((w1t.size + w2t.size) * itemc
                   + (M1.size + M2.size) * 4
                   + (b1c.size + g1c.size + be1c.size
                      + b2c.size + g2c.size + be2c.size) * 4)
    need = 2 * act_bytes + live_bytes + 2 * param_bytes
    vmem_limit = int(min(max(32 * 2**20, 2 * need), vmem_cap - (12 << 20)))
    vmem_limit = max(vmem_limit, 16 * 2**20)

    flops = 2 * B * 9 * Hh * Wp * (Cin * Cmid + Cmid * Cout)
    bytes_accessed = (B * Cin * H * W * itemx + B * Cout * Nv * itemo
                      + (w1t.size + w2t.size) * itemc)
    cost = pl.CostEstimate(flops=int(flops),
                           transcendentals=int(B * (Cmid + Cout)),
                           bytes_accessed=int(bytes_accessed))

    out = pl.pallas_call(
        kernel,
        out_shape=jax.ShapeDtypeStruct((B, Cout, Nv), out_dtype),
        grid_spec=pltpu.PrefetchScalarGridSpec(
            num_scalar_prefetch=0,
            grid=(B,),
            in_specs=[
                pl.BlockSpec((1, Cin, H, W), lambda b: (b, 0, 0, 0)),
                full_spec(w1t), full_spec(b1c), full_spec(g1c),
                full_spec(be1c), full_spec(M1),
                full_spec(w2t), full_spec(b2c), full_spec(g2c),
                full_spec(be2c), full_spec(M2),
            ],
            out_specs=pl.BlockSpec((1, Cout, Nv), lambda b: (b, 0, 0)),
            scratch_shapes=[]),
        compiler_params=pltpu.CompilerParams(
            dimension_semantics=("parallel",),
            vmem_limit_bytes=vmem_limit),
        cost_estimate=cost,
    )(x_nchw, w1t, b1c, g1c, be1c, M1, w2t, b2c, g2c, be2c, M2)

    # Contiguous (free) reshape back to NCHW — no transpose, no extra HBM pass.
    return out.reshape(B, Cout, Hh, Wh)


def down_reference(x_nchw, params):
    """Pure-JAX reference matching the PyTorch module semantics."""
    w1, b1, w2, b2 = params["w1"], params["b1"], params["w2"], params["b2"]
    Cmid, Cout = w1.shape[0], w2.shape[0]
    g1, g2 = max(1, Cmid // 32), max(1, Cout // 32)

    p = jax.lax.reduce_window(x_nchw, -jnp.inf, jax.lax.max,
                              (1, 1, 2, 2), (1, 1, 2, 2), "VALID")

    def conv(x, w, b):
        y = jax.lax.conv_general_dilated(
            x, w, window_strides=(1, 1), padding=((1, 1), (1, 1)),
            dimension_numbers=("NCHW", "OIHW", "NCHW"))
        return y + b[None, :, None, None]

    def gn(x, gamma, beta, groups):
        B, C, H, W = x.shape
        xg = x.reshape(B, groups, C // groups, H, W)
        mu = xg.mean(axis=(2, 3, 4), keepdims=True)
        var = ((xg - mu) ** 2).mean(axis=(2, 3, 4), keepdims=True)
        xn = ((xg - mu) / jnp.sqrt(var + 1e-5)).reshape(B, C, H, W)
        return xn * gamma[None, :, None, None] + beta[None, :, None, None]

    h = jnp.maximum(conv(p, w1, b1), 0.0)
    h = gn(h, params["gamma1"], params["beta1"], g1)
    h = jnp.maximum(conv(h, w2, b2), 0.0)
    h = gn(h, params["gamma2"], params["beta2"], g2)
    return h


if __name__ == "__main__":
    key = jax.random.PRNGKey(0)
    B, Cin, H, W = 2, 4, 16, 16
    Cout = 8
    Cmid = Cout  # DoubleConv default: mid_channels = out_channels

    ks = jax.random.split(key, 9)
    x = jax.random.normal(ks[0], (B, Cin, H, W), jnp.float32)
    params = {
        "w1": 0.2 * jax.random.normal(ks[1], (Cmid, Cin, 3, 3), jnp.float32),
        "b1": 0.1 * jax.random.normal(ks[2], (Cmid,), jnp.float32),
        "gamma1": 1.0 + 0.1 * jax.random.normal(ks[3], (Cmid,), jnp.float32),
        "beta1": 0.1 * jax.random.normal(ks[4], (Cmid,), jnp.float32),
        "w2": 0.2 * jax.random.normal(ks[5], (Cout, Cmid, 3, 3), jnp.float32),
        "b2": 0.1 * jax.random.normal(ks[6], (Cout,), jnp.float32),
        "gamma2": 1.0 + 0.1 * jax.random.normal(ks[7], (Cout,), jnp.float32),
        "beta2": 0.1 * jax.random.normal(ks[8], (Cout,), jnp.float32),
    }

    y_ref = down_reference(x, params)

    # f32 path: tight check against the f32 reference.
    y_f32 = jax.block_until_ready(
        down_pallas(x, params, compute_dtype=jnp.float32))
    np.testing.assert_allclose(np.asarray(y_f32), np.asarray(y_ref),
                               rtol=5e-4, atol=5e-4)

    # bf16 MXU fast path (f32 accumulation): relative L2 check only.
    y_bf16 = jax.block_until_ready(
        down_pallas(x, params, compute_dtype=jnp.bfloat16))
    err = np.linalg.norm(np.asarray(y_bf16) - np.asarray(y_ref))
    ref_norm = np.linalg.norm(np.asarray(y_ref))
    assert err / max(ref_norm, 1e-6) < 0.1, \
        f"bf16 rel-L2 error too large: {err / ref_norm}"

    print("KERNEL_OK")
</pallas_src>

<mosaic_0001>
module attributes {stable_mosaic.version = 11 : i64} {
  func.func @_down_kernel(%arg0: i32, %arg1: memref<1x4x16x16xf32, #tpu.memory_space<vmem>>, %arg2: memref<9x8x4xf32, #tpu.memory_space<vmem>>, %arg3: memref<8x1xf32, #tpu.memory_space<vmem>>, %arg4: memref<8x1xf32, #tpu.memory_space<vmem>>, %arg5: memref<8x1xf32, #tpu.memory_space<vmem>>, %arg6: memref<8x8xf32, #tpu.memory_space<vmem>>, %arg7: memref<9x8x8xf32, #tpu.memory_space<vmem>>, %arg8: memref<8x1xf32, #tpu.memory_space<vmem>>, %arg9: memref<8x1xf32, #tpu.memory_space<vmem>>, %arg10: memref<8x1xf32, #tpu.memory_space<vmem>>, %arg11: memref<8x8xf32, #tpu.memory_space<vmem>>, %arg12: memref<1x8x64xf32, #tpu.memory_space<vmem>>) attributes {dimension_semantics = [#tpu.dimension_semantics<parallel>], iteration_bounds = array<i64: 2>, scalar_prefetch = 0 : i64, scratch_operands = 0 : i64, tpu.core_type = #tpu.core_type<tc>, window_params = [{transform_indices = @transform_0, window_bounds = array<i64: 1, 4, 16, 16>}, {pipeline_mode = #tpu.pipeline_mode<synchronous>, transform_indices = @transform_1, window_bounds = array<i64: 9, 8, 4>}, {pipeline_mode = #tpu.pipeline_mode<synchronous>, transform_indices = @transform_2, window_bounds = array<i64: 8, 1>}, {pipeline_mode = #tpu.pipeline_mode<synchronous>, transform_indices = @transform_3, window_bounds = array<i64: 8, 1>}, {pipeline_mode = #tpu.pipeline_mode<synchronous>, transform_indices = @transform_4, window_bounds = array<i64: 8, 1>}, {pipeline_mode = #tpu.pipeline_mode<synchronous>, transform_indices = @transform_5, window_bounds = array<i64: 8, 8>}, {pipeline_mode = #tpu.pipeline_mode<synchronous>, transform_indices = @transform_6, window_bounds = array<i64: 9, 8, 8>}, {pipeline_mode = #tpu.pipeline_mode<synchronous>, transform_indices = @transform_7, window_bounds = array<i64: 8, 1>}, {pipeline_mode = #tpu.pipeline_mode<synchronous>, transform_indices = @transform_8, window_bounds = array<i64: 8, 1>}, {pipeline_mode = #tpu.pipeline_mode<synchronous>, transform_indices = @transform_9, window_bounds = array<i64: 8, 1>}, {pipeline_mode = #tpu.pipeline_mode<synchronous>, transform_indices = @transform_10, window_bounds = array<i64: 8, 8>}, {transform_indices = @transform_11, window_bounds = array<i64: 1, 8, 64>}]} {
    %c0 = arith.constant 0 : index
    %c0_0 = arith.constant 0 : index
    %c0_1 = arith.constant 0 : index
    %c0_2 = arith.constant 0 : index
    %0 = vector.load %arg1[%c0, %c0_0, %c0_1, %c0_2] : memref<1x4x16x16xf32, #tpu.memory_space<vmem>>, vector<1x4x16x16xf32>
    %1 = vector.shape_cast %0 : vector<1x4x16x16xf32> to vector<4x16x16xf32>
    %2 = vector.shape_cast %1 : vector<4x16x16xf32> to vector<4x16x8x2xf32>
    %3 = vector.extract_strided_slice %2 {offsets = [0, 0, 0, 0], sizes = [4, 16, 8, 1], strides = [1, 1, 1, 1]} : vector<4x16x8x2xf32> to vector<4x16x8x1xf32>
    %4 = vector.shape_cast %3 : vector<4x16x8x1xf32> to vector<4x16x8xf32>
    %5 = vector.extract_strided_slice %2 {offsets = [0, 0, 0, 1], sizes = [4, 16, 8, 1], strides = [1, 1, 1, 1]} : vector<4x16x8x2xf32> to vector<4x16x8x1xf32>
    %6 = vector.shape_cast %5 : vector<4x16x8x1xf32> to vector<4x16x8xf32>
    %7 = arith.maximumf %4, %6 : vector<4x16x8xf32>
    %8 = vector.shape_cast %7 : vector<4x16x8xf32> to vector<4x8x2x8xf32>
    %9 = vector.extract_strided_slice %8 {offsets = [0, 0, 0, 0], sizes = [4, 8, 1, 8], strides = [1, 1, 1, 1]} : vector<4x8x2x8xf32> to vector<4x8x1x8xf32>
    %10 = vector.shape_cast %9 : vector<4x8x1x8xf32> to vector<4x8x8xf32>
    %11 = vector.extract_strided_slice %8 {offsets = [0, 0, 1, 0], sizes = [4, 8, 1, 8], strides = [1, 1, 1, 1]} : vector<4x8x2x8xf32> to vector<4x8x1x8xf32>
    %12 = vector.shape_cast %11 : vector<4x8x1x8xf32> to vector<4x8x8xf32>
    %13 = arith.maximumf %10, %12 : vector<4x8x8xf32>
    %cst = arith.constant 0.000000e+00 : f32
    %14 = vector.broadcast %cst : f32 to vector<4x8x1xf32>
    %15 = tpu.concatenate %14, %13, %14 in 2 : vector<4x8x1xf32>, vector<4x8x8xf32>, vector<4x8x1xf32> -> vector<4x8x10xf32>
    %16 = vector.shape_cast %15 : vector<4x8x10xf32> to vector<4x80xf32>
    %cst_3 = arith.constant 0.000000e+00 : f32
    %17 = vector.broadcast %cst_3 : f32 to vector<4x10xf32>
    %cst_4 = arith.constant 0.000000e+00 : f32
    %18 = vector.broadcast %cst_4 : f32 to vector<4x12xf32>
    %19 = tpu.concatenate %17, %16, %18 in 1 : vector<4x10xf32>, vector<4x80xf32>, vector<4x12xf32> -> vector<4x102xf32>
    %cst_5 = arith.constant 0.000000e+00 : f32
    %20 = vector.broadcast %cst_5 : f32 to vector<8x80xf32>
    %c0_6 = arith.constant 0 : index
    %c0_7 = arith.constant 0 : index
    %c0_8 = arith.constant 0 : index
    %21 = vector.load %arg2[%c0_6, %c0_7, %c0_8] : memref<9x8x4xf32, #tpu.memory_space<vmem>>, vector<1x8x4xf32>
    %22 = vector.shape_cast %21 : vector<1x8x4xf32> to vector<8x4xf32>
    %23 = vector.extract_strided_slice %19 {offsets = [0, 0], sizes = [4, 80], strides = [1, 1]} : vector<4x102xf32> to vector<4x80xf32>
    %cst_9 = arith.constant dense<0.000000e+00> : vector<8x80xf32>
    %24 = tpu.matmul %22, %23, %cst_9 {dimension_numbers = #tpu.dot_dimension_numbers<[1], [0], [0], [1], [0, 0, 1, 1], [], []>} : vector<8x4xf32>, vector<4x80xf32>, vector<8x80xf32> -> vector<8x80xf32>
    %25 = arith.addf %20, %24 : vector<8x80xf32>
    %c1 = arith.constant 1 : index
    %c0_10 = arith.constant 0 : index
    %c0_11 = arith.constant 0 : index
    %26 = vector.load %arg2[%c1, %c0_10, %c0_11] : memref<9x8x4xf32, #tpu.memory_space<vmem>>, vector<1x8x4xf32>
    %27 = vector.shape_cast %26 : vector<1x8x4xf32> to vector<8x4xf32>
    %28 = vector.extract_strided_slice %19 {offsets = [0, 1], sizes = [4, 80], strides = [1, 1]} : vector<4x102xf32> to vector<4x80xf32>
    %cst_12 = arith.constant dense<0.000000e+00> : vector<8x80xf32>
    %29 = tpu.matmul %27, %28, %cst_12 {dimension_numbers = #tpu.dot_dimension_numbers<[1], [0], [0], [1], [0, 0, 1, 1], [], []>} : vector<8x4xf32>, vector<4x80xf32>, vector<8x80xf32> -> vector<8x80xf32>
    %30 = arith.addf %25, %29 : vector<8x80xf32>
    %c2 = arith.constant 2 : index
    %c0_13 = arith.constant 0 : index
    %c0_14 = arith.constant 0 : index
    %31 = vector.load %arg2[%c2, %c0_13, %c0_14] : memref<9x8x4xf32, #tpu.memory_space<vmem>>, vector<1x8x4xf32>
    %32 = vector.shape_cast %31 : vector<1x8x4xf32> to vector<8x4xf32>
    %33 = vector.extract_strided_slice %19 {offsets = [0, 2], sizes = [4, 80], strides = [1, 1]} : vector<4x102xf32> to vector<4x80xf32>
    %cst_15 = arith.constant dense<0.000000e+00> : vector<8x80xf32>
    %34 = tpu.matmul %32, %33, %cst_15 {dimension_numbers = #tpu.dot_dimension_numbers<[1], [0], [0], [1], [0, 0, 1, 1], [], []>} : vector<8x4xf32>, vector<4x80xf32>, vector<8x80xf32> -> vector<8x80xf32>
    %35 = arith.addf %30, %34 : vector<8x80xf32>
    %c3 = arith.constant 3 : index
    %c0_16 = arith.constant 0 : index
    %c0_17 = arith.constant 0 : index
    %36 = vector.load %arg2[%c3, %c0_16, %c0_17] : memref<9x8x4xf32, #tpu.memory_space<vmem>>, vector<1x8x4xf32>
    %37 = vector.shape_cast %36 : vector<1x8x4xf32> to vector<8x4xf32>
    %38 = vector.extract_strided_slice %19 {offsets = [0, 10], sizes = [4, 80], strides = [1, 1]} : vector<4x102xf32> to vector<4x80xf32>
    %cst_18 = arith.constant dense<0.000000e+00> : vector<8x80xf32>
    %39 = tpu.matmul %37, %38, %cst_18 {dimension_numbers = #tpu.dot_dimension_numbers<[1], [0], [0], [1], [0, 0, 1, 1], [], []>} : vector<8x4xf32>, vector<4x80xf32>, vector<8x80xf32> -> vector<8x80xf32>
    %40 = arith.addf %35, %39 : vector<8x80xf32>
    %c4 = arith.constant 4 : index
    %c0_19 = arith.constant 0 : index
    %c0_20 = arith.constant 0 : index
    %41 = vector.load %arg2[%c4, %c0_19, %c0_20] : memref<9x8x4xf32, #tpu.memory_space<vmem>>, vector<1x8x4xf32>
    %42 = vector.shape_cast %41 : vector<1x8x4xf32> to vector<8x4xf32>
    %43 = vector.extract_strided_slice %19 {offsets = [0, 11], sizes = [4, 80], strides = [1, 1]} : vector<4x102xf32> to vector<4x80xf32>
    %cst_21 = arith.constant dense<0.000000e+00> : vector<8x80xf32>
    %44 = tpu.matmul %42, %43, %cst_21 {dimension_numbers = #tpu.dot_dimension_numbers<[1], [0], [0], [1], [0, 0, 1, 1], [], []>} : vector<8x4xf32>, vector<4x80xf32>, vector<8x80xf32> -> vector<8x80xf32>
    %45 = arith.addf %40, %44 : vector<8x80xf32>
    %c5 = arith.constant 5 : index
    %c0_22 = arith.constant 0 : index
    %c0_23 = arith.constant 0 : index
    %46 = vector.load %arg2[%c5, %c0_22, %c0_23] : memref<9x8x4xf32, #tpu.memory_space<vmem>>, vector<1x8x4xf32>
    %47 = vector.shape_cast %46 : vector<1x8x4xf32> to vector<8x4xf32>
    %48 = vector.extract_strided_slice %19 {offsets = [0, 12], sizes = [4, 80], strides = [1, 1]} : vector<4x102xf32> to vector<4x80xf32>
    %cst_24 = arith.constant dense<0.000000e+00> : vector<8x80xf32>
    %49 = tpu.matmul %47, %48, %cst_24 {dimension_numbers = #tpu.dot_dimension_numbers<[1], [0], [0], [1], [0, 0, 1, 1], [], []>} : vector<8x4xf32>, vector<4x80xf32>, vector<8x80xf32> -> vector<8x80xf32>
    %50 = arith.addf %45, %49 : vector<8x80xf32>
    %c6 = arith.constant 6 : index
    %c0_25 = arith.constant 0 : index
    %c0_26 = arith.constant 0 : index
    %51 = vector.load %arg2[%c6, %c0_25, %c0_26] : memref<9x8x4xf32, #tpu.memory_space<vmem>>, vector<1x8x4xf32>
    %52 = vector.shape_cast %51 : vector<1x8x4xf32> to vector<8x4xf32>
    %53 = vector.extract_strided_slice %19 {offsets = [0, 20], sizes = [4, 80], strides = [1, 1]} : vector<4x102xf32> to vector<4x80xf32>
    %cst_27 = arith.constant dense<0.000000e+00> : vector<8x80xf32>
    %54 = tpu.matmul %52, %53, %cst_27 {dimension_numbers = #tpu.dot_dimension_numbers<[1], [0], [0], [1], [0, 0, 1, 1], [], []>} : vector<8x4xf32>, vector<4x80xf32>, vector<8x80xf32> -> vector<8x80xf32>
    %55 = arith.addf %50, %54 : vector<8x80xf32>
    %c7 = arith.constant 7 : index
    %c0_28 = arith.constant 0 : index
    %c0_29 = arith.constant 0 : index
    %56 = vector.load %arg2[%c7, %c0_28, %c0_29] : memref<9x8x4xf32, #tpu.memory_space<vmem>>, vector<1x8x4xf32>
    %57 = vector.shape_cast %56 : vector<1x8x4xf32> to vector<8x4xf32>
    %58 = vector.extract_strided_slice %19 {offsets = [0, 21], sizes = [4, 80], strides = [1, 1]} : vector<4x102xf32> to vector<4x80xf32>
    %cst_30 = arith.constant dense<0.000000e+00> : vector<8x80xf32>
    %59 = tpu.matmul %57, %58, %cst_30 {dimension_numbers = #tpu.dot_dimension_numbers<[1], [0], [0], [1], [0, 0, 1, 1], [], []>} : vector<8x4xf32>, vector<4x80xf32>, vector<8x80xf32> -> vector<8x80xf32>
    %60 = arith.addf %55, %59 : vector<8x80xf32>
    %c8 = arith.constant 8 : index
    %c0_31 = arith.constant 0 : index
    %c0_32 = arith.constant 0 : index
    %61 = vector.load %arg2[%c8, %c0_31, %c0_32] : memref<9x8x4xf32, #tpu.memory_space<vmem>>, vector<1x8x4xf32>
    %62 = vector.shape_cast %61 : vector<1x8x4xf32> to vector<8x4xf32>
    %63 = vector.extract_strided_slice %19 {offsets = [0, 22], sizes = [4, 80], strides = [1, 1]} : vector<4x102xf32> to vector<4x80xf32>
    %cst_33 = arith.constant dense<0.000000e+00> : vector<8x80xf32>
    %64 = tpu.matmul %62, %63, %cst_33 {dimension_numbers = #tpu.dot_dimension_numbers<[1], [0], [0], [1], [0, 0, 1, 1], [], []>} : vector<8x4xf32>, vector<4x80xf32>, vector<8x80xf32> -> vector<8x80xf32>
    %65 = arith.addf %60, %64 : vector<8x80xf32>
    %c0_34 = arith.constant 0 : index
    %c0_35 = arith.constant 0 : index
    %66 = vector.load %arg3[%c0_34, %c0_35] : memref<8x1xf32, #tpu.memory_space<vmem>>, vector<8x1xf32>
    %67 = vector.broadcast %66 : vector<8x1xf32> to vector<8x80xf32>
    %68 = arith.addf %65, %67 : vector<8x80xf32>
    %cst_36 = arith.constant 0.000000e+00 : f32
    %69 = vector.broadcast %cst_36 : f32 to vector<8x80xf32>
    %70 = arith.maximumf %68, %69 : vector<8x80xf32>
    %71 = vector.shape_cast %70 : vector<8x80xf32> to vector<8x8x10xf32>
    %72 = vector.extract_strided_slice %71 {offsets = [0, 0, 0], sizes = [8, 8, 8], strides = [1, 1, 1]} : vector<8x8x10xf32> to vector<8x8x8xf32>
    %73 = vector.shape_cast %72 : vector<8x8x8xf32> to vector<8x64xf32>
    %cst_37 = arith.constant dense<0.000000e+00> : vector<8xf32>
    %74 = vector.multi_reduction <add>, %73, %cst_37 [1] : vector<8x64xf32> to vector<8xf32>
    %75 = vector.shape_cast %74 : vector<8xf32> to vector<8x1xf32>
    %76 = arith.mulf %73, %73 : vector<8x64xf32>
    %cst_38 = arith.constant dense<0.000000e+00> : vector<8xf32>
    %77 = vector.multi_reduction <add>, %76, %cst_38 [1] : vector<8x64xf32> to vector<8xf32>
    %78 = vector.shape_cast %77 : vector<8xf32> to vector<8x1xf32>
    %79 = tpu.concatenate %75, %78 in 1 : vector<8x1xf32>, vector<8x1xf32> -> vector<8x2xf32>
    %c0_39 = arith.constant 0 : index
    %c0_40 = arith.constant 0 : index
    %80 = vector.load %arg6[%c0_39, %c0_40] : memref<8x8xf32, #tpu.memory_space<vmem>>, vector<8x8xf32>
    %cst_41 = arith.constant dense<0.000000e+00> : vector<8x2xf32>
    %81 = tpu.matmul %80, %79, %cst_41 {dimension_numbers = #tpu.dot_dimension_numbers<[1], [0], [0], [1], [0, 0, 1, 1], [], []>} : vector<8x8xf32>, vector<8x2xf32>, vector<8x2xf32> -> vector<8x2xf32>
    %82 = vector.extract_strided_slice %81 {offsets = [0, 0], sizes = [8, 1], strides = [1, 1]} : vector<8x2xf32> to vector<8x1xf32>
    %83 = vector.extract_strided_slice %81 {offsets = [0, 1], sizes = [8, 1], strides = [1, 1]} : vector<8x2xf32> to vector<8x1xf32>
    %84 = arith.mulf %82, %82 : vector<8x1xf32>
    %85 = arith.subf %83, %84 : vector<8x1xf32>
    %cst_42 = arith.constant 9.99999974E-6 : f32
    %86 = vector.broadcast %cst_42 : f32 to vector<8x1xf32>
    %87 = arith.addf %85, %86 : vector<8x1xf32>
    %88 = math.rsqrt %87 : vector<8x1xf32>
    %c0_43 = arith.constant 0 : index
    %c0_44 = arith.constant 0 : index
    %89 = vector.load %arg4[%c0_43, %c0_44] : memref<8x1xf32, #tpu.memory_space<vmem>>, vector<8x1xf32>
    %90 = arith.mulf %88, %89 : vector<8x1xf32>
    %c0_45 = arith.constant 0 : index
    %c0_46 = arith.constant 0 : index
    %91 = vector.load %arg5[%c0_45, %c0_46] : memref<8x1xf32, #tpu.memory_space<vmem>>, vector<8x1xf32>
    %92 = arith.mulf %82, %90 : vector<8x1xf32>
    %93 = arith.subf %91, %92 : vector<8x1xf32>
    %94 = vector.broadcast %90 : vector<8x1xf32> to vector<8x64xf32>
    %95 = arith.mulf %73, %94 : vector<8x64xf32>
    %96 = vector.broadcast %93 : vector<8x1xf32> to vector<8x64xf32>
    %97 = arith.addf %95, %96 : vector<8x64xf32>
    %98 = vector.shape_cast %97 : vector<8x64xf32> to vector<8x8x8xf32>
    %cst_47 = arith.constant 0.000000e+00 : f32
    %99 = vector.broadcast %cst_47 : f32 to vector<8x8x1xf32>
    %100 = tpu.concatenate %99, %98, %99 in 2 : vector<8x8x1xf32>, vector<8x8x8xf32>, vector<8x8x1xf32> -> vector<8x8x10xf32>
    %101 = vector.shape_cast %100 : vector<8x8x10xf32> to vector<8x80xf32>
    %cst_48 = arith.constant 0.000000e+00 : f32
    %102 = vector.broadcast %cst_48 : f32 to vector<8x10xf32>
    %cst_49 = arith.constant 0.000000e+00 : f32
    %103 = vector.broadcast %cst_49 : f32 to vector<8x12xf32>
    %104 = tpu.concatenate %102, %101, %103 in 1 : vector<8x10xf32>, vector<8x80xf32>, vector<8x12xf32> -> vector<8x102xf32>
    %cst_50 = arith.constant 0.000000e+00 : f32
    %105 = vector.broadcast %cst_50 : f32 to vector<8x80xf32>
    %c0_51 = arith.constant 0 : index
    %c0_52 = arith.constant 0 : index
    %c0_53 = arith.constant 0 : index
    %106 = vector.load %arg7[%c0_51, %c0_52, %c0_53] : memref<9x8x8xf32, #tpu.memory_space<vmem>>, vector<1x8x8xf32>
    %107 = vector.shape_cast %106 : vector<1x8x8xf32> to vector<8x8xf32>
    %108 = vector.extract_strided_slice %104 {offsets = [0, 0], sizes = [8, 80], strides = [1, 1]} : vector<8x102xf32> to vector<8x80xf32>
    %cst_54 = arith.constant dense<0.000000e+00> : vector<8x80xf32>
    %109 = tpu.matmul %107, %108, %cst_54 {dimension_numbers = #tpu.dot_dimension_numbers<[1], [0], [0], [1], [0, 0, 1, 1], [], []>} : vector<8x8xf32>, vector<8x80xf32>, vector<8x80xf32> -> vector<8x80xf32>
    %110 = arith.addf %105, %109 : vector<8x80xf32>
    %c1_55 = arith.constant 1 : index
    %c0_56 = arith.constant 0 : index
    %c0_57 = arith.constant 0 : index
    %111 = vector.load %arg7[%c1_55, %c0_56, %c0_57] : memref<9x8x8xf32, #tpu.memory_space<vmem>>, vector<1x8x8xf32>
    %112 = vector.shape_cast %111 : vector<1x8x8xf32> to vector<8x8xf32>
    %113 = vector.extract_strided_slice %104 {offsets = [0, 1], sizes = [8, 80], strides = [1, 1]} : vector<8x102xf32> to vector<8x80xf32>
    %cst_58 = arith.constant dense<0.000000e+00> : vector<8x80xf32>
    %114 = tpu.matmul %112, %113, %cst_58 {dimension_numbers = #tpu.dot_dimension_numbers<[1], [0], [0], [1], [0, 0, 1, 1], [], []>} : vector<8x8xf32>, vector<8x80xf32>, vector<8x80xf32> -> vector<8x80xf32>
    %115 = arith.addf %110, %114 : vector<8x80xf32>
    %c2_59 = arith.constant 2 : index
    %c0_60 = arith.constant 0 : index
    %c0_61 = arith.constant 0 : index
    %116 = vector.load %arg7[%c2_59, %c0_60, %c0_61] : memref<9x8x8xf32, #tpu.memory_space<vmem>>, vector<1x8x8xf32>
    %117 = vector.shape_cast %116 : vector<1x8x8xf32> to vector<8x8xf32>
    %118 = vector.extract_strided_slice %104 {offsets = [0, 2], sizes = [8, 80], strides = [1, 1]} : vector<8x102xf32> to vector<8x80xf32>
    %cst_62 = arith.constant dense<0.000000e+00> : vector<8x80xf32>
    %119 = tpu.matmul %117, %118, %cst_62 {dimension_numbers = #tpu.dot_dimension_numbers<[1], [0], [0], [1], [0, 0, 1, 1], [], []>} : vector<8x8xf32>, vector<8x80xf32>, vector<8x80xf32> -> vector<8x80xf32>
    %120 = arith.addf %115, %119 : vector<8x80xf32>
    %c3_63 = arith.constant 3 : index
    %c0_64 = arith.constant 0 : index
    %c0_65 = arith.constant 0 : index
    %121 = vector.load %arg7[%c3_63, %c0_64, %c0_65] : memref<9x8x8xf32, #tpu.memory_space<vmem>>, vector<1x8x8xf32>
    %122 = vector.shape_cast %121 : vector<1x8x8xf32> to vector<8x8xf32>
    %123 = vector.extract_strided_slice %104 {offsets = [0, 10], sizes = [8, 80], strides = [1, 1]} : vector<8x102xf32> to vector<8x80xf32>
    %cst_66 = arith.constant dense<0.000000e+00> : vector<8x80xf32>
    %124 = tpu.matmul %122, %123, %cst_66 {dimension_numbers = #tpu.dot_dimension_numbers<[1], [0], [0], [1], [0, 0, 1, 1], [], []>} : vector<8x8xf32>, vector<8x80xf32>, vector<8x80xf32> -> vector<8x80xf32>
    %125 = arith.addf %120, %124 : vector<8x80xf32>
    %c4_67 = arith.constant 4 : index
    %c0_68 = arith.constant 0 : index
    %c0_69 = arith.constant 0 : index
    %126 = vector.load %arg7[%c4_67, %c0_68, %c0_69] : memref<9x8x8xf32, #tpu.memory_space<vmem>>, vector<1x8x8xf32>
    %127 = vector.shape_cast %126 : vector<1x8x8xf32> to vector<8x8xf32>
    %128 = vector.extract_strided_slice %104 {offsets = [0, 11], sizes = [8, 80], strides = [1, 1]} : vector<8x102xf32> to vector<8x80xf32>
    %cst_70 = arith.constant dense<0.000000e+00> : vector<8x80xf32>
    %129 = tpu.matmul %127, %128, %cst_70 {dimension_numbers = #tpu.dot_dimension_numbers<[1], [0], [0], [1], [0, 0, 1, 1], [], []>} : vector<8x8xf32>, vector<8x80xf32>, vector<8x80xf32> -> vector<8x80xf32>
    %130 = arith.addf %125, %129 : vector<8x80xf32>
    %c5_71 = arith.constant 5 : index
    %c0_72 = arith.constant 0 : index
    %c0_73 = arith.constant 0 : index
    %131 = vector.load %arg7[%c5_71, %c0_72, %c0_73] : memref<9x8x8xf32, #tpu.memory_space<vmem>>, vector<1x8x8xf32>
    %132 = vector.shape_cast %131 : vector<1x8x8xf32> to vector<8x8xf32>
    %133 = vector.extract_strided_slice %104 {offsets = [0, 12], sizes = [8, 80], strides = [1, 1]} : vector<8x102xf32> to vector<8x80xf32>
    %cst_74 = arith.constant dense<0.000000e+00> : vector<8x80xf32>
    %134 = tpu.matmul %132, %133, %cst_74 {dimension_numbers = #tpu.dot_dimension_numbers<[1], [0], [0], [1], [0, 0, 1, 1], [], []>} : vector<8x8xf32>, vector<8x80xf32>, vector<8x80xf32> -> vector<8x80xf32>
    %135 = arith.addf %130, %134 : vector<8x80xf32>
    %c6_75 = arith.constant 6 : index
    %c0_76 = arith.constant 0 : index
    %c0_77 = arith.constant 0 : index
    %136 = vector.load %arg7[%c6_75, %c0_76, %c0_77] : memref<9x8x8xf32, #tpu.memory_space<vmem>>, vector<1x8x8xf32>
    %137 = vector.shape_cast %136 : vector<1x8x8xf32> to vector<8x8xf32>
    %138 = vector.extract_strided_slice %104 {offsets = [0, 20], sizes = [8, 80], strides = [1, 1]} : vector<8x102xf32> to vector<8x80xf32>
    %cst_78 = arith.constant dense<0.000000e+00> : vector<8x80xf32>
    %139 = tpu.matmul %137, %138, %cst_78 {dimension_numbers = #tpu.dot_dimension_numbers<[1], [0], [0], [1], [0, 0, 1, 1], [], []>} : vector<8x8xf32>, vector<8x80xf32>, vector<8x80xf32> -> vector<8x80xf32>
    %140 = arith.addf %135, %139 : vector<8x80xf32>
    %c7_79 = arith.constant 7 : index
    %c0_80 = arith.constant 0 : index
    %c0_81 = arith.constant 0 : index
    %141 = vector.load %arg7[%c7_79, %c0_80, %c0_81] : memref<9x8x8xf32, #tpu.memory_space<vmem>>, vector<1x8x8xf32>
    %142 = vector.shape_cast %141 : vector<1x8x8xf32> to vector<8x8xf32>
    %143 = vector.extract_strided_slice %104 {offsets = [0, 21], sizes = [8, 80], strides = [1, 1]} : vector<8x102xf32> to vector<8x80xf32>
    %cst_82 = arith.constant dense<0.000000e+00> : vector<8x80xf32>
    %144 = tpu.matmul %142, %143, %cst_82 {dimension_numbers = #tpu.dot_dimension_numbers<[1], [0], [0], [1], [0, 0, 1, 1], [], []>} : vector<8x8xf32>, vector<8x80xf32>, vector<8x80xf32> -> vector<8x80xf32>
    %145 = arith.addf %140, %144 : vector<8x80xf32>
    %c8_83 = arith.constant 8 : index
    %c0_84 = arith.constant 0 : index
    %c0_85 = arith.constant 0 : index
    %146 = vector.load %arg7[%c8_83, %c0_84, %c0_85] : memref<9x8x8xf32, #tpu.memory_space<vmem>>, vector<1x8x8xf32>
    %147 = vector.shape_cast %146 : vector<1x8x8xf32> to vector<8x8xf32>
    %148 = vector.extract_strided_slice %104 {offsets = [0, 22], sizes = [8, 80], strides = [1, 1]} : vector<8x102xf32> to vector<8x80xf32>
    %cst_86 = arith.constant dense<0.000000e+00> : vector<8x80xf32>
    %149 = tpu.matmul %147, %148, %cst_86 {dimension_numbers = #tpu.dot_dimension_numbers<[1], [0], [0], [1], [0, 0, 1, 1], [], []>} : vector<8x8xf32>, vector<8x80xf32>, vector<8x80xf32> -> vector<8x80xf32>
    %150 = arith.addf %145, %149 : vector<8x80xf32>
    %c0_87 = arith.constant 0 : index
    %c0_88 = arith.constant 0 : index
    %151 = vector.load %arg8[%c0_87, %c0_88] : memref<8x1xf32, #tpu.memory_space<vmem>>, vector<8x1xf32>
    %152 = vector.broadcast %151 : vector<8x1xf32> to vector<8x80xf32>
    %153 = arith.addf %150, %152 : vector<8x80xf32>
    %cst_89 = arith.constant 0.000000e+00 : f32
    %154 = vector.broadcast %cst_89 : f32 to vector<8x80xf32>
    %155 = arith.maximumf %153, %154 : vector<8x80xf32>
    %156 = vector.shape_cast %155 : vector<8x80xf32> to vector<8x8x10xf32>
    %157 = vector.extract_strided_slice %156 {offsets = [0, 0, 0], sizes = [8, 8, 8], strides = [1, 1, 1]} : vector<8x8x10xf32> to vector<8x8x8xf32>
    %158 = vector.shape_cast %157 : vector<8x8x8xf32> to vector<8x64xf32>
    %cst_90 = arith.constant dense<0.000000e+00> : vector<8xf32>
    %159 = vector.multi_reduction <add>, %158, %cst_90 [1] : vector<8x64xf32> to vector<8xf32>
    %160 = vector.shape_cast %159 : vector<8xf32> to vector<8x1xf32>
    %161 = arith.mulf %158, %158 : vector<8x64xf32>
    %cst_91 = arith.constant dense<0.000000e+00> : vector<8xf32>
    %162 = vector.multi_reduction <add>, %161, %cst_91 [1] : vector<8x64xf32> to vector<8xf32>
    %163 = vector.shape_cast %162 : vector<8xf32> to vector<8x1xf32>
    %164 = tpu.concatenate %160, %163 in 1 : vector<8x1xf32>, vector<8x1xf32> -> vector<8x2xf32>
    %c0_92 = arith.constant 0 : index
    %c0_93 = arith.constant 0 : index
    %165 = vector.load %arg11[%c0_92, %c0_93] : memref<8x8xf32, #tpu.memory_space<vmem>>, vector<8x8xf32>
    %cst_94 = arith.constant dense<0.000000e+00> : vector<8x2xf32>
    %166 = tpu.matmul %165, %164, %cst_94 {dimension_numbers = #tpu.dot_dimension_numbers<[1], [0], [0], [1], [0, 0, 1, 1], [], []>} : vector<8x8xf32>, vector<8x2xf32>, vector<8x2xf32> -> vector<8x2xf32>
    %167 = vector.extract_strided_slice %166 {offsets = [0, 0], sizes = [8, 1], strides = [1, 1]} : vector<8x2xf32> to vector<8x1xf32>
    %168 = vector.extract_strided_slice %166 {offsets = [0, 1], sizes = [8, 1], strides = [1, 1]} : vector<8x2xf32> to vector<8x1xf32>
    %169 = arith.mulf %167, %167 : vector<8x1xf32>
    %170 = arith.subf %168, %169 : vector<8x1xf32>
    %cst_95 = arith.constant 9.99999974E-6 : f32
    %171 = vector.broadcast %cst_95 : f32 to vector<8x1xf32>
    %172 = arith.addf %170, %171 : vector<8x1xf32>
    %173 = math.rsqrt %172 : vector<8x1xf32>
    %c0_96 = arith.constant 0 : index
    %c0_97 = arith.constant 0 : index
    %174 = vector.load %arg9[%c0_96, %c0_97] : memref<8x1xf32, #tpu.memory_space<vmem>>, vector<8x1xf32>
    %175 = arith.mulf %173, %174 : vector<8x1xf32>
    %c0_98 = arith.constant 0 : index
    %c0_99 = arith.constant 0 : index
    %176 = vector.load %arg10[%c0_98, %c0_99] : memref<8x1xf32, #tpu.memory_space<vmem>>, vector<8x1xf32>
    %177 = arith.mulf %167, %175 : vector<8x1xf32>
    %178 = arith.subf %176, %177 : vector<8x1xf32>
    %179 = vector.broadcast %175 : vector<8x1xf32> to vector<8x64xf32>
    %180 = arith.mulf %158, %179 : vector<8x64xf32>
    %181 = vector.broadcast %178 : vector<8x1xf32> to vector<8x64xf32>
    %182 = arith.addf %180, %181 : vector<8x64xf32>
    %183 = vector.shape_cast %182 : vector<8x64xf32> to vector<1x8x64xf32>
    %c0_100 = arith.constant 0 : index
    %c0_101 = arith.constant 0 : index
    %c0_102 = arith.constant 0 : index
    %184 = vector.load %arg12[%c0_100, %c0_101, %c0_102] : memref<1x8x64xf32, #tpu.memory_space<vmem>>, vector<1x8x64xf32>
    tpu.vector_store %arg12[%c0_100, %c0_101, %c0_102], %183 {strides = array<i32>} : memref<1x8x64xf32, #tpu.memory_space<vmem>>, vector<1x8x64xf32>,
    return
  }
  func.func @transform_0(%arg0: i32) -> (i32, i32, i32, i32) {
    %c0_i32 = arith.constant 0 : i32
    %c0_i32_0 = arith.constant 0 : i32
    %c0_i32_1 = arith.constant 0 : i32
    %c0_i32_2 = arith.constant 0 : i32
    return %arg0, %c0_i32, %c0_i32_0, %c0_i32_1 : i32, i32, i32, i32
  }
  func.func @transform_1(%arg0: i32) -> (i32, i32, i32) {
    %c0_i32 = arith.constant 0 : i32
    %c0_i32_0 = arith.constant 0 : i32
    %c0_i32_1 = arith.constant 0 : i32
    %c0_i32_2 = arith.constant 0 : i32
    return %c0_i32, %c0_i32_0, %c0_i32_1 : i32, i32, i32
  }
  func.func @transform_2(%arg0: i32) -> (i32, i32) {
    %c0_i32 = arith.constant 0 : i32
    %c0_i32_0 = arith.constant 0 : i32
    %c0_i32_1 = arith.constant 0 : i32
    return %c0_i32, %c0_i32_0 : i32, i32
  }
  func.func @transform_3(%arg0: i32) -> (i32, i32) {
    %c0_i32 = arith.constant 0 : i32
    %c0_i32_0 = arith.constant 0 : i32
    %c0_i32_1 = arith.constant 0 : i32
    return %c0_i32, %c0_i32_0 : i32, i32
  }
  func.func @transform_4(%arg0: i32) -> (i32, i32) {
    %c0_i32 = arith.constant 0 : i32
    %c0_i32_0 = arith.constant 0 : i32
    %c0_i32_1 = arith.constant 0 : i32
    return %c0_i32, %c0_i32_0 : i32, i32
  }
  func.func @transform_5(%arg0: i32) -> (i32, i32) {
    %c0_i32 = arith.constant 0 : i32
    %c0_i32_0 = arith.constant 0 : i32
    %c0_i32_1 = arith.constant 0 : i32
    return %c0_i32, %c0_i32_0 : i32, i32
  }
  func.func @transform_6(%arg0: i32) -> (i32, i32, i32) {
    %c0_i32 = arith.constant 0 : i32
    %c0_i32_0 = arith.constant 0 : i32
    %c0_i32_1 = arith.constant 0 : i32
    %c0_i32_2 = arith.constant 0 : i32
    return %c0_i32, %c0_i32_0, %c0_i32_1 : i32, i32, i32
  }
  func.func @transform_7(%arg0: i32) -> (i32, i32) {
    %c0_i32 = arith.constant 0 : i32
    %c0_i32_0 = arith.constant 0 : i32
    %c0_i32_1 = arith.constant 0 : i32
    return %c0_i32, %c0_i32_0 : i32, i32
  }
  func.func @transform_8(%arg0: i32) -> (i32, i32) {
    %c0_i32 = arith.constant 0 : i32
    %c0_i32_0 = arith.constant 0 : i32
    %c0_i32_1 = arith.constant 0 : i32
    return %c0_i32, %c0_i32_0 : i32, i32
  }
  func.func @transform_9(%arg0: i32) -> (i32, i32) {
    %c0_i32 = arith.constant 0 : i32
    %c0_i32_0 = arith.constant 0 : i32
    %c0_i32_1 = arith.constant 0 : i32
    return %c0_i32, %c0_i32_0 : i32, i32
  }
  func.func @transform_10(%arg0: i32) -> (i32, i32) {
    %c0_i32 = arith.constant 0 : i32
    %c0_i32_0 = arith.constant 0 : i32
    %c0_i32_1 = arith.constant 0 : i32
    return %c0_i32, %c0_i32_0 : i32, i32
  }
  func.func @transform_11(%arg0: i32) -> (i32, i32, i32) {
    %c0_i32 = arith.constant 0 : i32
    %c0_i32_0 = arith.constant 0 : i32
    %c0_i32_1 = arith.constant 0 : i32
    return %arg0, %c0_i32, %c0_i32_0 : i32, i32, i32
  }
}

</mosaic_0001>

<llo_original>
// kernel: tpu_custom_call.1
$region0: #{tpu_custom_call.1}
  #allocation0 [shape = 'u32[]', space=smem, size = 0x4, offset = 0x4, fixed_abs, tag = 'smem constant byte address 0x4 - core index']
  #allocation1 [shape = 'u32[144,128]{1,0:T(1,128)}', space=vmem, size = 0x12000, scoped, tag = 'internal scratch']
  %s0 = inlined_call_operand.vmem [shape: f32[2,4,16,16], index: 0, kind: input, shape index: {}]
  %s1 = inlined_call_operand.vmem [shape: f32[9,8,4], index: 1, kind: input, shape index: {}]
  %s2 = inlined_call_operand.vmem [shape: f32[8,1], index: 2, kind: input, shape index: {}]
  %s3 = inlined_call_operand.vmem [shape: f32[8,1], index: 3, kind: input, shape index: {}]
  %s4 = inlined_call_operand.vmem [shape: f32[8,1], index: 4, kind: input, shape index: {}]
  %s5 = inlined_call_operand.vmem [shape: f32[8,8], index: 5, kind: input, shape index: {}]
  %s6 = inlined_call_operand.vmem [shape: f32[9,8,8], index: 6, kind: input, shape index: {}]
  %s7 = inlined_call_operand.vmem [shape: f32[8,1], index: 7, kind: input, shape index: {}]
  %s8 = inlined_call_operand.vmem [shape: f32[8,1], index: 8, kind: input, shape index: {}]
  %s9 = inlined_call_operand.vmem [shape: f32[8,1], index: 9, kind: input, shape index: {}]
  %s10 = inlined_call_operand.vmem [shape: f32[8,8], index: 10, kind: input, shape index: {}]
  %s11 = inlined_call_operand.hbm [shape: f32[2,8,64], index: 11, kind: output, shape index: {}]
  %s12 = sld [smem:[#allocation0]]
  $region77: #{tpu_custom_call.1} parent=0
    _
  %s14 = ssub.s32 1, %s12
  %s15 = scalar_select 0, %s14, %s12
  $region1: #{tpu_custom_call.1} parent=0
    #allocation2 [shape = 'u8[8192]{0}', space=vmem, size = 0x2000, scoped, tag = 'output window, operand 0']
    #allocation3 [shape = 's32[2]{0}', space=sflag, size = 0x8, scoped, tag = 'scoped memory for tpu_custom_call.1']
    %16 = vsyncpa [#allocation3], 0
    %s17 = scalar_lea.sflag [#allocation3], 1
    %18 = vsyncpa %s17, 0
    loop: start=0, step=1, limit=4
    $region2: #{tpu_custom_call.1} parent=1 // loop_pre_header
      _
    $region3: #{tpu_custom_call.1} parent=1 // loop_header
      %s20 = sphi 0, %s24
      %p21 = scmp.ge.s32.totalorder %s20, 4
      %s30 = sphi 0, %s32
      %s33 = sphi 0, %s30
      %s34 = sphi 0, %s33
      %s50 = sphi 0, %s34
      %s54 = sphi 0, %s54
      %s56 = sphi 0, %s54
      %s57 = sphi 0, %s56
      %s71 = sphi 0, %s57
      %s75 = sphi 0, %s75
      %s77 = sphi 0, %s75
      %s78 = sphi 0, %s77
      %s92 = sphi 0, %s78
      %s96 = sphi 0, %s96
      %s98 = sphi 0, %s96
      %s99 = sphi 0, %s98
      %s113 = sphi 0, %s99
      %s117 = sphi 0, %s117
      %s119 = sphi 0, %s117
      %s120 = sphi 0, %s119
      %s134 = sphi 0, %s120
      %s138 = sphi 0, %s138
      %s140 = sphi 0, %s138
      %s141 = sphi 0, %s140
      %s155 = sphi 0, %s141
      %s159 = sphi 0, %s159
      %s161 = sphi 0, %s159
      %s162 = sphi 0, %s161
      %s176 = sphi 0, %s162
      %s180 = sphi 0, %s180
      %s182 = sphi 0, %s180
      %s183 = sphi 0, %s182
      %s197 = sphi 0, %s183
      %s201 = sphi 0, %s201
      %s203 = sphi 0, %s201
      %s204 = sphi 0, %s203
      %s218 = sphi 0, %s204
      %s222 = sphi 0, %s222
      %s224 = sphi 0, %s222
      %s225 = sphi 0, %s224
      %s239 = sphi 0, %s225
      %s243 = sphi 0, %s243
      %s245 = sphi 0, %s243
      %s246 = sphi 0, %s245
      %s260 = sphi 0, %s246
      %s266 = sphi 0, %s268
      %s269 = sphi 0, %s266
      %s270 = sphi 0, %s269
      %s286 = sphi 0, %s270
    $region4: #{tpu_custom_call.1} parent=1 // loop_header_branch
      %23 = sbr.rel (%p21) target = $region8
    $region5: #{tpu_custom_call.1} parent=1 // loop_body
      %s25 = ssub.s32 %s20, 1
      %s26 = ssub.s32 %s20, 2
      %s27 = sadd.s32 %s20, 1
      %s28 = ssub.s32 %s20, %s27
      %p29 = scmp.eq.s32.totalorder %s28, 0
      %s31 = sadd.s32 %s30, 1
      %s32 = scalar_select %p29, %s30, %s31
      %p35 = pneg %p29
      %p36 = scmp.eq.s32.totalorder %s20, 1
      %p37 = por %p35, %p36
      %p38 = scmp.ne.s32.totalorder %s30, %s33
      %p39 = scmp.eq.s32.totalorder %s20, 0
      %p40 = por %p38, %p39
      %p41 = scmp.ne.s32.totalorder %s30, %s33
      %p42 = scmp.eq.s32.totalorder %s25, 1
      %p43 = por %p41, %p42
      %p44 = scmp.ne.s32.totalorder %s33, %s34
      %p45 = scmp.eq.s32.totalorder %s25, 0
      %p46 = por %p44, %p45
      %p47 = scmp.ne.s32.totalorder %s33, %s34
      %p48 = scmp.eq.s32.totalorder %s26, 1
      %p49 = por %p47, %p48
      %p51 = scmp.ne.s32.totalorder %s34, %s50
      %p52 = scmp.eq.s32.totalorder %s26, 0
      %p53 = por %p51, %p52
      %s55 = sadd.s32 %s54, 1
      %p58 = scmp.eq.s32.totalorder %s20, 1
      %p59 = scmp.ne.s32.totalorder %s54, %s56
      %p60 = scmp.eq.s32.totalorder %s20, 0
      %p61 = por %p59, %p60
      %p62 = scmp.ne.s32.totalorder %s54, %s56
      %p63 = scmp.eq.s32.totalorder %s25, 1
      %p64 = por %p62, %p63
      %p65 = scmp.ne.s32.totalorder %s56, %s57
      %p66 = scmp.eq.s32.totalorder %s25, 0
      %p67 = por %p65, %p66
      %p68 = scmp.ne.s32.totalorder %s56, %s57
      %p69 = scmp.eq.s32.totalorder %s26, 1
      %p70 = por %p68, %p69
      %p72 = scmp.ne.s32.totalorder %s57, %s71
      %p73 = scmp.eq.s32.totalorder %s26, 0
      %p74 = por %p72, %p73
      %s76 = sadd.s32 %s75, 1
      %p79 = scmp.eq.s32.totalorder %s20, 1
      %p80 = scmp.ne.s32.totalorder %s75, %s77
      %p81 = scmp.eq.s32.totalorder %s20, 0
      %p82 = por %p80, %p81
      %p83 = scmp.ne.s32.totalorder %s75, %s77
      %p84 = scmp.eq.s32.totalorder %s25, 1
      %p85 = por %p83, %p84
      %p86 = scmp.ne.s32.totalorder %s77, %s78
      %p87 = scmp.eq.s32.totalorder %s25, 0
      %p88 = por %p86, %p87
      %p89 = scmp.ne.s32.totalorder %s77, %s78
      %p90 = scmp.eq.s32.totalorder %s26, 1
      %p91 = por %p89, %p90
      %p93 = scmp.ne.s32.totalorder %s78, %s92
      %p94 = scmp.eq.s32.totalorder %s26, 0
      %p95 = por %p93, %p94
      %s97 = sadd.s32 %s96, 1
      %p100 = scmp.eq.s32.totalorder %s20, 1
      %p101 = scmp.ne.s32.totalorder %s96, %s98
      %p102 = scmp.eq.s32.totalorder %s20, 0
      %p103 = por %p101, %p102
      %p104 = scmp.ne.s32.totalorder %s96, %s98
      %p105 = scmp.eq.s32.totalorder %s25, 1
      %p106 = por %p104, %p105
      %p107 = scmp.ne.s32.totalorder %s98, %s99
      %p108 = scmp.eq.s32.totalorder %s25, 0
      %p109 = por %p107, %p108
      %p110 = scmp.ne.s32.totalorder %s98, %s99
      %p111 = scmp.eq.s32.totalorder %s26, 1
      %p112 = por %p110, %p111
      %p114 = scmp.ne.s32.totalorder %s99, %s113
      %p115 = scmp.eq.s32.totalorder %s26, 0
      %p116 = por %p114, %p115
      %s118 = sadd.s32 %s117, 1
      %p121 = scmp.eq.s32.totalorder %s20, 1
      %p122 = scmp.ne.s32.totalorder %s117, %s119
      %p123 = scmp.eq.s32.totalorder %s20, 0
      %p124 = por %p122, %p123
      %p125 = scmp.ne.s32.totalorder %s117, %s119
      %p126 = scmp.eq.s32.totalorder %s25, 1
      %p127 = por %p125, %p126
      %p128 = scmp.ne.s32.totalorder %s119, %s120
      %p129 = scmp.eq.s32.totalorder %s25, 0
      %p130 = por %p128, %p129
      %p131 = scmp.ne.s32.totalorder %s119, %s120
      %p132 = scmp.eq.s32.totalorder %s26, 1
      %p133 = por %p131, %p132
      %p135 = scmp.ne.s32.totalorder %s120, %s134
      %p136 = scmp.eq.s32.totalorder %s26, 0
      %p137 = por %p135, %p136
      %s139 = sadd.s32 %s138, 1
      %p142 = scmp.eq.s32.totalorder %s20, 1
      %p143 = scmp.ne.s32.totalorder %s138, %s140
      %p144 = scmp.eq.s32.totalorder %s20, 0
      %p145 = por %p143, %p144
      %p146 = scmp.ne.s32.totalorder %s138, %s140
      %p147 = scmp.eq.s32.totalorder %s25, 1
      %p148 = por %p146, %p147
      %p149 = scmp.ne.s32.totalorder %s140, %s141
      %p150 = scmp.eq.s32.totalorder %s25, 0
      %p151 = por %p149, %p150
      %p152 = scmp.ne.s32.totalorder %s140, %s141
      %p153 = scmp.eq.s32.totalorder %s26, 1
      %p154 = por %p152, %p153
      %p156 = scmp.ne.s32.totalorder %s141, %s155
      %p157 = scmp.eq.s32.totalorder %s26, 0
      %p158 = por %p156, %p157
      %s160 = sadd.s32 %s159, 1
      %p163 = scmp.eq.s32.totalorder %s20, 1
      %p164 = scmp.ne.s32.totalorder %s159, %s161
      %p165 = scmp.eq.s32.totalorder %s20, 0
      %p166 = por %p164, %p165
      %p167 = scmp.ne.s32.totalorder %s159, %s161
      %p168 = scmp.eq.s32.totalorder %s25, 1
      %p169 = por %p167, %p168
      %p170 = scmp.ne.s32.totalorder %s161, %s162
      %p171 = scmp.eq.s32.totalorder %s25, 0
      %p172 = por %p170, %p171
      %p173 = scmp.ne.s32.totalorder %s161, %s162
      %p174 = scmp.eq.s32.totalorder %s26, 1
      %p175 = por %p173, %p174
      %p177 = scmp.ne.s32.totalorder %s162, %s176
      %p178 = scmp.eq.s32.totalorder %s26, 0
      %p179 = por %p177, %p178
      %s181 = sadd.s32 %s180, 1
      %p184 = scmp.eq.s32.totalorder %s20, 1
      %p185 = scmp.ne.s32.totalorder %s180, %s182
      %p186 = scmp.eq.s32.totalorder %s20, 0
      %p187 = por %p185, %p186
      %p188 = scmp.ne.s32.totalorder %s180, %s182
      %p189 = scmp.eq.s32.totalorder %s25, 1
      %p190 = por %p188, %p189
      %p191 = scmp.ne.s32.totalorder %s182, %s183
      %p192 = scmp.eq.s32.totalorder %s25, 0
      %p193 = por %p191, %p192
      %p194 = scmp.ne.s32.totalorder %s182, %s183
      %p195 = scmp.eq.s32.totalorder %s26, 1
      %p196 = por %p194, %p195
      %p198 = scmp.ne.s32.totalorder %s183, %s197
      %p199 = scmp.eq.s32.totalorder %s26, 0
      %p200 = por %p198, %p199
      %s202 = sadd.s32 %s201, 1
      %p205 = scmp.eq.s32.totalorder %s20, 1
      %p206 = scmp.ne.s32.totalorder %s201, %s203
      %p207 = scmp.eq.s32.totalorder %s20, 0
      %p208 = por %p206, %p207
      %p209 = scmp.ne.s32.totalorder %s201, %s203
      %p210 = scmp.eq.s32.totalorder %s25, 1
      %p211 = por %p209, %p210
      %p212 = scmp.ne.s32.totalorder %s203, %s204
      %p213 = scmp.eq.s32.totalorder %s25, 0
      %p214 = por %p212, %p213
      %p215 = scmp.ne.s32.totalorder %s203, %s204
      %p216 = scmp.eq.s32.totalorder %s26, 1
      %p217 = por %p215, %p216
      %p219 = scmp.ne.s32.totalorder %s204, %s218
      %p220 = scmp.eq.s32.totalorder %s26, 0
      %p221 = por %p219, %p220
      %s223 = sadd.s32 %s222, 1
      %p226 = scmp.eq.s32.totalorder %s20, 1
      %p227 = scmp.ne.s32.totalorder %s222, %s224
      %p228 = scmp.eq.s32.totalorder %s20, 0
      %p229 = por %p227, %p228
      %p230 = scmp.ne.s32.totalorder %s222, %s224
      %p231 = scmp.eq.s32.totalorder %s25, 1
      %p232 = por %p230, %p231
      %p233 = scmp.ne.s32.totalorder %s224, %s225
      %p234 = scmp.eq.s32.totalorder %s25, 0
      %p235 = por %p233, %p234
      %p236 = scmp.ne.s32.totalorder %s224, %s225
      %p237 = scmp.eq.s32.totalorder %s26, 1
      %p238 = por %p236, %p237
      %p240 = scmp.ne.s32.totalorder %s225, %s239
      %p241 = scmp.eq.s32.totalorder %s26, 0
      %p242 = por %p240, %p241
      %s244 = sadd.s32 %s243, 1
      %p247 = scmp.eq.s32.totalorder %s20, 1
      %p248 = scmp.ne.s32.totalorder %s243, %s245
      %p249 = scmp.eq.s32.totalorder %s20, 0
      %p250 = por %p248, %p249
      %p251 = scmp.ne.s32.totalorder %s243, %s245
      %p252 = scmp.eq.s32.totalorder %s25, 1
      %p253 = por %p251, %p252
      %p254 = scmp.ne.s32.totalorder %s245, %s246
      %p255 = scmp.eq.s32.totalorder %s25, 0
      %p256 = por %p254, %p255
      %p257 = scmp.ne.s32.totalorder %s245, %s246
      %p258 = scmp.eq.s32.totalorder %s26, 1
      %p259 = por %p257, %p258
      %p261 = scmp.ne.s32.totalorder %s246, %s260
      %p262 = scmp.eq.s32.totalorder %s26, 0
      %p263 = por %p261, %p262
      %s264 = ssub.s32 %s20, %s27
      %p265 = scmp.eq.s32.totalorder %s264, 0
      %s267 = sadd.s32 %s266, 1
      %s268 = scalar_select %p265, %s266, %s267
      %p271 = pneg %p265
      %p272 = scmp.eq.s32.totalorder %s20, 1
      %p273 = por %p271, %p272
      %p274 = scmp.ne.s32.totalorder %s266, %s269
      %p275 = scmp.eq.s32.totalorder %s20, 0
      %p276 = por %p274, %p275
      %p277 = scmp.ne.s32.totalorder %s266, %s269
      %p278 = scmp.eq.s32.totalorder %s25, 1
      %p279 = por %p277, %p278
      %p280 = scmp.ne.s32.totalorder %s269, %s270
      %p281 = scmp.eq.s32.totalorder %s25, 0
      %p282 = por %p280, %p281
      %p283 = scmp.ne.s32.totalorder %s269, %s270
      %p284 = scmp.eq.s32.totalorder %s26, 1
      %p285 = por %p283, %p284
      %p287 = scmp.ne.s32.totalorder %s270, %s286
      %p288 = scmp.eq.s32.totalorder %s26, 0
      %p289 = por %p287, %p288
      %p290 = scmp.le.s32.totalorder 1, %s20
      %p291 = scmp.lt.s32.totalorder %s20, 3
      %p292 = pnand %p290, %p291
      %p293 = pneg %p292
      // Predicated region
      $region9: #{tpu_custom_call.1} parent=5 // pred_check
        _
      $region10: #{tpu_custom_call.1} parent=5 // pred_check_branch
        %295 = sbr.rel (%p292) target = $region12
      $region11: #{tpu_custom_call.1} parent=5 // pred_region
        %s296 = ssub.s32 %s20, 1
        // Predicated region
        $region13: #{tpu_custom_call.1} parent=11 // pred_check
          %p297 = pneg %p67
        $region14: #{tpu_custom_call.1} parent=11 // pred_check_branch
          %299 = sbr.rel (%p297) target = $region16
        $region15: #{tpu_custom_call.1} parent=11 // pred_region
          _
        $region16: #{tpu_custom_call.1} parent=11 // pred_fallthru
          _
        // Predicated region
        $region17: #{tpu_custom_call.1} parent=11 // pred_check
          %p300 = pneg %p88
        $region18: #{tpu_custom_call.1} parent=11 // pred_check_branch
          %302 = sbr.rel (%p300) target = $region20
        $region19: #{tpu_custom_call.1} parent=11 // pred_region
          _
        $region20: #{tpu_custom_call.1} parent=11 // pred_fallthru
          _
        // Predicated region
        $region21: #{tpu_custom_call.1} parent=11 // pred_check
          %p303 = pneg %p109
        $region22: #{tpu_custom_call.1} parent=11 // pred_check_branch
          %305 = sbr.rel (%p303) target = $region24
        $region23: #{tpu_custom_call.1} parent=11 // pred_region
          _
        $region24: #{tpu_custom_call.1} parent=11 // pred_fallthru
          _
        // Predicated region
        $region25: #{tpu_custom_call.1} parent=11 // pred_check
          %p306 = pneg %p130
        $region26: #{tpu_custom_call.1} parent=11 // pred_check_branch
          %308 = sbr.rel (%p306) target = $region28
        $region27: #{tpu_custom_call.1} parent=11 // pred_region
          _
        $region28: #{tpu_custom_call.1} parent=11 // pred_fallthru
          _
        // Predicated region
        $region29: #{tpu_custom_call.1} parent=11 // pred_check
          %p309 = pneg %p151
        $region30: #{tpu_custom_call.1} parent=11 // pred_check_branch
          %311 = sbr.rel (%p309) target = $region32
        $region31: #{tpu_custom_call.1} parent=11 // pred_region
          _
        $region32: #{tpu_custom_call.1} parent=11 // pred_fallthru
          _
        // Predicated region
        $region33: #{tpu_custom_call.1} parent=11 // pred_check
          %p312 = pneg %p172
        $region34: #{tpu_custom_call.1} parent=11 // pred_check_branch
          %314 = sbr.rel (%p312) target = $region36
        $region35: #{tpu_custom_call.1} parent=11 // pred_region
          _
        $region36: #{tpu_custom_call.1} parent=11 // pred_fallthru
          _
        // Predicated region
        $region37: #{tpu_custom_call.1} parent=11 // pred_check
          %p315 = pneg %p193
        $region38: #{tpu_custom_call.1} parent=11 // pred_check_branch
          %317 = sbr.rel (%p315) target = $region40
        $region39: #{tpu_custom_call.1} parent=11 // pred_region
          _
        $region40: #{tpu_custom_call.1} parent=11 // pred_fallthru
          _
        // Predicated region
        $region41: #{tpu_custom_call.1} parent=11 // pred_check
          %p318 = pneg %p214
        $region42: #{tpu_custom_call.1} parent=11 // pred_check_branch
          %320 = sbr.rel (%p318) target = $region44
        $region43: #{tpu_custom_call.1} parent=11 // pred_region
          _
        $region44: #{tpu_custom_call.1} parent=11 // pred_fallthru
          _
        // Predicated region
        $region45: #{tpu_custom_call.1} parent=11 // pred_check
          %p321 = pneg %p235
        $region46: #{tpu_custom_call.1} parent=11 // pred_check_branch
          %323 = sbr.rel (%p321) target = $region48
        $region47: #{tpu_custom_call.1} parent=11 // pred_region
          _
        $region48: #{tpu_custom_call.1} parent=11 // pred_fallthru
          _
        // Predicated region
        $region49: #{tpu_custom_call.1} parent=11 // pred_check
          %p324 = pneg %p256
        $region50: #{tpu_custom_call.1} parent=11 // pred_check_branch
          %326 = sbr.rel (%p324) target = $region52
        $region51: #{tpu_custom_call.1} parent=11 // pred_region
          _
        $region52: #{tpu_custom_call.1} parent=11 // pred_fallthru
          _
      $region12: #{tpu_custom_call.1} parent=5 // pred_fallthru
        _
      %p327 = scmp.lt.s32.totalorder %s20, 2
      // Predicated region
      $region53: #{tpu_custom_call.1} parent=5 // pred_check
        %p328 = pneg %p327
      $region54: #{tpu_custom_call.1} parent=5 // pred_check_branch
        %330 = sbr.rel (%p328) target = $region56
      $region55: #{tpu_custom_call.1} parent=5 // pred_region
        // Predicated region
        $region57: #{tpu_custom_call.1} parent=55 // pred_check
          %p331 = pneg %p40
        $region58: #{tpu_custom_call.1} parent=55 // pred_check_branch
          %333 = sbr.rel (%p331) target = $region60
        $region59: #{tpu_custom_call.1} parent=55 // pred_region
          %p334 = scmp.lt.s32.totalorder %s20, 1
          %s335 = scalar_select %p334, %s20, 1
          %s336 = smul.addr %s335, 8
          %s337 = smul.addr %s336, 8
          %s338 = scalar_lea.vmem %s0, %s337
        $region60: #{tpu_custom_call.1} parent=55 // pred_fallthru
          _
      $region56: #{tpu_custom_call.1} parent=5 // pred_fallthru
        _
      %p339 = scmp.le.s32.totalorder 1, %s20
      %p340 = scmp.lt.s32.totalorder %s20, 3
      %p341 = pnand %p339, %p340
      %p342 = pneg %p341
      // Predicated region
      $region61: #{tpu_custom_call.1} parent=5 // pred_check
        _
      $region62: #{tpu_custom_call.1} parent=5 // pred_check_branch
        %344 = sbr.rel (%p341) target = $region64
      $region63: #{tpu_custom_call.1} parent=5 // pred_region
        %s345 = ssub.s32 %s20, 1
        %p346 = scmp.lt.s32.totalorder %s25, 1
        %s347 = scalar_select %p346, %s25, 1
        %s348 = smul.addr %s347, 8
        %s349 = smul.addr %s348, 8
        %s350 = scalar_lea.vmem %s0, %s349
        %p351 = pneg %p46
        %p352 = pneg %p43
        %p353 = pneg %p67
        %p354 = pneg %p64
        %p355 = pneg %p88
        %p356 = pneg %p85
        %p357 = pneg %p109
        %p358 = pneg %p106
        %p359 = pneg %p130
        %p360 = pneg %p127
        %p361 = pneg %p151
        %p362 = pneg %p148
        %p363 = pneg %p172
        %p364 = pneg %p169
        %p365 = pneg %p193
        %p366 = pneg %p190
        %p367 = pneg %p214
        %p368 = pneg %p211
        %p369 = pneg %p235
        %p370 = pneg %p232
        %p371 = pneg %p256
        %p372 = pneg %p253
        %p373 = pneg %p282
        %p374 = pneg %p279
        %s375 = sand.u32 %s269, 1
        %s376 = scalar_lea.sflag [#allocation3], %s375
        %s377 = sand.u32 %s269, 1
        %s378 = smul.addr %s377, 8
        %s379 = scalar_lea.vmem [#allocation2], %s378
        %p380 = scmp.lt.s32.totalorder %s25, 1
        %s381 = scalar_select %p380, %s25, 1
        %s382 = smul.addr %s381, 8
        %s383 = smul.addr %s382, 8
        %s384 = scalar_lea.vmem %s0, %s383
        %v385 = vld [vmem:[%s384] sm:$0xff]
        %v386 = vld [vmem:[%s384 + $0x8] sm:$0xff]
        %v387 = vld [vmem:[%s384 + $0x10] sm:$0xff]
        %v388 = vld [vmem:[%s384 + $0x18] sm:$0xff]
        %v389 = vld [vmem:[%s384 + $0x20] sm:$0xff]
        %v390 = vld [vmem:[%s384 + $0x28] sm:$0xff]
        %v391 = vld [vmem:[%s384 + $0x30] sm:$0xff]
        %v392 = vld [vmem:[%s384 + $0x38] sm:$0xff]
        %401 = vrot.lane.b32.xlu0 %v385, 126
        %v402 = vpop.permute.xlu0 %401
        %403 = vrot.lane.b32.xlu0 %v386, 126
        %v404 = vpop.permute.xlu0 %403
        %405 = vrot.lane.b32.xlu0 %v387, 126
        %v406 = vpop.permute.xlu0 %405
        %407 = vrot.lane.b32.xlu0 %v388, 126
        %v408 = vpop.permute.xlu0 %407
        %409 = vrot.lane.b32.xlu0 %v389, 126
        %v410 = vpop.permute.xlu0 %409
        %411 = vrot.lane.b32.xlu0 %v390, 126
        %v412 = vpop.permute.xlu0 %411
        %413 = vrot.lane.b32.xlu0 %v391, 126
        %v414 = vpop.permute.xlu0 %413
        %415 = vrot.lane.b32.xlu0 %v392, 126
        %v416 = vpop.permute.xlu0 %415
        %425 = vrot.lane.b32.xlu0 %v385, 124
        %v426 = vpop.permute.xlu0 %425
        %427 = vrot.lane.b32.xlu0 %v386, 124
        %v428 = vpop.permute.xlu0 %427
        %429 = vrot.lane.b32.xlu0 %v387, 124
        %v430 = vpop.permute.xlu0 %429
        %431 = vrot.lane.b32.xlu0 %v388, 124
        %v432 = vpop.permute.xlu0 %431
        %433 = vrot.lane.b32.xlu0 %v389, 124
        %v434 = vpop.permute.xlu0 %433
        %435 = vrot.lane.b32.xlu0 %v390, 124
        %v436 = vpop.permute.xlu0 %435
        %437 = vrot.lane.b32.xlu0 %v391, 124
        %v438 = vpop.permute.xlu0 %437
        %439 = vrot.lane.b32.xlu0 %v392, 124
        %v440 = vpop.permute.xlu0 %439
        %449 = vrot.lane.b32.xlu0 %v385, 122
        %v450 = vpop.permute.xlu0 %449
        %451 = vrot.lane.b32.xlu0 %v386, 122
        %v452 = vpop.permute.xlu0 %451
        %453 = vrot.lane.b32.xlu0 %v387, 122
        %v454 = vpop.permute.xlu0 %453
        %455 = vrot.lane.b32.xlu0 %v388, 122
        %v456 = vpop.permute.xlu0 %455
        %457 = vrot.lane.b32.xlu0 %v389, 122
        %v458 = vpop.permute.xlu0 %457
        %459 = vrot.lane.b32.xlu0 %v390, 122
        %v460 = vpop.permute.xlu0 %459
        %461 = vrot.lane.b32.xlu0 %v391, 122
        %v462 = vpop.permute.xlu0 %461
        %463 = vrot.lane.b32.xlu0 %v392, 122
        %v464 = vpop.permute.xlu0 %463
        %473 = vrot.lane.b32.xlu0 %v385, 120
        %v474 = vpop.permute.xlu0 %473
        %475 = vrot.lane.b32.xlu0 %v386, 120
        %v476 = vpop.permute.xlu0 %475
        %477 = vrot.lane.b32.xlu0 %v387, 120
        %v478 = vpop.permute.xlu0 %477
        %479 = vrot.lane.b32.xlu0 %v388, 120
        %v480 = vpop.permute.xlu0 %479
        %481 = vrot.lane.b32.xlu0 %v389, 120
        %v482 = vpop.permute.xlu0 %481
        %483 = vrot.lane.b32.xlu0 %v390, 120
        %v484 = vpop.permute.xlu0 %483
        %485 = vrot.lane.b32.xlu0 %v391, 120
        %v486 = vpop.permute.xlu0 %485
        %487 = vrot.lane.b32.xlu0 %v392, 120
        %v488 = vpop.permute.xlu0 %487
        %497 = vrot.lane.b32.xlu0 %v385, 118
        %v498 = vpop.permute.xlu0 %497
        %499 = vrot.lane.b32.xlu0 %v386, 118
        %v500 = vpop.permute.xlu0 %499
        %501 = vrot.lane.b32.xlu0 %v387, 118
        %v502 = vpop.permute.xlu0 %501
        %503 = vrot.lane.b32.xlu0 %v388, 118
        %v504 = vpop.permute.xlu0 %503
        %505 = vrot.lane.b32.xlu0 %v389, 118
        %v506 = vpop.permute.xlu0 %505
        %507 = vrot.lane.b32.xlu0 %v390, 118
        %v508 = vpop.permute.xlu0 %507
        %509 = vrot.lane.b32.xlu0 %v391, 118
        %v510 = vpop.permute.xlu0 %509
        %511 = vrot.lane.b32.xlu0 %v392, 118
        %v512 = vpop.permute.xlu0 %511
        %521 = vrot.lane.b32.xlu0 %v385, 116
        %v522 = vpop.permute.xlu0 %521
        %523 = vrot.lane.b32.xlu0 %v386, 116
        %v524 = vpop.permute.xlu0 %523
        %525 = vrot.lane.b32.xlu0 %v387, 116
        %v526 = vpop.permute.xlu0 %525
        %527 = vrot.lane.b32.xlu0 %v388, 116
        %v528 = vpop.permute.xlu0 %527
        %529 = vrot.lane.b32.xlu0 %v389, 116
        %v530 = vpop.permute.xlu0 %529
        %531 = vrot.lane.b32.xlu0 %v390, 116
        %v532 = vpop.permute.xlu0 %531
        %533 = vrot.lane.b32.xlu0 %v391, 116
        %v534 = vpop.permute.xlu0 %533
        %535 = vrot.lane.b32.xlu0 %v392, 116
        %v536 = vpop.permute.xlu0 %535
        %545 = vrot.lane.b32.xlu0 %v385, 114
        %v546 = vpop.permute.xlu0 %545
        %547 = vrot.lane.b32.xlu0 %v386, 114
        %v548 = vpop.permute.xlu0 %547
        %549 = vrot.lane.b32.xlu0 %v387, 114
        %v550 = vpop.permute.xlu0 %549
        %551 = vrot.lane.b32.xlu0 %v388, 114
        %v552 = vpop.permute.xlu0 %551
        %553 = vrot.lane.b32.xlu0 %v389, 114
        %v554 = vpop.permute.xlu0 %553
        %555 = vrot.lane.b32.xlu0 %v390, 114
        %v556 = vpop.permute.xlu0 %555
        %557 = vrot.lane.b32.xlu0 %v391, 114
        %v558 = vpop.permute.xlu0 %557
        %559 = vrot.lane.b32.xlu0 %v392, 114
        %v560 = vpop.permute.xlu0 %559
        %v569 = vcombine.low %v385, %v426
        %v570 = vcombine.high %v385, %v426
        %v572 = vunpack.c.l.s4 1983009808
        %v573 = vunpack.c.0.s8 %v572
        %v574 = vlaneseq
        %v575 = vshrl.u32 %v574, 7
        %v576 = vsub.s32 %v573, %v575
        %v577 = vrot.slane %v569, %v576
        %v579 = vunpack.c.l.s4 1983009808
        %v580 = vunpack.c.0.s8 %v579
        %v581 = vlaneseq
        %v582 = vshrl.u32 %v581, 7
        %v583 = vsub.s32 %v580, %v582
        %v584 = vrot.slane %v570, %v583
        %v585 = vcombine.low %v402, %v450
        %v586 = vcombine.high %v402, %v450
        %v588 = vunpack.c.l.s4 1983009808
        %v589 = vunpack.c.0.s8 %v588
        %v590 = vlaneseq
        %v591 = vshrl.u32 %v590, 7
        %v592 = vsub.s32 %v589, %v591
        %v593 = vrot.slane %v585, %v592
        %v595 = vunpack.c.l.s4 1983009808
        %v596 = vunpack.c.0.s8 %v595
        %v597 = vlaneseq
        %v598 = vshrl.u32 %v597, 7
        %v599 = vsub.s32 %v596, %v598
        %v600 = vrot.slane %v586, %v599
        %v601 = vcombine.low %v474, %v522
        %v602 = vcombine.high %v474, %v522
        %v604 = vunpack.c.l.s4 1983009808
        %v605 = vunpack.c.0.s8 %v604
        %v606 = vlaneseq
        %v607 = vshrl.u32 %v606, 7
        %v608 = vsub.s32 %v605, %v607
        %v609 = vrot.slane %v601, %v608
        %v611 = vunpack.c.l.s4 1983009808
        %v612 = vunpack.c.0.s8 %v611
        %v613 = vlaneseq
        %v614 = vshrl.u32 %v613, 7
        %v615 = vsub.s32 %v612, %v614
        %v616 = vrot.slane %v602, %v615
        %v617 = vcombine.low %v498, %v546
        %v618 = vcombine.high %v498, %v546
        %v620 = vunpack.c.l.s4 1983009808
        %v621 = vunpack.c.0.s8 %v620
        %v622 = vlaneseq
        %v623 = vshrl.u32 %v622, 7
        %v624 = vsub.s32 %v621, %v623
        %v625 = vrot.slane %v617, %v624
        %v627 = vunpack.c.l.s4 1983009808
        %v628 = vunpack.c.0.s8 %v627
        %v629 = vlaneseq
        %v630 = vshrl.u32 %v629, 7
        %v631 = vsub.s32 %v628, %v630
        %v632 = vrot.slane %v618, %v631
        %v633 = vcombine.low %v577, %v593
        %v634 = vcombine.high %v577, %v593
        %v636 = vunpack.c.l.s4 1934713408
        %v637 = vunpack.c.0.s8 %v636
        %v638 = vlaneseq
        %v639 = vshrl.u32 %v638, 7
        %v640 = vsub.s32 %v637, %v639
        %v641 = vrot.slane %v633, %v640
        %v643 = vunpack.c.l.s4 1934713408
        %v644 = vunpack.c.0.s8 %v643
        %v645 = vlaneseq
        %v646 = vshrl.u32 %v645, 7
        %v647 = vsub.s32 %v644, %v646
        %v648 = vrot.slane %v634, %v647
        %v649 = vcombine.low %v584, %v600
        %v650 = vcombine.high %v584, %v600
        %v652 = vunpack.c.l.s4 1934713408
        %v653 = vunpack.c.0.s8 %v652
        %v654 = vlaneseq
        %v655 = vshrl.u32 %v654, 7
        %v656 = vsub.s32 %v653, %v655
        %v657 = vrot.slane %v649, %v656
        %v659 = vunpack.c.l.s4 1934713408
        %v660 = vunpack.c.0.s8 %v659
        %v661 = vlaneseq
        %v662 = vshrl.u32 %v661, 7
        %v663 = vsub.s32 %v660, %v662
        %v664 = vrot.slane %v650, %v663
        %v665 = vcombine.low %v609, %v625
        %v666 = vcombine.high %v609, %v625
        %v668 = vunpack.c.l.s4 1934713408
        %v669 = vunpack.c.0.s8 %v668
        %v670 = vlaneseq
        %v671 = vshrl.u32 %v670, 7
        %v672 = vsub.s32 %v669, %v671
        %v673 = vrot.slane %v665, %v672
        %v675 = vunpack.c.l.s4 1934713408
        %v676 = vunpack.c.0.s8 %v675
        %v677 = vlaneseq
        %v678 = vshrl.u32 %v677, 7
        %v679 = vsub.s32 %v676, %v678
        %v680 = vrot.slane %v666, %v679
        %v681 = vcombine.low %v616, %v632
        %v682 = vcombine.high %v616, %v632
        %v684 = vunpack.c.l.s4 1934713408
        %v685 = vunpack.c.0.s8 %v684
        %v686 = vlaneseq
        %v687 = vshrl.u32 %v686, 7
        %v688 = vsub.s32 %v685, %v687
        %v689 = vrot.slane %v681, %v688
        %v691 = vunpack.c.l.s4 1934713408
        %v692 = vunpack.c.0.s8 %v691
        %v693 = vlaneseq
        %v694 = vshrl.u32 %v693, 7
        %v695 = vsub.s32 %v692, %v694
        %v696 = vrot.slane %v682, %v695
        %v697 = vcombine.low %v641, %v673
        %v698 = vcombine.high %v641, %v673
        %v699 = vcombine.low %v648, %v680
        %v700 = vcombine.high %v648, %v680
        %v701 = vcombine.low %v657, %v689
        %v702 = vcombine.high %v657, %v689
        %v703 = vcombine.low %v664, %v696
        %v704 = vcombine.high %v664, %v696
        %v705 = vcombine.low %v386, %v428
        %v706 = vcombine.high %v386, %v428
        %v708 = vunpack.c.l.s4 1983009808
        %v709 = vunpack.c.0.s8 %v708
        %v710 = vlaneseq
        %v711 = vshrl.u32 %v710, 7
        %v712 = vsub.s32 %v709, %v711
        %v713 = vrot.slane %v705, %v712
        %v715 = vunpack.c.l.s4 1983009808
        %v716 = vunpack.c.0.s8 %v715
        %v717 = vlaneseq
        %v718 = vshrl.u32 %v717, 7
        %v719 = vsub.s32 %v716, %v718
        %v720 = vrot.slane %v706, %v719
        %v721 = vcombine.low %v404, %v452
        %v722 = vcombine.high %v404, %v452
        %v724 = vunpack.c.l.s4 1983009808
        %v725 = vunpack.c.0.s8 %v724
        %v726 = vlaneseq
        %v727 = vshrl.u32 %v726, 7
        %v728 = vsub.s32 %v725, %v727
        %v729 = vrot.slane %v721, %v728
        %v731 = vunpack.c.l.s4 1983009808
        %v732 = vunpack.c.0.s8 %v731
        %v733 = vlaneseq
        %v734 = vshrl.u32 %v733, 7
        %v735 = vsub.s32 %v732, %v734
        %v736 = vrot.slane %v722, %v735
        %v737 = vcombine.low %v476, %v524
        %v738 = vcombine.high %v476, %v524
        %v740 = vunpack.c.l.s4 1983009808
        %v741 = vunpack.c.0.s8 %v740
        %v742 = vlaneseq
        %v743 = vshrl.u32 %v742, 7
        %v744 = vsub.s32 %v741, %v743
        %v745 = vrot.slane %v737, %v744
        %v747 = vunpack.c.l.s4 1983009808
        %v748 = vunpack.c.0.s8 %v747
        %v749 = vlaneseq
        %v750 = vshrl.u32 %v749, 7
        %v751 = vsub.s32 %v748, %v750
        %v752 = vrot.slane %v738, %v751
        %v753 = vcombine.low %v500, %v548
        %v754 = vcombine.high %v500, %v548
        %v756 = vunpack.c.l.s4 1983009808
        %v757 = vunpack.c.0.s8 %v756
        %v758 = vlaneseq
        %v759 = vshrl.u32 %v758, 7
        %v760 = vsub.s32 %v757, %v759
        %v761 = vrot.slane %v753, %v760
        %v763 = vunpack.c.l.s4 1983009808
        %v764 = vunpack.c.0.s8 %v763
        %v765 = vlaneseq
        %v766 = vshrl.u32 %v765, 7
        %v767 = vsub.s32 %v764, %v766
        %v768 = vrot.slane %v754, %v767
        %v769 = vcombine.low %v713, %v729
        %v770 = vcombine.high %v713, %v729
        %v772 = vunpack.c.l.s4 1934713408
        %v773 = vunpack.c.0.s8 %v772
        %v774 = vlaneseq
        %v775 = vshrl.u32 %v774, 7
        %v776 = vsub.s32 %v773, %v775
        %v777 = vrot.slane %v769, %v776
        %v779 = vunpack.c.l.s4 1934713408
        %v780 = vunpack.c.0.s8 %v779
        %v781 = vlaneseq
        %v782 = vshrl.u32 %v781, 7
        %v783 = vsub.s32 %v780, %v782
        %v784 = vrot.slane %v770, %v783
        %v785 = vcombine.low %v720, %v736
        %v786 = vcombine.high %v720, %v736
        %v788 = vunpack.c.l.s4 1934713408
        %v789 = vunpack.c.0.s8 %v788
        %v790 = vlaneseq
        %v791 = vshrl.u32 %v790, 7
        %v792 = vsub.s32 %v789, %v791
        %v793 = vrot.slane %v785, %v792
        %v795 = vunpack.c.l.s4 1934713408
        %v796 = vunpack.c.0.s8 %v795
        %v797 = vlaneseq
        %v798 = vshrl.u32 %v797, 7
        %v799 = vsub.s32 %v796, %v798
        %v800 = vrot.slane %v786, %v799
        %v801 = vcombine.low %v745, %v761
        %v802 = vcombine.high %v745, %v761
        %v804 = vunpack.c.l.s4 1934713408
        %v805 = vunpack.c.0.s8 %v804
        %v806 = vlaneseq
        %v807 = vshrl.u32 %v806, 7
        %v808 = vsub.s32 %v805, %v807
        %v809 = vrot.slane %v801, %v808
        %v811 = vunpack.c.l.s4 1934713408
        %v812 = vunpack.c.0.s8 %v811
        %v813 = vlaneseq
        %v814 = vshrl.u32 %v813, 7
        %v815 = vsub.s32 %v812, %v814
        %v816 = vrot.slane %v802, %v815
        %v817 = vcombine.low %v752, %v768
        %v818 = vcombine.high %v752, %v768
        %v820 = vunpack.c.l.s4 1934713408
        %v821 = vunpack.c.0.s8 %v820
        %v822 = vlaneseq
        %v823 = vshrl.u32 %v822, 7
        %v824 = vsub.s32 %v821, %v823
        %v825 = vrot.slane %v817, %v824
        %v827 = vunpack.c.l.s4 1934713408
        %v828 = vunpack.c.0.s8 %v827
        %v829 = vlaneseq
        %v830 = vshrl.u32 %v829, 7
        %v831 = vsub.s32 %v828, %v830
        %v832 = vrot.slane %v818, %v831
        %v833 = vcombine.low %v777, %v809
        %v834 = vcombine.high %v777, %v809
        %v835 = vcombine.low %v784, %v816
        %v836 = vcombine.high %v784, %v816
        %v837 = vcombine.low %v793, %v825
        %v838 = vcombine.high %v793, %v825
        %v839 = vcombine.low %v800, %v832
        %v840 = vcombine.high %v800, %v832
        %v841 = vcombine.low %v387, %v430
        %v842 = vcombine.high %v387, %v430
        %v844 = vunpack.c.l.s4 1983009808
        %v845 = vunpack.c.0.s8 %v844
        %v846 = vlaneseq
        %v847 = vshrl.u32 %v846, 7
        %v848 = vsub.s32 %v845, %v847
        %v849 = vrot.slane %v841, %v848
        %v851 = vunpack.c.l.s4 1983009808
        %v852 = vunpack.c.0.s8 %v851
        %v853 = vlaneseq
        %v854 = vshrl.u32 %v853, 7
        %v855 = vsub.s32 %v852, %v854
        %v856 = vrot.slane %v842, %v855
        %v857 = vcombine.low %v406, %v454
        %v858 = vcombine.high %v406, %v454
        %v860 = vunpack.c.l.s4 1983009808
        %v861 = vunpack.c.0.s8 %v860
        %v862 = vlaneseq
        %v863 = vshrl.u32 %v862, 7
        %v864 = vsub.s32 %v861, %v863
        %v865 = vrot.slane %v857, %v864
        %v867 = vunpack.c.l.s4 1983009808
        %v868 = vunpack.c.0.s8 %v867
        %v869 = vlaneseq
        %v870 = vshrl.u32 %v869, 7
        %v871 = vsub.s32 %v868, %v870
        %v872 = vrot.slane %v858, %v871
        %v873 = vcombine.low %v478, %v526
        %v874 = vcombine.high %v478, %v526
        %v876 = vunpack.c.l.s4 1983009808
        %v877 = vunpack.c.0.s8 %v876
        %v878 = vlaneseq
        %v879 = vshrl.u32 %v878, 7
        %v880 = vsub.s32 %v877, %v879
        %v881 = vrot.slane %v873, %v880
        %v883 = vunpack.c.l.s4 1983009808
        %v884 = vunpack.c.0.s8 %v883
        %v885 = vlaneseq
        %v886 = vshrl.u32 %v885, 7
        %v887 = vsub.s32 %v884, %v886
        %v888 = vrot.slane %v874, %v887
        %v889 = vcombine.low %v502, %v550
        %v890 = vcombine.high %v502, %v550
        %v892 = vunpack.c.l.s4 1983009808
        %v893 = vunpack.c.0.s8 %v892
        %v894 = vlaneseq
        %v895 = vshrl.u32 %v894, 7
        %v896 = vsub.s32 %v893, %v895
        %v897 = vrot.slane %v889, %v896
        %v899 = vunpack.c.l.s4 1983009808
        %v900 = vunpack.c.0.s8 %v899
        %v901 = vlaneseq
        %v902 = vshrl.u32 %v901, 7
        %v903 = vsub.s32 %v900, %v902
        %v904 = vrot.slane %v890, %v903
        %v905 = vcombine.low %v849, %v865
        %v906 = vcombine.high %v849, %v865
        %v908 = vunpack.c.l.s4 1934713408
        %v909 = vunpack.c.0.s8 %v908
        %v910 = vlaneseq
        %v911 = vshrl.u32 %v910, 7
        %v912 = vsub.s32 %v909, %v911
        %v913 = vrot.slane %v905, %v912
        %v915 = vunpack.c.l.s4 1934713408
        %v916 = vunpack.c.0.s8 %v915
        %v917 = vlaneseq
        %v918 = vshrl.u32 %v917, 7
        %v919 = vsub.s32 %v916, %v918
        %v920 = vrot.slane %v906, %v919
        %v921 = vcombine.low %v856, %v872
        %v922 = vcombine.high %v856, %v872
        %v924 = vunpack.c.l.s4 1934713408
        %v925 = vunpack.c.0.s8 %v924
        %v926 = vlaneseq
        %v927 = vshrl.u32 %v926, 7
        %v928 = vsub.s32 %v925, %v927
        %v929 = vrot.slane %v921, %v928
        %v931 = vunpack.c.l.s4 1934713408
        %v932 = vunpack.c.0.s8 %v931
        %v933 = vlaneseq
        %v934 = vshrl.u32 %v933, 7
        %v935 = vsub.s32 %v932, %v934
        %v936 = vrot.slane %v922, %v935
        %v937 = vcombine.low %v881, %v897
        %v938 = vcombine.high %v881, %v897
        %v940 = vunpack.c.l.s4 1934713408
        %v941 = vunpack.c.0.s8 %v940
        %v942 = vlaneseq
        %v943 = vshrl.u32 %v942, 7
        %v944 = vsub.s32 %v941, %v943
        %v945 = vrot.slane %v937, %v944
        %v947 = vunpack.c.l.s4 1934713408
        %v948 = vunpack.c.0.s8 %v947
        %v949 = vlaneseq
        %v950 = vshrl.u32 %v949, 7
        %v951 = vsub.s32 %v948, %v950
        %v952 = vrot.slane %v938, %v951
        %v953 = vcombine.low %v888, %v904
        %v954 = vcombine.high %v888, %v904
        %v956 = vunpack.c.l.s4 1934713408
        %v957 = vunpack.c.0.s8 %v956
        %v958 = vlaneseq
        %v959 = vshrl.u32 %v958, 7
        %v960 = vsub.s32 %v957, %v959
        %v961 = vrot.slane %v953, %v960
        %v963 = vunpack.c.l.s4 1934713408
        %v964 = vunpack.c.0.s8 %v963
        %v965 = vlaneseq
        %v966 = vshrl.u32 %v965, 7
        %v967 = vsub.s32 %v964, %v966
        %v968 = vrot.slane %v954, %v967
        %v969 = vcombine.low %v913, %v945
        %v970 = vcombine.high %v913, %v945
        %v971 = vcombine.low %v920, %v952
        %v972 = vcombine.high %v920, %v952
        %v973 = vcombine.low %v929, %v961
        %v974 = vcombine.high %v929, %v961
        %v975 = vcombine.low %v936, %v968
        %v976 = vcombine.high %v936, %v968
        %v977 = vcombine.low %v388, %v432
        %v978 = vcombine.high %v388, %v432
        %v980 = vunpack.c.l.s4 1983009808
        %v981 = vunpack.c.0.s8 %v980
        %v982 = vlaneseq
        %v983 = vshrl.u32 %v982, 7
        %v984 = vsub.s32 %v981, %v983
        %v985 = vrot.slane %v977, %v984
        %v987 = vunpack.c.l.s4 1983009808
        %v988 = vunpack.c.0.s8 %v987
        %v989 = vlaneseq
        %v990 = vshrl.u32 %v989, 7
        %v991 = vsub.s32 %v988, %v990
        %v992 = vrot.slane %v978, %v991
        %v993 = vcombine.low %v408, %v456
        %v994 = vcombine.high %v408, %v456
        %v996 = vunpack.c.l.s4 1983009808
        %v997 = vunpack.c.0.s8 %v996
        %v998 = vlaneseq
        %v999 = vshrl.u32 %v998, 7
        %v1000 = vsub.s32 %v997, %v999
        %v1001 = vrot.slane %v993, %v1000
        %v1003 = vunpack.c.l.s4 1983009808
        %v1004 = vunpack.c.0.s8 %v1003
        %v1005 = vlaneseq
        %v1006 = vshrl.u32 %v1005, 7
        %v1007 = vsub.s32 %v1004, %v1006
        %v1008 = vrot.slane %v994, %v1007
        %v1009 = vcombine.low %v480, %v528
        %v1010 = vcombine.high %v480, %v528
        %v1012 = vunpack.c.l.s4 1983009808
        %v1013 = vunpack.c.0.s8 %v1012
        %v1014 = vlaneseq
        %v1015 = vshrl.u32 %v1014, 7
        %v1016 = vsub.s32 %v1013, %v1015
        %v1017 = vrot.slane %v1009, %v1016
        %v1019 = vunpack.c.l.s4 1983009808
        %v1020 = vunpack.c.0.s8 %v1019
        %v1021 = vlaneseq
        %v1022 = vshrl.u32 %v1021, 7
        %v1023 = vsub.s32 %v1020, %v1022
        %v1024 = vrot.slane %v1010, %v1023
        %v1025 = vcombine.low %v504, %v552
        %v1026 = vcombine.high %v504, %v552
        %v1028 = vunpack.c.l.s4 1983009808
        %v1029 = vunpack.c.0.s8 %v1028
        %v1030 = vlaneseq
        %v1031 = vshrl.u32 %v1030, 7
        %v1032 = vsub.s32 %v1029, %v1031
        %v1033 = vrot.slane %v1025, %v1032
        %v1035 = vunpack.c.l.s4 1983009808
        %v1036 = vunpack.c.0.s8 %v1035
        %v1037 = vlaneseq
        %v1038 = vshrl.u32 %v1037, 7
        %v1039 = vsub.s32 %v1036, %v1038
        %v1040 = vrot.slane %v1026, %v1039
        %v1041 = vcombine.low %v985, %v1001
        %v1042 = vcombine.high %v985, %v1001
        %v1044 = vunpack.c.l.s4 1934713408
        %v1045 = vunpack.c.0.s8 %v1044
        %v1046 = vlaneseq
        %v1047 = vshrl.u32 %v1046, 7
        %v1048 = vsub.s32 %v1045, %v1047
        %v1049 = vrot.slane %v1041, %v1048
        %v1051 = vunpack.c.l.s4 1934713408
        %v1052 = vunpack.c.0.s8 %v1051
        %v1053 = vlaneseq
        %v1054 = vshrl.u32 %v1053, 7
        %v1055 = vsub.s32 %v1052, %v1054
        %v1056 = vrot.slane %v1042, %v1055
        %v1057 = vcombine.low %v992, %v1008
        %v1058 = vcombine.high %v992, %v1008
        %v1060 = vunpack.c.l.s4 1934713408
        %v1061 = vunpack.c.0.s8 %v1060
        %v1062 = vlaneseq
        %v1063 = vshrl.u32 %v1062, 7
        %v1064 = vsub.s32 %v1061, %v1063
        %v1065 = vrot.slane %v1057, %v1064
        %v1067 = vunpack.c.l.s4 1934713408
        %v1068 = vunpack.c.0.s8 %v1067
        %v1069 = vlaneseq
        %v1070 = vshrl.u32 %v1069, 7
        %v1071 = vsub.s32 %v1068, %v1070
        %v1072 = vrot.slane %v1058, %v1071
        %v1073 = vcombine.low %v1017, %v1033
        %v1074 = vcombine.high %v1017, %v1033
        %v1076 = vunpack.c.l.s4 1934713408
        %v1077 = vunpack.c.0.s8 %v1076
        %v1078 = vlaneseq
        %v1079 = vshrl.u32 %v1078, 7
        %v1080 = vsub.s32 %v1077, %v1079
        %v1081 = vrot.slane %v1073, %v1080
        %v1083 = vunpack.c.l.s4 1934713408
        %v1084 = vunpack.c.0.s8 %v1083
        %v1085 = vlaneseq
        %v1086 = vshrl.u32 %v1085, 7
        %v1087 = vsub.s32 %v1084, %v1086
        %v1088 = vrot.slane %v1074, %v1087
        %v1089 = vcombine.low %v1024, %v1040
        %v1090 = vcombine.high %v1024, %v1040
        %v1092 = vunpack.c.l.s4 1934713408
        %v1093 = vunpack.c.0.s8 %v1092
        %v1094 = vlaneseq
        %v1095 = vshrl.u32 %v1094, 7
        %v1096 = vsub.s32 %v1093, %v1095
        %v1097 = vrot.slane %v1089, %v1096
        %v1099 = vunpack.c.l.s4 1934713408
        %v1100 = vunpack.c.0.s8 %v1099
        %v1101 = vlaneseq
        %v1102 = vshrl.u32 %v1101, 7
        %v1103 = vsub.s32 %v1100, %v1102
        %v1104 = vrot.slane %v1090, %v1103
        %v1105 = vcombine.low %v1049, %v1081
        %v1106 = vcombine.high %v1049, %v1081
        %v1107 = vcombine.low %v1056, %v1088
        %v1108 = vcombine.high %v1056, %v1088
        %v1109 = vcombine.low %v1065, %v1097
        %v1110 = vcombine.high %v1065, %v1097
        %v1111 = vcombine.low %v1072, %v1104
        %v1112 = vcombine.high %v1072, %v1104
        %v1113 = vcombine.low %v389, %v434
        %v1114 = vcombine.high %v389, %v434
        %v1116 = vunpack.c.l.s4 1983009808
        %v1117 = vunpack.c.0.s8 %v1116
        %v1118 = vlaneseq
        %v1119 = vshrl.u32 %v1118, 7
        %v1120 = vsub.s32 %v1117, %v1119
        %v1121 = vrot.slane %v1113, %v1120
        %v1123 = vunpack.c.l.s4 1983009808
        %v1124 = vunpack.c.0.s8 %v1123
        %v1125 = vlaneseq
        %v1126 = vshrl.u32 %v1125, 7
        %v1127 = vsub.s32 %v1124, %v1126
        %v1128 = vrot.slane %v1114, %v1127
        %v1129 = vcombine.low %v410, %v458
        %v1130 = vcombine.high %v410, %v458
        %v1132 = vunpack.c.l.s4 1983009808
        %v1133 = vunpack.c.0.s8 %v1132
        %v1134 = vlaneseq
        %v1135 = vshrl.u32 %v1134, 7
        %v1136 = vsub.s32 %v1133, %v1135
        %v1137 = vrot.slane %v1129, %v1136
        %v1139 = vunpack.c.l.s4 1983009808
        %v1140 = vunpack.c.0.s8 %v1139
        %v1141 = vlaneseq
        %v1142 = vshrl.u32 %v1141, 7
        %v1143 = vsub.s32 %v1140, %v1142
        %v1144 = vrot.slane %v1130, %v1143
        %v1145 = vcombine.low %v482, %v530
        %v1146 = vcombine.high %v482, %v530
        %v1148 = vunpack.c.l.s4 1983009808
        %v1149 = vunpack.c.0.s8 %v1148
        %v1150 = vlaneseq
        %v1151 = vshrl.u32 %v1150, 7
        %v1152 = vsub.s32 %v1149, %v1151
        %v1153 = vrot.slane %v1145, %v1152
        %v1155 = vunpack.c.l.s4 1983009808
        %v1156 = vunpack.c.0.s8 %v1155
        %v1157 = vlaneseq
        %v1158 = vshrl.u32 %v1157, 7
        %v1159 = vsub.s32 %v1156, %v1158
        %v1160 = vrot.slane %v1146, %v1159
        %v1161 = vcombine.low %v506, %v554
        %v1162 = vcombine.high %v506, %v554
        %v1164 = vunpack.c.l.s4 1983009808
        %v1165 = vunpack.c.0.s8 %v1164
        %v1166 = vlaneseq
        %v1167 = vshrl.u32 %v1166, 7
        %v1168 = vsub.s32 %v1165, %v1167
        %v1169 = vrot.slane %v1161, %v1168
        %v1171 = vunpack.c.l.s4 1983009808
        %v1172 = vunpack.c.0.s8 %v1171
        %v1173 = vlaneseq
        %v1174 = vshrl.u32 %v1173, 7
        %v1175 = vsub.s32 %v1172, %v1174
        %v1176 = vrot.slane %v1162, %v1175
        %v1177 = vcombine.low %v1121, %v1137
        %v1178 = vcombine.high %v1121, %v1137
        %v1180 = vunpack.c.l.s4 1934713408
        %v1181 = vunpack.c.0.s8 %v1180
        %v1182 = vlaneseq
        %v1183 = vshrl.u32 %v1182, 7
        %v1184 = vsub.s32 %v1181, %v1183
        %v1185 = vrot.slane %v1177, %v1184
        %v1187 = vunpack.c.l.s4 1934713408
        %v1188 = vunpack.c.0.s8 %v1187
        %v1189 = vlaneseq
        %v1190 = vshrl.u32 %v1189, 7
        %v1191 = vsub.s32 %v1188, %v1190
        %v1192 = vrot.slane %v1178, %v1191
        %v1193 = vcombine.low %v1128, %v1144
        %v1194 = vcombine.high %v1128, %v1144
        %v1196 = vunpack.c.l.s4 1934713408
        %v1197 = vunpack.c.0.s8 %v1196
        %v1198 = vlaneseq
        %v1199 = vshrl.u32 %v1198, 7
        %v1200 = vsub.s32 %v1197, %v1199
        %v1201 = vrot.slane %v1193, %v1200
        %v1203 = vunpack.c.l.s4 1934713408
        %v1204 = vunpack.c.0.s8 %v1203
        %v1205 = vlaneseq
        %v1206 = vshrl.u32 %v1205, 7
        %v1207 = vsub.s32 %v1204, %v1206
        %v1208 = vrot.slane %v1194, %v1207
        %v1209 = vcombine.low %v1153, %v1169
        %v1210 = vcombine.high %v1153, %v1169
        %v1212 = vunpack.c.l.s4 1934713408
        %v1213 = vunpack.c.0.s8 %v1212
        %v1214 = vlaneseq
        %v1215 = vshrl.u32 %v1214, 7
        %v1216 = vsub.s32 %v1213, %v1215
        %v1217 = vrot.slane %v1209, %v1216
        %v1219 = vunpack.c.l.s4 1934713408
        %v1220 = vunpack.c.0.s8 %v1219
        %v1221 = vlaneseq
        %v1222 = vshrl.u32 %v1221, 7
        %v1223 = vsub.s32 %v1220, %v1222
        %v1224 = vrot.slane %v1210, %v1223
        %v1225 = vcombine.low %v1160, %v1176
        %v1226 = vcombine.high %v1160, %v1176
        %v1228 = vunpack.c.l.s4 1934713408
        %v1229 = vunpack.c.0.s8 %v1228
        %v1230 = vlaneseq
        %v1231 = vshrl.u32 %v1230, 7
        %v1232 = vsub.s32 %v1229, %v1231
        %v1233 = vrot.slane %v1225, %v1232
        %v1235 = vunpack.c.l.s4 1934713408
        %v1236 = vunpack.c.0.s8 %v1235
        %v1237 = vlaneseq
        %v1238 = vshrl.u32 %v1237, 7
        %v1239 = vsub.s32 %v1236, %v1238
        %v1240 = vrot.slane %v1226, %v1239
        %v1241 = vcombine.low %v1185, %v1217
        %v1242 = vcombine.high %v1185, %v1217
        %v1243 = vcombine.low %v1192, %v1224
        %v1244 = vcombine.high %v1192, %v1224
        %v1245 = vcombine.low %v1201, %v1233
        %v1246 = vcombine.high %v1201, %v1233
        %v1247 = vcombine.low %v1208, %v1240
        %v1248 = vcombine.high %v1208, %v1240
        %v1249 = vcombine.low %v390, %v436
        %v1250 = vcombine.high %v390, %v436
        %v1252 = vunpack.c.l.s4 1983009808
        %v1253 = vunpack.c.0.s8 %v1252
        %v1254 = vlaneseq
        %v1255 = vshrl.u32 %v1254, 7
        %v1256 = vsub.s32 %v1253, %v1255
        %v1257 = vrot.slane %v1249, %v1256
        %v1259 = vunpack.c.l.s4 1983009808
        %v1260 = vunpack.c.0.s8 %v1259
        %v1261 = vlaneseq
        %v1262 = vshrl.u32 %v1261, 7
        %v1263 = vsub.s32 %v1260, %v1262
        %v1264 = vrot.slane %v1250, %v1263
        %v1265 = vcombine.low %v412, %v460
        %v1266 = vcombine.high %v412, %v460
        %v1268 = vunpack.c.l.s4 1983009808
        %v1269 = vunpack.c.0.s8 %v1268
        %v1270 = vlaneseq
        %v1271 = vshrl.u32 %v1270, 7
        %v1272 = vsub.s32 %v1269, %v1271
        %v1273 = vrot.slane %v1265, %v1272
        %v1275 = vunpack.c.l.s4 1983009808
        %v1276 = vunpack.c.0.s8 %v1275
        %v1277 = vlaneseq
        %v1278 = vshrl.u32 %v1277, 7
        %v1279 = vsub.s32 %v1276, %v1278
        %v1280 = vrot.slane %v1266, %v1279
        %v1281 = vcombine.low %v484, %v532
        %v1282 = vcombine.high %v484, %v532
        %v1284 = vunpack.c.l.s4 1983009808
        %v1285 = vunpack.c.0.s8 %v1284
        %v1286 = vlaneseq
        %v1287 = vshrl.u32 %v1286, 7
        %v1288 = vsub.s32 %v1285, %v1287
        %v1289 = vrot.slane %v1281, %v1288
        %v1291 = vunpack.c.l.s4 1983009808
        %v1292 = vunpack.c.0.s8 %v1291
        %v1293 = vlaneseq
        %v1294 = vshrl.u32 %v1293, 7
        %v1295 = vsub.s32 %v1292, %v1294
        %v1296 = vrot.slane %v1282, %v1295
        %v1297 = vcombine.low %v508, %v556
        %v1298 = vcombine.high %v508, %v556
        %v1300 = vunpack.c.l.s4 1983009808
        %v1301 = vunpack.c.0.s8 %v1300
        %v1302 = vlaneseq
        %v1303 = vshrl.u32 %v1302, 7
        %v1304 = vsub.s32 %v1301, %v1303
        %v1305 = vrot.slane %v1297, %v1304
        %v1307 = vunpack.c.l.s4 1983009808
        %v1308 = vunpack.c.0.s8 %v1307
        %v1309 = vlaneseq
        %v1310 = vshrl.u32 %v1309, 7
        %v1311 = vsub.s32 %v1308, %v1310
        %v1312 = vrot.slane %v1298, %v1311
        %v1313 = vcombine.low %v1257, %v1273
        %v1314 = vcombine.high %v1257, %v1273
        %v1316 = vunpack.c.l.s4 1934713408
        %v1317 = vunpack.c.0.s8 %v1316
        %v1318 = vlaneseq
        %v1319 = vshrl.u32 %v1318, 7
        %v1320 = vsub.s32 %v1317, %v1319
        %v1321 = vrot.slane %v1313, %v1320
        %v1323 = vunpack.c.l.s4 1934713408
        %v1324 = vunpack.c.0.s8 %v1323
        %v1325 = vlaneseq
        %v1326 = vshrl.u32 %v1325, 7
        %v1327 = vsub.s32 %v1324, %v1326
        %v1328 = vrot.slane %v1314, %v1327
        %v1329 = vcombine.low %v1264, %v1280
        %v1330 = vcombine.high %v1264, %v1280
        %v1332 = vunpack.c.l.s4 1934713408
        %v1333 = vunpack.c.0.s8 %v1332
        %v1334 = vlaneseq
        %v1335 = vshrl.u32 %v1334, 7
        %v1336 = vsub.s32 %v1333, %v1335
        %v1337 = vrot.slane %v1329, %v1336
        %v1339 = vunpack.c.l.s4 1934713408
        %v1340 = vunpack.c.0.s8 %v1339
        %v1341 = vlaneseq
        %v1342 = vshrl.u32 %v1341, 7
        %v1343 = vsub.s32 %v1340, %v1342
        %v1344 = vrot.slane %v1330, %v1343
        %v1345 = vcombine.low %v1289, %v1305
        %v1346 = vcombine.high %v1289, %v1305
        %v1348 = vunpack.c.l.s4 1934713408
        %v1349 = vunpack.c.0.s8 %v1348
        %v1350 = vlaneseq
        %v1351 = vshrl.u32 %v1350, 7
        %v1352 = vsub.s32 %v1349, %v1351
        %v1353 = vrot.slane %v1345, %v1352
        %v1355 = vunpack.c.l.s4 1934713408
        %v1356 = vunpack.c.0.s8 %v1355
        %v1357 = vlaneseq
        %v1358 = vshrl.u32 %v1357, 7
        %v1359 = vsub.s32 %v1356, %v1358
        %v1360 = vrot.slane %v1346, %v1359
        %v1361 = vcombine.low %v1296, %v1312
        %v1362 = vcombine.high %v1296, %v1312
        %v1364 = vunpack.c.l.s4 1934713408
        %v1365 = vunpack.c.0.s8 %v1364
        %v1366 = vlaneseq
        %v1367 = vshrl.u32 %v1366, 7
        %v1368 = vsub.s32 %v1365, %v1367
        %v1369 = vrot.slane %v1361, %v1368
        %v1371 = vunpack.c.l.s4 1934713408
        %v1372 = vunpack.c.0.s8 %v1371
        %v1373 = vlaneseq
        %v1374 = vshrl.u32 %v1373, 7
        %v1375 = vsub.s32 %v1372, %v1374
        %v1376 = vrot.slane %v1362, %v1375
        %v1377 = vcombine.low %v1321, %v1353
        %v1378 = vcombine.high %v1321, %v1353
        %v1379 = vcombine.low %v1328, %v1360
        %v1380 = vcombine.high %v1328, %v1360
        %v1381 = vcombine.low %v1337, %v1369
        %v1382 = vcombine.high %v1337, %v1369
        %v1383 = vcombine.low %v1344, %v1376
        %v1384 = vcombine.high %v1344, %v1376
        %v1385 = vcombine.low %v391, %v438
        %v1386 = vcombine.high %v391, %v438
        %v1388 = vunpack.c.l.s4 1983009808
        %v1389 = vunpack.c.0.s8 %v1388
        %v1390 = vlaneseq
        %v1391 = vshrl.u32 %v1390, 7
        %v1392 = vsub.s32 %v1389, %v1391
        %v1393 = vrot.slane %v1385, %v1392
        %v1395 = vunpack.c.l.s4 1983009808
        %v1396 = vunpack.c.0.s8 %v1395
        %v1397 = vlaneseq
        %v1398 = vshrl.u32 %v1397, 7
        %v1399 = vsub.s32 %v1396, %v1398
        %v1400 = vrot.slane %v1386, %v1399
        %v1401 = vcombine.low %v414, %v462
        %v1402 = vcombine.high %v414, %v462
        %v1404 = vunpack.c.l.s4 1983009808
        %v1405 = vunpack.c.0.s8 %v1404
        %v1406 = vlaneseq
        %v1407 = vshrl.u32 %v1406, 7
        %v1408 = vsub.s32 %v1405, %v1407
        %v1409 = vrot.slane %v1401, %v1408
        %v1411 = vunpack.c.l.s4 1983009808
        %v1412 = vunpack.c.0.s8 %v1411
        %v1413 = vlaneseq
        %v1414 = vshrl.u32 %v1413, 7
        %v1415 = vsub.s32 %v1412, %v1414
        %v1416 = vrot.slane %v1402, %v1415
        %v1417 = vcombine.low %v486, %v534
        %v1418 = vcombine.high %v486, %v534
        %v1420 = vunpack.c.l.s4 1983009808
        %v1421 = vunpack.c.0.s8 %v1420
        %v1422 = vlaneseq
        %v1423 = vshrl.u32 %v1422, 7
        %v1424 = vsub.s32 %v1421, %v1423
        %v1425 = vrot.slane %v1417, %v1424
        %v1427 = vunpack.c.l.s4 1983009808
        %v1428 = vunpack.c.0.s8 %v1427
        %v1429 = vlaneseq
        %v1430 = vshrl.u32 %v1429, 7
        %v1431 = vsub.s32 %v1428, %v1430
        %v1432 = vrot.slane %v1418, %v1431
        %v1433 = vcombine.low %v510, %v558
        %v1434 = vcombine.high %v510, %v558
        %v1436 = vunpack.c.l.s4 1983009808
        %v1437 = vunpack.c.0.s8 %v1436
        %v1438 = vlaneseq
        %v1439 = vshrl.u32 %v1438, 7
        %v1440 = vsub.s32 %v1437, %v1439
        %v1441 = vrot.slane %v1433, %v1440
        %v1443 = vunpack.c.l.s4 1983009808
        %v1444 = vunpack.c.0.s8 %v1443
        %v1445 = vlaneseq
        %v1446 = vshrl.u32 %v1445, 7
        %v1447 = vsub.s32 %v1444, %v1446
        %v1448 = vrot.slane %v1434, %v1447
        %v1449 = vcombine.low %v1393, %v1409
        %v1450 = vcombine.high %v1393, %v1409
        %v1452 = vunpack.c.l.s4 1934713408
        %v1453 = vunpack.c.0.s8 %v1452
        %v1454 = vlaneseq
        %v1455 = vshrl.u32 %v1454, 7
        %v1456 = vsub.s32 %v1453, %v1455
        %v1457 = vrot.slane %v1449, %v1456
        %v1459 = vunpack.c.l.s4 1934713408
        %v1460 = vunpack.c.0.s8 %v1459
        %v1461 = vlaneseq
        %v1462 = vshrl.u32 %v1461, 7
        %v1463 = vsub.s32 %v1460, %v1462
        %v1464 = vrot.slane %v1450, %v1463
        %v1465 = vcombine.low %v1400, %v1416
        %v1466 = vcombine.high %v1400, %v1416
        %v1468 = vunpack.c.l.s4 1934713408
        %v1469 = vunpack.c.0.s8 %v1468
        %v1470 = vlaneseq
        %v1471 = vshrl.u32 %v1470, 7
        %v1472 = vsub.s32 %v1469, %v1471
        %v1473 = vrot.slane %v1465, %v1472
        %v1475 = vunpack.c.l.s4 1934713408
        %v1476 = vunpack.c.0.s8 %v1475
        %v1477 = vlaneseq
        %v1478 = vshrl.u32 %v1477, 7
        %v1479 = vsub.s32 %v1476, %v1478
        %v1480 = vrot.slane %v1466, %v1479
        %v1481 = vcombine.low %v1425, %v1441
        %v1482 = vcombine.high %v1425, %v1441
        %v1484 = vunpack.c.l.s4 1934713408
        %v1485 = vunpack.c.0.s8 %v1484
        %v1486 = vlaneseq
        %v1487 = vshrl.u32 %v1486, 7
        %v1488 = vsub.s32 %v1485, %v1487
        %v1489 = vrot.slane %v1481, %v1488
        %v1491 = vunpack.c.l.s4 1934713408
        %v1492 = vunpack.c.0.s8 %v1491
        %v1493 = vlaneseq
        %v1494 = vshrl.u32 %v1493, 7
        %v1495 = vsub.s32 %v1492, %v1494
        %v1496 = vrot.slane %v1482, %v1495
        %v1497 = vcombine.low %v1432, %v1448
        %v1498 = vcombine.high %v1432, %v1448
        %v1500 = vunpack.c.l.s4 1934713408
        %v1501 = vunpack.c.0.s8 %v1500
        %v1502 = vlaneseq
        %v1503 = vshrl.u32 %v1502, 7
        %v1504 = vsub.s32 %v1501, %v1503
        %v1505 = vrot.slane %v1497, %v1504
        %v1507 = vunpack.c.l.s4 1934713408
        %v1508 = vunpack.c.0.s8 %v1507
        %v1509 = vlaneseq
        %v1510 = vshrl.u32 %v1509, 7
        %v1511 = vsub.s32 %v1508, %v1510
        %v1512 = vrot.slane %v1498, %v1511
        %v1513 = vcombine.low %v1457, %v1489
        %v1514 = vcombine.high %v1457, %v1489
        %v1515 = vcombine.low %v1464, %v1496
        %v1516 = vcombine.high %v1464, %v1496
        %v1517 = vcombine.low %v1473, %v1505
        %v1518 = vcombine.high %v1473, %v1505
        %v1519 = vcombine.low %v1480, %v1512
        %v1520 = vcombine.high %v1480, %v1512
        %v1521 = vcombine.low %v392, %v440
        %v1522 = vcombine.high %v392, %v440
        %v1524 = vunpack.c.l.s4 1983009808
        %v1525 = vunpack.c.0.s8 %v1524
        %v1526 = vlaneseq
        %v1527 = vshrl.u32 %v1526, 7
        %v1528 = vsub.s32 %v1525, %v1527
        %v1529 = vrot.slane %v1521, %v1528
        %v1531 = vunpack.c.l.s4 1983009808
        %v1532 = vunpack.c.0.s8 %v1531
        %v1533 = vlaneseq
        %v1534 = vshrl.u32 %v1533, 7
        %v1535 = vsub.s32 %v1532, %v1534
        %v1536 = vrot.slane %v1522, %v1535
        %v1537 = vcombine.low %v416, %v464
        %v1538 = vcombine.high %v416, %v464
        %v1540 = vunpack.c.l.s4 1983009808
        %v1541 = vunpack.c.0.s8 %v1540
        %v1542 = vlaneseq
        %v1543 = vshrl.u32 %v1542, 7
        %v1544 = vsub.s32 %v1541, %v1543
        %v1545 = vrot.slane %v1537, %v1544
        %v1547 = vunpack.c.l.s4 1983009808
        %v1548 = vunpack.c.0.s8 %v1547
        %v1549 = vlaneseq
        %v1550 = vshrl.u32 %v1549, 7
        %v1551 = vsub.s32 %v1548, %v1550
        %v1552 = vrot.slane %v1538, %v1551
        %v1553 = vcombine.low %v488, %v536
        %v1554 = vcombine.high %v488, %v536
        %v1556 = vunpack.c.l.s4 1983009808
        %v1557 = vunpack.c.0.s8 %v1556
        %v1558 = vlaneseq
        %v1559 = vshrl.u32 %v1558, 7
        %v1560 = vsub.s32 %v1557, %v1559
        %v1561 = vrot.slane %v1553, %v1560
        %v1563 = vunpack.c.l.s4 1983009808
        %v1564 = vunpack.c.0.s8 %v1563
        %v1565 = vlaneseq
        %v1566 = vshrl.u32 %v1565, 7
        %v1567 = vsub.s32 %v1564, %v1566
        %v1568 = vrot.slane %v1554, %v1567
        %v1569 = vcombine.low %v512, %v560
        %v1570 = vcombine.high %v512, %v560
        %v1572 = vunpack.c.l.s4 1983009808
        %v1573 = vunpack.c.0.s8 %v1572
        %v1574 = vlaneseq
        %v1575 = vshrl.u32 %v1574, 7
        %v1576 = vsub.s32 %v1573, %v1575
        %v1577 = vrot.slane %v1569, %v1576
        %v1579 = vunpack.c.l.s4 1983009808
        %v1580 = vunpack.c.0.s8 %v1579
        %v1581 = vlaneseq
        %v1582 = vshrl.u32 %v1581, 7
        %v1583 = vsub.s32 %v1580, %v1582
        %v1584 = vrot.slane %v1570, %v1583
        %v1585 = vcombine.low %v1529, %v1545
        %v1586 = vcombine.high %v1529, %v1545
        %v1588 = vunpack.c.l.s4 1934713408
        %v1589 = vunpack.c.0.s8 %v1588
        %v1590 = vlaneseq
        %v1591 = vshrl.u32 %v1590, 7
        %v1592 = vsub.s32 %v1589, %v1591
        %v1593 = vrot.slane %v1585, %v1592
        %v1595 = vunpack.c.l.s4 1934713408
        %v1596 = vunpack.c.0.s8 %v1595
        %v1597 = vlaneseq
        %v1598 = vshrl.u32 %v1597, 7
        %v1599 = vsub.s32 %v1596, %v1598
        %v1600 = vrot.slane %v1586, %v1599
        %v1601 = vcombine.low %v1536, %v1552
        %v1602 = vcombine.high %v1536, %v1552
        %v1604 = vunpack.c.l.s4 1934713408
        %v1605 = vunpack.c.0.s8 %v1604
        %v1606 = vlaneseq
        %v1607 = vshrl.u32 %v1606, 7
        %v1608 = vsub.s32 %v1605, %v1607
        %v1609 = vrot.slane %v1601, %v1608
        %v1611 = vunpack.c.l.s4 1934713408
        %v1612 = vunpack.c.0.s8 %v1611
        %v1613 = vlaneseq
        %v1614 = vshrl.u32 %v1613, 7
        %v1615 = vsub.s32 %v1612, %v1614
        %v1616 = vrot.slane %v1602, %v1615
        %v1617 = vcombine.low %v1561, %v1577
        %v1618 = vcombine.high %v1561, %v1577
        %v1620 = vunpack.c.l.s4 1934713408
        %v1621 = vunpack.c.0.s8 %v1620
        %v1622 = vlaneseq
        %v1623 = vshrl.u32 %v1622, 7
        %v1624 = vsub.s32 %v1621, %v1623
        %v1625 = vrot.slane %v1617, %v1624
        %v1627 = vunpack.c.l.s4 1934713408
        %v1628 = vunpack.c.0.s8 %v1627
        %v1629 = vlaneseq
        %v1630 = vshrl.u32 %v1629, 7
        %v1631 = vsub.s32 %v1628, %v1630
        %v1632 = vrot.slane %v1618, %v1631
        %v1633 = vcombine.low %v1568, %v1584
        %v1634 = vcombine.high %v1568, %v1584
        %v1636 = vunpack.c.l.s4 1934713408
        %v1637 = vunpack.c.0.s8 %v1636
        %v1638 = vlaneseq
        %v1639 = vshrl.u32 %v1638, 7
        %v1640 = vsub.s32 %v1637, %v1639
        %v1641 = vrot.slane %v1633, %v1640
        %v1643 = vunpack.c.l.s4 1934713408
        %v1644 = vunpack.c.0.s8 %v1643
        %v1645 = vlaneseq
        %v1646 = vshrl.u32 %v1645, 7
        %v1647 = vsub.s32 %v1644, %v1646
        %v1648 = vrot.slane %v1634, %v1647
        %v1649 = vcombine.low %v1593, %v1625
        %v1650 = vcombine.high %v1593, %v1625
        %v1651 = vcombine.low %v1600, %v1632
        %v1652 = vcombine.high %v1600, %v1632
        %v1653 = vcombine.low %v1609, %v1641
        %v1654 = vcombine.high %v1609, %v1641
        %v1655 = vcombine.low %v1616, %v1648
        %v1656 = vcombine.high %v1616, %v1648
        %1721 = vrot.lane.b32.xlu0 %v697, 127
        %v1722 = vpop.permute.xlu0 %1721
        %1723 = vrot.lane.b32.xlu0 %v698, 127
        %v1724 = vpop.permute.xlu0 %1723
        %1725 = vrot.lane.b32.xlu0 %v699, 127
        %v1726 = vpop.permute.xlu0 %1725
        %1727 = vrot.lane.b32.xlu0 %v700, 127
        %v1728 = vpop.permute.xlu0 %1727
        %1729 = vrot.lane.b32.xlu0 %v701, 127
        %v1730 = vpop.permute.xlu0 %1729
        %1731 = vrot.lane.b32.xlu0 %v702, 127
        %v1732 = vpop.permute.xlu0 %1731
        %1733 = vrot.lane.b32.xlu0 %v703, 127
        %v1734 = vpop.permute.xlu0 %1733
        %1735 = vrot.lane.b32.xlu0 %v704, 127
        %v1736 = vpop.permute.xlu0 %1735
        %1737 = vrot.lane.b32.xlu0 %v833, 127
        %v1738 = vpop.permute.xlu0 %1737
        %1739 = vrot.lane.b32.xlu0 %v834, 127
        %v1740 = vpop.permute.xlu0 %1739
        %1741 = vrot.lane.b32.xlu0 %v835, 127
        %v1742 = vpop.permute.xlu0 %1741
        %1743 = vrot.lane.b32.xlu0 %v836, 127
        %v1744 = vpop.permute.xlu0 %1743
        %1745 = vrot.lane.b32.xlu0 %v837, 127
        %v1746 = vpop.permute.xlu0 %1745
        %1747 = vrot.lane.b32.xlu0 %v838, 127
        %v1748 = vpop.permute.xlu0 %1747
        %1749 = vrot.lane.b32.xlu0 %v839, 127
        %v1750 = vpop.permute.xlu0 %1749
        %1751 = vrot.lane.b32.xlu0 %v840, 127
        %v1752 = vpop.permute.xlu0 %1751
        %1753 = vrot.lane.b32.xlu0 %v969, 127
        %v1754 = vpop.permute.xlu0 %1753
        %1755 = vrot.lane.b32.xlu0 %v970, 127
        %v1756 = vpop.permute.xlu0 %1755
        %1757 = vrot.lane.b32.xlu0 %v971, 127
        %v1758 = vpop.permute.xlu0 %1757
        %1759 = vrot.lane.b32.xlu0 %v972, 127
        %v1760 = vpop.permute.xlu0 %1759
        %1761 = vrot.lane.b32.xlu0 %v973, 127
        %v1762 = vpop.permute.xlu0 %1761
        %1763 = vrot.lane.b32.xlu0 %v974, 127
        %v1764 = vpop.permute.xlu0 %1763
        %1765 = vrot.lane.b32.xlu0 %v975, 127
        %v1766 = vpop.permute.xlu0 %1765
        %1767 = vrot.lane.b32.xlu0 %v976, 127
        %v1768 = vpop.permute.xlu0 %1767
        %1769 = vrot.lane.b32.xlu0 %v1105, 127
        %v1770 = vpop.permute.xlu0 %1769
        %1771 = vrot.lane.b32.xlu0 %v1106, 127
        %v1772 = vpop.permute.xlu0 %1771
        %1773 = vrot.lane.b32.xlu0 %v1107, 127
        %v1774 = vpop.permute.xlu0 %1773
        %1775 = vrot.lane.b32.xlu0 %v1108, 127
        %v1776 = vpop.permute.xlu0 %1775
        %1777 = vrot.lane.b32.xlu0 %v1109, 127
        %v1778 = vpop.permute.xlu0 %1777
        %1779 = vrot.lane.b32.xlu0 %v1110, 127
        %v1780 = vpop.permute.xlu0 %1779
        %1781 = vrot.lane.b32.xlu0 %v1111, 127
        %v1782 = vpop.permute.xlu0 %1781
        %1783 = vrot.lane.b32.xlu0 %v1112, 127
        %v1784 = vpop.permute.xlu0 %1783
        %1785 = vrot.lane.b32.xlu0 %v1241, 127
        %v1786 = vpop.permute.xlu0 %1785
        %1787 = vrot.lane.b32.xlu0 %v1242, 127
        %v1788 = vpop.permute.xlu0 %1787
        %1789 = vrot.lane.b32.xlu0 %v1243, 127
        %v1790 = vpop.permute.xlu0 %1789
        %1791 = vrot.lane.b32.xlu0 %v1244, 127
        %v1792 = vpop.permute.xlu0 %1791
        %1793 = vrot.lane.b32.xlu0 %v1245, 127
        %v1794 = vpop.permute.xlu0 %1793
        %1795 = vrot.lane.b32.xlu0 %v1246, 127
        %v1796 = vpop.permute.xlu0 %1795
        %1797 = vrot.lane.b32.xlu0 %v1247, 127
        %v1798 = vpop.permute.xlu0 %1797
        %1799 = vrot.lane.b32.xlu0 %v1248, 127
        %v1800 = vpop.permute.xlu0 %1799
        %1801 = vrot.lane.b32.xlu0 %v1377, 127
        %v1802 = vpop.permute.xlu0 %1801
        %1803 = vrot.lane.b32.xlu0 %v1378, 127
        %v1804 = vpop.permute.xlu0 %1803
        %1805 = vrot.lane.b32.xlu0 %v1379, 127
        %v1806 = vpop.permute.xlu0 %1805
        %1807 = vrot.lane.b32.xlu0 %v1380, 127
        %v1808 = vpop.permute.xlu0 %1807
        %1809 = vrot.lane.b32.xlu0 %v1381, 127
        %v1810 = vpop.permute.xlu0 %1809
        %1811 = vrot.lane.b32.xlu0 %v1382, 127
        %v1812 = vpop.permute.xlu0 %1811
        %1813 = vrot.lane.b32.xlu0 %v1383, 127
        %v1814 = vpop.permute.xlu0 %1813
        %1815 = vrot.lane.b32.xlu0 %v1384, 127
        %v1816 = vpop.permute.xlu0 %1815
        %1817 = vrot.lane.b32.xlu0 %v1513, 127
        %v1818 = vpop.permute.xlu0 %1817
        %1819 = vrot.lane.b32.xlu0 %v1514, 127
        %v1820 = vpop.permute.xlu0 %1819
        %1821 = vrot.lane.b32.xlu0 %v1515, 127
        %v1822 = vpop.permute.xlu0 %1821
        %1823 = vrot.lane.b32.xlu0 %v1516, 127
        %v1824 = vpop.permute.xlu0 %1823
        %1825 = vrot.lane.b32.xlu0 %v1517, 127
        %v1826 = vpop.permute.xlu0 %1825
        %1827 = vrot.lane.b32.xlu0 %v1518, 127
        %v1828 = vpop.permute.xlu0 %1827
        %1829 = vrot.lane.b32.xlu0 %v1519, 127
        %v1830 = vpop.permute.xlu0 %1829
        %1831 = vrot.lane.b32.xlu0 %v1520, 127
        %v1832 = vpop.permute.xlu0 %1831
        %1833 = vrot.lane.b32.xlu0 %v1649, 127
        %v1834 = vpop.permute.xlu0 %1833
        %1835 = vrot.lane.b32.xlu0 %v1650, 127
        %v1836 = vpop.permute.xlu0 %1835
        %1837 = vrot.lane.b32.xlu0 %v1651, 127
        %v1838 = vpop.permute.xlu0 %1837
        %1839 = vrot.lane.b32.xlu0 %v1652, 127
        %v1840 = vpop.permute.xlu0 %1839
        %1841 = vrot.lane.b32.xlu0 %v1653, 127
        %v1842 = vpop.permute.xlu0 %1841
        %1843 = vrot.lane.b32.xlu0 %v1654, 127
        %v1844 = vpop.permute.xlu0 %1843
        %1845 = vrot.lane.b32.xlu0 %v1655, 127
        %v1846 = vpop.permute.xlu0 %1845
        %1847 = vrot.lane.b32.xlu0 %v1656, 127
        %v1848 = vpop.permute.xlu0 %1847
        %v1913 = vmax.f32 %v697, %v1722
        %v1914 = vmax.f32 %v698, %v1724
        %v1915 = vmax.f32 %v699, %v1726
        %v1916 = vmax.f32 %v700, %v1728
        %v1917 = vmax.f32 %v701, %v1730
        %v1918 = vmax.f32 %v702, %v1732
        %v1919 = vmax.f32 %v703, %v1734
        %v1920 = vmax.f32 %v704, %v1736
        %v1921 = vmax.f32 %v833, %v1738
        %v1922 = vmax.f32 %v834, %v1740
        %v1923 = vmax.f32 %v835, %v1742
        %v1924 = vmax.f32 %v836, %v1744
        %v1925 = vmax.f32 %v837, %v1746
        %v1926 = vmax.f32 %v838, %v1748
        %v1927 = vmax.f32 %v839, %v1750
        %v1928 = vmax.f32 %v840, %v1752
        %v1929 = vmax.f32 %v969, %v1754
        %v1930 = vmax.f32 %v970, %v1756
        %v1931 = vmax.f32 %v971, %v1758
        %v1932 = vmax.f32 %v972, %v1760
        %v1933 = vmax.f32 %v973, %v1762
        %v1934 = vmax.f32 %v974, %v1764
        %v1935 = vmax.f32 %v975, %v1766
        %v1936 = vmax.f32 %v976, %v1768
        %v1937 = vmax.f32 %v1105, %v1770
        %v1938 = vmax.f32 %v1106, %v1772
        %v1939 = vmax.f32 %v1107, %v1774
        %v1940 = vmax.f32 %v1108, %v1776
        %v1941 = vmax.f32 %v1109, %v1778
        %v1942 = vmax.f32 %v1110, %v1780
        %v1943 = vmax.f32 %v1111, %v1782
        %v1944 = vmax.f32 %v1112, %v1784
        %v1945 = vmax.f32 %v1241, %v1786
        %v1946 = vmax.f32 %v1242, %v1788
        %v1947 = vmax.f32 %v1243, %v1790
        %v1948 = vmax.f32 %v1244, %v1792
        %v1949 = vmax.f32 %v1245, %v1794
        %v1950 = vmax.f32 %v1246, %v1796
        %v1951 = vmax.f32 %v1247, %v1798
        %v1952 = vmax.f32 %v1248, %v1800
        %v1953 = vmax.f32 %v1377, %v1802
        %v1954 = vmax.f32 %v1378, %v1804
        %v1955 = vmax.f32 %v1379, %v1806
        %v1956 = vmax.f32 %v1380, %v1808
        %v1957 = vmax.f32 %v1381, %v1810
        %v1958 = vmax.f32 %v1382, %v1812
        %v1959 = vmax.f32 %v1383, %v1814
        %v1960 = vmax.f32 %v1384, %v1816
        %v1961 = vmax.f32 %v1513, %v1818
        %v1962 = vmax.f32 %v1514, %v1820
        %v1963 = vmax.f32 %v1515, %v1822
        %v1964 = vmax.f32 %v1516, %v1824
        %v1965 = vmax.f32 %v1517, %v1826
        %v1966 = vmax.f32 %v1518, %v1828
        %v1967 = vmax.f32 %v1519, %v1830
        %v1968 = vmax.f32 %v1520, %v1832
        %v1969 = vmax.f32 %v1649, %v1834
        %v1970 = vmax.f32 %v1650, %v1836
        %v1971 = vmax.f32 %v1651, %v1838
        %v1972 = vmax.f32 %v1652, %v1840
        %v1973 = vmax.f32 %v1653, %v1842
        %v1974 = vmax.f32 %v1654, %v1844
        %v1975 = vmax.f32 %v1655, %v1846
        %v1976 = vmax.f32 %v1656, %v1848
        %v1977 = vmax.f32 %v1913, %v1914
        %v1978 = vmax.f32 %v1915, %v1916
        %v1979 = vmax.f32 %v1917, %v1918
        %v1980 = vmax.f32 %v1919, %v1920
        %v1981 = vmax.f32 %v1921, %v1922
        %v1982 = vmax.f32 %v1923, %v1924
        %v1983 = vmax.f32 %v1925, %v1926
        %v1984 = vmax.f32 %v1927, %v1928
        %v1985 = vmax.f32 %v1929, %v1930
        %v1986 = vmax.f32 %v1931, %v1932
        %v1987 = vmax.f32 %v1933, %v1934
        %v1988 = vmax.f32 %v1935, %v1936
        %v1989 = vmax.f32 %v1937, %v1938
        %v1990 = vmax.f32 %v1939, %v1940
        %v1991 = vmax.f32 %v1941, %v1942
        %v1992 = vmax.f32 %v1943, %v1944
        %v1993 = vmax.f32 %v1945, %v1946
        %v1994 = vmax.f32 %v1947, %v1948
        %v1995 = vmax.f32 %v1949, %v1950
        %v1996 = vmax.f32 %v1951, %v1952
        %v1997 = vmax.f32 %v1953, %v1954
        %v1998 = vmax.f32 %v1955, %v1956
        %v1999 = vmax.f32 %v1957, %v1958
        %v2000 = vmax.f32 %v1959, %v1960
        %v2001 = vmax.f32 %v1961, %v1962
        %v2002 = vmax.f32 %v1963, %v1964
        %v2003 = vmax.f32 %v1965, %v1966
        %v2004 = vmax.f32 %v1967, %v1968
        %v2005 = vmax.f32 %v1969, %v1970
        %v2006 = vmax.f32 %v1971, %v1972
        %v2007 = vmax.f32 %v1973, %v1974
        %v2008 = vmax.f32 %v1975, %v1976
        %2041 = vset.pattern.permute.xlu0 0
        %2042 = vperm.xlu0 %2041, %v1977
        %v2043 = vpop.permute.xlu0 %2042
        %2044 = vset.pattern.permute.xlu0 0
        %2045 = vperm.xlu0 %2044, %v1978
        %v2046 = vpop.permute.xlu0 %2045
        %2047 = vset.pattern.permute.xlu0 0
        %2048 = vperm.xlu0 %2047, %v1979
        %v2049 = vpop.permute.xlu0 %2048
        %2050 = vset.pattern.permute.xlu0 0
        %2051 = vperm.xlu0 %2050, %v1980
        %v2052 = vpop.permute.xlu0 %2051
        %2053 = vset.pattern.permute.xlu0 0
        %2054 = vperm.xlu0 %2053, %v1981
        %v2055 = vpop.permute.xlu0 %2054
        %2056 = vset.pattern.permute.xlu0 0
        %2057 = vperm.xlu0 %2056, %v1982
        %v2058 = vpop.permute.xlu0 %2057
        %2059 = vset.pattern.permute.xlu0 0
        %2060 = vperm.xlu0 %2059, %v1983
        %v2061 = vpop.permute.xlu0 %2060
        %2062 = vset.pattern.permute.xlu0 0
        %2063 = vperm.xlu0 %2062, %v1984
        %v2064 = vpop.permute.xlu0 %2063
        %2065 = vset.pattern.permute.xlu0 0
        %2066 = vperm.xlu0 %2065, %v1985
        %v2067 = vpop.permute.xlu0 %2066
        %2068 = vset.pattern.permute.xlu0 0
        %2069 = vperm.xlu0 %2068, %v1986
        %v2070 = vpop.permute.xlu0 %2069
        %2071 = vset.pattern.permute.xlu0 0
        %2072 = vperm.xlu0 %2071, %v1987
        %v2073 = vpop.permute.xlu0 %2072
        %2074 = vset.pattern.permute.xlu0 0
        %2075 = vperm.xlu0 %2074, %v1988
        %v2076 = vpop.permute.xlu0 %2075
        %2077 = vset.pattern.permute.xlu0 0
        %2078 = vperm.xlu0 %2077, %v1989
        %v2079 = vpop.permute.xlu0 %2078
        %2080 = vset.pattern.permute.xlu0 0
        %2081 = vperm.xlu0 %2080, %v1990
        %v2082 = vpop.permute.xlu0 %2081
        %2083 = vset.pattern.permute.xlu0 0
        %2084 = vperm.xlu0 %2083, %v1991
        %v2085 = vpop.permute.xlu0 %2084
        %2086 = vset.pattern.permute.xlu0 0
        %2087 = vperm.xlu0 %2086, %v1992
        %v2088 = vpop.permute.xlu0 %2087
        %2089 = vset.pattern.permute.xlu0 0
        %2090 = vperm.xlu0 %2089, %v1993
        %v2091 = vpop.permute.xlu0 %2090
        %2092 = vset.pattern.permute.xlu0 0
        %2093 = vperm.xlu0 %2092, %v1994
        %v2094 = vpop.permute.xlu0 %2093
        %2095 = vset.pattern.permute.xlu0 0
        %2096 = vperm.xlu0 %2095, %v1995
        %v2097 = vpop.permute.xlu0 %2096
        %2098 = vset.pattern.permute.xlu0 0
        %2099 = vperm.xlu0 %2098, %v1996
        %v2100 = vpop.permute.xlu0 %2099
        %2101 = vset.pattern.permute.xlu0 0
        %2102 = vperm.xlu0 %2101, %v1997
        %v2103 = vpop.permute.xlu0 %2102
        %2104 = vset.pattern.permute.xlu0 0
        %2105 = vperm.xlu0 %2104, %v1998
        %v2106 = vpop.permute.xlu0 %2105
        %2107 = vset.pattern.permute.xlu0 0
        %2108 = vperm.xlu0 %2107, %v1999
        %v2109 = vpop.permute.xlu0 %2108
        %2110 = vset.pattern.permute.xlu0 0
        %2111 = vperm.xlu0 %2110, %v2000
        %v2112 = vpop.permute.xlu0 %2111
        %2113 = vset.pattern.permute.xlu0 0
        %2114 = vperm.xlu0 %2113, %v2001
        %v2115 = vpop.permute.xlu0 %2114
        %2116 = vset.pattern.permute.xlu0 0
        %2117 = vperm.xlu0 %2116, %v2002
        %v2118 = vpop.permute.xlu0 %2117
        %2119 = vset.pattern.permute.xlu0 0
        %2120 = vperm.xlu0 %2119, %v2003
        %v2121 = vpop.permute.xlu0 %2120
        %2122 = vset.pattern.permute.xlu0 0
        %2123 = vperm.xlu0 %2122, %v2004
        %v2124 = vpop.permute.xlu0 %2123
        %2125 = vset.pattern.permute.xlu0 0
        %2126 = vperm.xlu0 %2125, %v2005
        %v2127 = vpop.permute.xlu0 %2126
        %2128 = vset.pattern.permute.xlu0 0
        %2129 = vperm.xlu0 %2128, %v2006
        %v2130 = vpop.permute.xlu0 %2129
        %2131 = vset.pattern.permute.xlu0 0
        %2132 = vperm.xlu0 %2131, %v2007
        %v2133 = vpop.permute.xlu0 %2132
        %2134 = vset.pattern.permute.xlu0 0
        %2135 = vperm.xlu0 %2134, %v2008
        %v2136 = vpop.permute.xlu0 %2135
        %v2137 = vlaneseq
        %v2138 = vand.u32 %v2137, 127
        %v2139 = vadd.s32 %v2138, 4294967295
        %v2140 = vlaneseq
        %v2141 = vshrl.u32 %v2140, 7
        %v2142 = vsub.s32 %v2139, %v2141
        %v2143 = vrot.slane %v2043, %v2142
        %v2144 = vlaneseq
        %v2145 = vshrl.u32 %v2144, 7
        %v2146 = vsub.s32 %v2139, %v2145
        %v2147 = vrot.slane %v2046, %v2146
        %v2148 = vlaneseq
        %v2149 = vshrl.u32 %v2148, 7
        %v2150 = vsub.s32 %v2139, %v2149
        %v2151 = vrot.slane %v2049, %v2150
        %v2152 = vlaneseq
        %v2153 = vshrl.u32 %v2152, 7
        %v2154 = vsub.s32 %v2139, %v2153
        %v2155 = vrot.slane %v2052, %v2154
        %v2156 = vlaneseq
        %v2157 = vshrl.u32 %v2156, 7
        %v2158 = vsub.s32 %v2139, %v2157
        %v2159 = vrot.slane %v2055, %v2158
        %v2160 = vlaneseq
        %v2161 = vshrl.u32 %v2160, 7
        %v2162 = vsub.s32 %v2139, %v2161
        %v2163 = vrot.slane %v2058, %v2162
        %v2164 = vlaneseq
        %v2165 = vshrl.u32 %v2164, 7
        %v2166 = vsub.s32 %v2139, %v2165
        %v2167 = vrot.slane %v2061, %v2166
        %v2168 = vlaneseq
        %v2169 = vshrl.u32 %v2168, 7
        %v2170 = vsub.s32 %v2139, %v2169
        %v2171 = vrot.slane %v2064, %v2170
        %v2172 = vlaneseq
        %v2173 = vshrl.u32 %v2172, 7
        %v2174 = vsub.s32 %v2139, %v2173
        %v2175 = vrot.slane %v2067, %v2174
        %v2176 = vlaneseq
        %v2177 = vshrl.u32 %v2176, 7
        %v2178 = vsub.s32 %v2139, %v2177
        %v2179 = vrot.slane %v2070, %v2178
        %v2180 = vlaneseq
        %v2181 = vshrl.u32 %v2180, 7
        %v2182 = vsub.s32 %v2139, %v2181
        %v2183 = vrot.slane %v2073, %v2182
        %v2184 = vlaneseq
        %v2185 = vshrl.u32 %v2184, 7
        %v2186 = vsub.s32 %v2139, %v2185
        %v2187 = vrot.slane %v2076, %v2186
        %v2188 = vlaneseq
        %v2189 = vshrl.u32 %v2188, 7
        %v2190 = vsub.s32 %v2139, %v2189
        %v2191 = vrot.slane %v2079, %v2190
        %v2192 = vlaneseq
        %v2193 = vshrl.u32 %v2192, 7
        %v2194 = vsub.s32 %v2139, %v2193
        %v2195 = vrot.slane %v2082, %v2194
        %v2196 = vlaneseq
        %v2197 = vshrl.u32 %v2196, 7
        %v2198 = vsub.s32 %v2139, %v2197
        %v2199 = vrot.slane %v2085, %v2198
        %v2200 = vlaneseq
        %v2201 = vshrl.u32 %v2200, 7
        %v2202 = vsub.s32 %v2139, %v2201
        %v2203 = vrot.slane %v2088, %v2202
        %v2204 = vlaneseq
        %v2205 = vshrl.u32 %v2204, 7
        %v2206 = vsub.s32 %v2139, %v2205
        %v2207 = vrot.slane %v2091, %v2206
        %v2208 = vlaneseq
        %v2209 = vshrl.u32 %v2208, 7
        %v2210 = vsub.s32 %v2139, %v2209
        %v2211 = vrot.slane %v2094, %v2210
        %v2212 = vlaneseq
        %v2213 = vshrl.u32 %v2212, 7
        %v2214 = vsub.s32 %v2139, %v2213
        %v2215 = vrot.slane %v2097, %v2214
        %v2216 = vlaneseq
        %v2217 = vshrl.u32 %v2216, 7
        %v2218 = vsub.s32 %v2139, %v2217
        %v2219 = vrot.slane %v2100, %v2218
        %v2220 = vlaneseq
        %v2221 = vshrl.u32 %v2220, 7
        %v2222 = vsub.s32 %v2139, %v2221
        %v2223 = vrot.slane %v2103, %v2222
        %v2224 = vlaneseq
        %v2225 = vshrl.u32 %v2224, 7
        %v2226 = vsub.s32 %v2139, %v2225
        %v2227 = vrot.slane %v2106, %v2226
        %v2228 = vlaneseq
        %v2229 = vshrl.u32 %v2228, 7
        %v2230 = vsub.s32 %v2139, %v2229
        %v2231 = vrot.slane %v2109, %v2230
        %v2232 = vlaneseq
        %v2233 = vshrl.u32 %v2232, 7
        %v2234 = vsub.s32 %v2139, %v2233
        %v2235 = vrot.slane %v2112, %v2234
        %v2236 = vlaneseq
        %v2237 = vshrl.u32 %v2236, 7
        %v2238 = vsub.s32 %v2139, %v2237
        %v2239 = vrot.slane %v2115, %v2238
        %v2240 = vlaneseq
        %v2241 = vshrl.u32 %v2240, 7
        %v2242 = vsub.s32 %v2139, %v2241
        %v2243 = vrot.slane %v2118, %v2242
        %v2244 = vlaneseq
        %v2245 = vshrl.u32 %v2244, 7
        %v2246 = vsub.s32 %v2139, %v2245
        %v2247 = vrot.slane %v2121, %v2246
        %v2248 = vlaneseq
        %v2249 = vshrl.u32 %v2248, 7
        %v2250 = vsub.s32 %v2139, %v2249
        %v2251 = vrot.slane %v2124, %v2250
        %v2252 = vlaneseq
        %v2253 = vshrl.u32 %v2252, 7
        %v2254 = vsub.s32 %v2139, %v2253
        %v2255 = vrot.slane %v2127, %v2254
        %v2256 = vlaneseq
        %v2257 = vshrl.u32 %v2256, 7
        %v2258 = vsub.s32 %v2139, %v2257
        %v2259 = vrot.slane %v2130, %v2258
        %v2260 = vlaneseq
        %v2261 = vshrl.u32 %v2260, 7
        %v2262 = vsub.s32 %v2139, %v2261
        %v2263 = vrot.slane %v2133, %v2262
        %v2264 = vlaneseq
        %v2265 = vshrl.u32 %v2264, 7
        %v2266 = vsub.s32 %v2139, %v2265
        %v2267 = vrot.slane %v2136, %v2266
        %vm2268 = vcmask 1041409
        %v2269 = vsel %vm2268, %v2147, %v2143
        %vm2270 = vcmask 1042434
        %v2271 = vsel %vm2270, %v2151, %v2269
        %vm2272 = vcmask 1043459
        %v2273 = vsel %vm2272, %v2155, %v2271
        %vm2274 = vcmask 1044484
        %v2275 = vsel %vm2274, %v2159, %v2273
        %vm2276 = vcmask 1045509
        %v2277 = vsel %vm2276, %v2163, %v2275
        %vm2278 = vcmask 1046534
        %v2279 = vsel %vm2278, %v2167, %v2277
        %vm2280 = vcmask 1047559
        %v2281 = vsel %vm2280, %v2171, %v2279
        %v2282 = vsel %vm2268, %v2179, %v2175
        %v2283 = vsel %vm2270, %v2183, %v2282
        %v2284 = vsel %vm2272, %v2187, %v2283
        %v2285 = vsel %vm2274, %v2191, %v2284
        %v2286 = vsel %vm2276, %v2195, %v2285
        %v2287 = vsel %vm2278, %v2199, %v2286
        %v2288 = vsel %vm2280, %v2203, %v2287
        %v2289 = vsel %vm2268, %v2211, %v2207
        %v2290 = vsel %vm2270, %v2215, %v2289
        %v2291 = vsel %vm2272, %v2219, %v2290
        %v2292 = vsel %vm2274, %v2223, %v2291
        %v2293 = vsel %vm2276, %v2227, %v2292
        %v2294 = vsel %vm2278, %v2231, %v2293
        %v2295 = vsel %vm2280, %v2235, %v2294
        %v2296 = vsel %vm2268, %v2243, %v2239
        %v2297 = vsel %vm2270, %v2247, %v2296
        %v2298 = vsel %vm2272, %v2251, %v2297
        %v2299 = vsel %vm2274, %v2255, %v2298
        %v2300 = vsel %vm2276, %v2259, %v2299
        %v2301 = vsel %vm2278, %v2263, %v2300
        %v2302 = vsel %vm2280, %v2267, %v2301
        %vm2307 = vcmask 7168
        %v2308 = vsel %vm2307, 0.0, %v2281
        %v2309 = vsel %vm2307, 0.0, %v2288
        %v2310 = vsel %vm2307, 0.0, %v2295
        %v2311 = vsel %vm2307, 0.0, %v2302
        %vm2312 = vcmask 72704
        %v2313 = vsel %vm2312, %v2308, 0.0
        %v2314 = vsel %vm2312, %v2309, 0.0
        %v2315 = vsel %vm2312, %v2310, 0.0
        %v2316 = vsel %vm2312, %v2311, 0.0
        %v2317 = vcombine.low %v2313, %v2315
        %v2318 = vcombine.high %v2313, %v2315
        %v2320 = vunpack.c.l.s4 1983009808
        %v2321 = vunpack.c.0.s8 %v2320
        %v2322 = vlaneseq
        %v2323 = vshrl.u32 %v2322, 7
        %v2324 = vsub.s32 %v2321, %v2323
        %v2325 = vrot.slane %v2317, %v2324
        %v2327 = vunpack.c.l.s4 1983009808
        %v2328 = vunpack.c.0.s8 %v2327
        %v2329 = vlaneseq
        %v2330 = vshrl.u32 %v2329, 7
        %v2331 = vsub.s32 %v2328, %v2330
        %v2332 = vrot.slane %v2318, %v2331
        %v2333 = vcombine.low %v2314, %v2316
        %v2334 = vcombine.high %v2314, %v2316
        %v2336 = vunpack.c.l.s4 1983009808
        %v2337 = vunpack.c.0.s8 %v2336
        %v2338 = vlaneseq
        %v2339 = vshrl.u32 %v2338, 7
        %v2340 = vsub.s32 %v2337, %v2339
        %v2341 = vrot.slane %v2333, %v2340
        %v2343 = vunpack.c.l.s4 1983009808
        %v2344 = vunpack.c.0.s8 %v2343
        %v2345 = vlaneseq
        %v2346 = vshrl.u32 %v2345, 7
        %v2347 = vsub.s32 %v2344, %v2346
        %v2348 = vrot.slane %v2334, %v2347
        %v2349 = vcombine.low %v2325, %v2341
        %v2350 = vcombine.high %v2325, %v2341
        %v2352 = vunpack.c.l.s4 1934713408
        %v2353 = vunpack.c.0.s8 %v2352
        %v2354 = vlaneseq
        %v2355 = vshrl.u32 %v2354, 7
        %v2356 = vsub.s32 %v2353, %v2355
        %v2357 = vrot.slane %v2349, %v2356
        %v2359 = vunpack.c.l.s4 1934713408
        %v2360 = vunpack.c.0.s8 %v2359
        %v2361 = vlaneseq
        %v2362 = vshrl.u32 %v2361, 7
        %v2363 = vsub.s32 %v2360, %v2362
        %v2364 = vrot.slane %v2350, %v2363
        %v2365 = vcombine.low %v2332, %v2348
        %v2366 = vcombine.high %v2332, %v2348
        %v2368 = vunpack.c.l.s4 1934713408
        %v2369 = vunpack.c.0.s8 %v2368
        %v2370 = vlaneseq
        %v2371 = vshrl.u32 %v2370, 7
        %v2372 = vsub.s32 %v2369, %v2371
        %v2373 = vrot.slane %v2365, %v2372
        %v2375 = vunpack.c.l.s4 1934713408
        %v2376 = vunpack.c.0.s8 %v2375
        %v2377 = vlaneseq
        %v2378 = vshrl.u32 %v2377, 7
        %v2379 = vsub.s32 %v2376, %v2378
        %v2380 = vrot.slane %v2366, %v2379
        %v2381 = vcombine.high %v2357, 0.0
        %v2382 = vcombine.high %v2364, 0.0
        %v2383 = vcombine.high %v2373, 0.0
        %v2384 = vcombine.high %v2380, 0.0
        %2386 = vrot.lane.b32.xlu0 %v2381, 10
        %v2387 = vpop.permute.xlu0 %2386
        %2390 = vrot.lane.b32.xlu0 %v2364, 20
        %v2391 = vpop.permute.xlu0 %2390
        %2394 = vrot.lane.b32.xlu0 %v2382, 30
        %v2395 = vpop.permute.xlu0 %2394
        %2398 = vrot.lane.b32.xlu0 %v2373, 40
        %v2399 = vpop.permute.xlu0 %2398
        %2402 = vrot.lane.b32.xlu0 %v2383, 50
        %v2403 = vpop.permute.xlu0 %2402
        %2406 = vrot.lane.b32.xlu0 %v2380, 60
        %v2407 = vpop.permute.xlu0 %2406
        %2410 = vrot.lane.b32.xlu0 %v2384, 70
        %v2411 = vpop.permute.xlu0 %2410
        %vm2413 = vcmask 80896
        %v2414 = vsel %vm2413, %v2357, %v2387
        %vm2415 = vcmask 162816
        %v2416 = vsel %vm2415, %v2414, %v2391
        %vm2417 = vcmask 244736
        %v2418 = vsel %vm2417, %v2416, %v2395
        %vm2419 = vcmask 326656
        %v2420 = vsel %vm2419, %v2418, %v2399
        %vm2421 = vcmask 408576
        %v2422 = vsel %vm2421, %v2420, %v2403
        %vm2423 = vcmask 490496
        %v2424 = vsel %vm2423, %v2422, %v2407
        %vm2425 = vcmask 572416
        %v2426 = vsel %vm2425, %v2424, %v2411
        %2428 = vrot.lane.b32.xlu0 %v2426, 10
        %v2429 = vpop.permute.xlu0 %2428
        %v2431 = vsel %vm2413, 0.0, %v2429
        %vm2432 = vcmask 736256
        %v2433 = vsel %vm2432, %v2431, 0.0
        %v2434 = vld [vmem:[%s1] sm:$0xff]
        %s2435 = scalar_lea.vmem %s1, 8
        %v2436 = vld [vmem:[%s2435] sm:$0xff]
        %2438 = vrot.lane.b32.xlu0 %v2433, 127
        %v2439 = vpop.permute.xlu0 %2438
        %vm2440 = vcmask 31744
        %v2442 = vsel %vm2440, %v2436, 0
        %vm2444 = vcmask 1043456
        %v2445 = vsel %vm2444, %v2439, 0
        %2447 = vmatprep.subr.mxu0 0.0
        %2448 = vmatpush1.msra.mxu0 %v2445
        %2449 = vmatprep.subr.mxu0 0.0
        %2450 = vmatpush1.msra.mxu0 0.0
        %2451 = vmatprep.subr.mxu0 0.0
        %2452 = vmatpush1.msra.mxu0 0.0
        %2453 = vmatprep.subr.mxu0 0.0
        %2454 = vmatpush1.msra.mxu0 0.0
        %2455 = vmatprep.subr.mxu0 0.0
        %2456 = vmatpush1.msra.mxu0 0.0
        %2457 = vmatprep.subr.mxu0 0.0
        %2458 = vmatpush1.msra.mxu0 0.0
        %2459 = vmatprep.subr.mxu0 0.0
        %2460 = vmatpush1.msra.mxu0 0.0
        %2461 = vmatprep.subr.mxu0 0.0
        %2462 = vmatpush1.msra.mxu0 0.0
        %2463 = vmatprep.subr.mxu0 0.0
        %2464 = vmatpush1.msra.mxu0 0.0
        %2465 = vmatprep.subr.mxu0 0.0
        %2466 = vmatpush1.msra.mxu0 0.0
        %2467 = vmatprep.subr.mxu0 0.0
        %2468 = vmatpush1.msra.mxu0 0.0
        %2469 = vmatprep.subr.mxu0 0.0
        %2470 = vmatpush1.msra.mxu0 0.0
        %2471 = vmatprep.subr.mxu0 0.0
        %2472 = vmatpush1.msra.mxu0 0.0
        %2473 = vmatprep.subr.mxu0 0.0
        %2474 = vmatpush1.msra.mxu0 0.0
        %2475 = vmatprep.subr.mxu0 0.0
        %2476 = vmatpush1.msra.mxu0 0.0
        %2477 = vmatprep.subr.mxu0 0.0
        %2478 = vmatpush1.msra.mxu0 0.0
        %2479 = vmatprep.subr.mxu0 0.0
        %2480 = vmatpush1.msra.mxu0 0.0
        %2481 = vmatprep.subr.mxu0 0.0
        %2482 = vmatpush1.msra.mxu0 0.0
        %2483 = vmatprep.subr.mxu0 0.0
        %2484 = vmatpush1.msra.mxu0 0.0
        %2485 = vmatprep.subr.mxu0 0.0
        %2486 = vmatpush1.msra.mxu0 0.0
        %2487 = vmatprep.subr.mxu0 0.0
        %2488 = vmatpush1.msra.mxu0 0.0
        %2489 = vmatprep.subr.mxu0 0.0
        %2490 = vmatpush1.msra.mxu0 0.0
        %2491 = vmatprep.subr.mxu0 0.0
        %2492 = vmatpush1.msra.mxu0 0.0
        %2493 = vmatprep.subr.mxu0 0.0
        %2494 = vmatpush1.msra.mxu0 0.0
        %2495 = vmatprep.subr.mxu0 0.0
        %2496 = vmatpush1.msra.mxu0 0.0
        %2497 = vmatprep.subr.mxu0 0.0
        %2498 = vmatpush1.msra.mxu0 0.0
        %2499 = vmatprep.subr.mxu0 0.0
        %2500 = vmatpush1.msra.mxu0 0.0
        %2501 = vmatprep.subr.mxu0 0.0
        %2502 = vmatpush1.msra.mxu0 0.0
        %2503 = vmatprep.subr.mxu0 0.0
        %2504 = vmatpush1.msra.mxu0 0.0
        %2505 = vmatprep.subr.mxu0 0.0
        %2506 = vmatpush1.msra.mxu0 0.0
        %2507 = vmatprep.subr.mxu0 0.0
        %2508 = vmatpush1.msra.mxu0 0.0
        %2509 = vmatprep.subr.mxu0 0.0
        %2510 = vmatpush1.msra.mxu0 0.0
        %2511 = vmatprep.mubr.f32.mxu0 0.0
        %2512 = vmatmul.mubr.f32.gmra.mrb[0].mxu0 %v2442
        %v2513 = vpop.f32.mrb[0].mxu0
        %v2514 = vadd.f32 0.0, %v2513
        %v2515 = vpop.f32.mrb[0].mxu0
        %2516 = vdwg.mxu0
        %v2518 = vsel %vm2440, %v2434, 0
        %v2520 = vsel %vm2444, %v2433, 0
        %2522 = vmatprep.subr.mxu0 0.0
        %2523 = vmatpush1.msra.mxu0 %v2520
        %2524 = vmatprep.subr.mxu0 0.0
        %2525 = vmatpush1.msra.mxu0 0.0
        %2526 = vmatprep.subr.mxu0 0.0
        %2527 = vmatpush1.msra.mxu0 0.0
        %2528 = vmatprep.subr.mxu0 0.0
        %2529 = vmatpush1.msra.mxu0 0.0
        %2530 = vmatprep.subr.mxu0 0.0
        %2531 = vmatpush1.msra.mxu0 0.0
        %2532 = vmatprep.subr.mxu0 0.0
        %2533 = vmatpush1.msra.mxu0 0.0
        %2534 = vmatprep.subr.mxu0 0.0
        %2535 = vmatpush1.msra.mxu0 0.0
        %2536 = vmatprep.subr.mxu0 0.0
        %2537 = vmatpush1.msra.mxu0 0.0
        %2538 = vmatprep.subr.mxu0 0.0
        %2539 = vmatpush1.msra.mxu0 0.0
        %2540 = vmatprep.subr.mxu0 0.0
        %2541 = vmatpush1.msra.mxu0 0.0
        %2542 = vmatprep.subr.mxu0 0.0
        %2543 = vmatpush1.msra.mxu0 0.0
        %2544 = vmatprep.subr.mxu0 0.0
        %2545 = vmatpush1.msra.mxu0 0.0
        %2546 = vmatprep.subr.mxu0 0.0
        %2547 = vmatpush1.msra.mxu0 0.0
        %2548 = vmatprep.subr.mxu0 0.0
        %2549 = vmatpush1.msra.mxu0 0.0
        %2550 = vmatprep.subr.mxu0 0.0
        %2551 = vmatpush1.msra.mxu0 0.0
        %2552 = vmatprep.subr.mxu0 0.0
        %2553 = vmatpush1.msra.mxu0 0.0
        %2554 = vmatprep.subr.mxu0 0.0
        %2555 = vmatpush1.msra.mxu0 0.0
        %2556 = vmatprep.subr.mxu0 0.0
        %2557 = vmatpush1.msra.mxu0 0.0
        %2558 = vmatprep.subr.mxu0 0.0
        %2559 = vmatpush1.msra.mxu0 0.0
        %2560 = vmatprep.subr.mxu0 0.0
        %2561 = vmatpush1.msra.mxu0 0.0
        %2562 = vmatprep.subr.mxu0 0.0
        %2563 = vmatpush1.msra.mxu0 0.0
        %2564 = vmatprep.subr.mxu0 0.0
        %2565 = vmatpush1.msra.mxu0 0.0
        %2566 = vmatprep.subr.mxu0 0.0
        %2567 = vmatpush1.msra.mxu0 0.0
        %2568 = vmatprep.subr.mxu0 0.0
        %2569 = vmatpush1.msra.mxu0 0.0
        %2570 = vmatprep.subr.mxu0 0.0
        %2571 = vmatpush1.msra.mxu0 0.0
        %2572 = vmatprep.subr.mxu0 0.0
        %2573 = vmatpush1.msra.mxu0 0.0
        %2574 = vmatprep.subr.mxu0 0.0
        %2575 = vmatpush1.msra.mxu0 0.0
        %2576 = vmatprep.subr.mxu0 0.0
        %2577 = vmatpush1.msra.mxu0 0.0
        %2578 = vmatprep.subr.mxu0 0.0
        %2579 = vmatpush1.msra.mxu0 0.0
        %2580 = vmatprep.subr.mxu0 0.0
        %2581 = vmatpush1.msra.mxu0 0.0
        %2582 = vmatprep.subr.mxu0 0.0
        %2583 = vmatpush1.msra.mxu0 0.0
        %2584 = vmatprep.subr.mxu0 0.0
        %2585 = vmatpush1.msra.mxu0 0.0
        %2586 = vmatprep.mubr.f32.mxu0 0.0
        %2587 = vmatmul.mubr.f32.gmra.mrb[0].mxu0 %v2518
        %v2588 = vpop.f32.mrb[0].mxu0
        %v2589 = vadd.f32 %v2514, %v2588
        %v2590 = vpop.f32.mrb[0].mxu0
        %2591 = vdwg.mxu0
        %s2592 = scalar_lea.vmem %s1, 16
        %v2593 = vld [vmem:[%s2592] sm:$0xff]
        %2594 = vrot.lane.b32.xlu0 %v2433, 126
        %v2595 = vpop.permute.xlu0 %2594
        %v2597 = vsel %vm2440, %v2593, 0
        %v2599 = vsel %vm2444, %v2595, 0
        %2601 = vmatprep.subr.mxu0 0.0
        %2602 = vmatpush1.msra.mxu0 %v2599
        %2603 = vmatprep.subr.mxu0 0.0
        %2604 = vmatpush1.msra.mxu0 0.0
        %2605 = vmatprep.subr.mxu0 0.0
        %2606 = vmatpush1.msra.mxu0 0.0
        %2607 = vmatprep.subr.mxu0 0.0
        %2608 = vmatpush1.msra.mxu0 0.0
        %2609 = vmatprep.subr.mxu0 0.0
        %2610 = vmatpush1.msra.mxu0 0.0
        %2611 = vmatprep.subr.mxu0 0.0
        %2612 = vmatpush1.msra.mxu0 0.0
        %2613 = vmatprep.subr.mxu0 0.0
        %2614 = vmatpush1.msra.mxu0 0.0
        %2615 = vmatprep.subr.mxu0 0.0
        %2616 = vmatpush1.msra.mxu0 0.0
        %2617 = vmatprep.subr.mxu0 0.0
        %2618 = vmatpush1.msra.mxu0 0.0
        %2619 = vmatprep.subr.mxu0 0.0
        %2620 = vmatpush1.msra.mxu0 0.0
        %2621 = vmatprep.subr.mxu0 0.0
        %2622 = vmatpush1.msra.mxu0 0.0
        %2623 = vmatprep.subr.mxu0 0.0
        %2624 = vmatpush1.msra.mxu0 0.0
        %2625 = vmatprep.subr.mxu0 0.0
        %2626 = vmatpush1.msra.mxu0 0.0
        %2627 = vmatprep.subr.mxu0 0.0
        %2628 = vmatpush1.msra.mxu0 0.0
        %2629 = vmatprep.subr.mxu0 0.0
        %2630 = vmatpush1.msra.mxu0 0.0
        %2631 = vmatprep.subr.mxu0 0.0
        %2632 = vmatpush1.msra.mxu0 0.0
        %2633 = vmatprep.subr.mxu0 0.0
        %2634 = vmatpush1.msra.mxu0 0.0
        %2635 = vmatprep.subr.mxu0 0.0
        %2636 = vmatpush1.msra.mxu0 0.0
        %2637 = vmatprep.subr.mxu0 0.0
        %2638 = vmatpush1.msra.mxu0 0.0
        %2639 = vmatprep.subr.mxu0 0.0
        %2640 = vmatpush1.msra.mxu0 0.0
        %2641 = vmatprep.subr.mxu0 0.0
        %2642 = vmatpush1.msra.mxu0 0.0
        %2643 = vmatprep.subr.mxu0 0.0
        %2644 = vmatpush1.msra.mxu0 0.0
        %2645 = vmatprep.subr.mxu0 0.0
        %2646 = vmatpush1.msra.mxu0 0.0
        %2647 = vmatprep.subr.mxu0 0.0
        %2648 = vmatpush1.msra.mxu0 0.0
        %2649 = vmatprep.subr.mxu0 0.0
        %2650 = vmatpush1.msra.mxu0 0.0
        %2651 = vmatprep.subr.mxu0 0.0
        %2652 = vmatpush1.msra.mxu0 0.0
        %2653 = vmatprep.subr.mxu0 0.0
        %2654 = vmatpush1.msra.mxu0 0.0
        %2655 = vmatprep.subr.mxu0 0.0
        %2656 = vmatpush1.msra.mxu0 0.0
        %2657 = vmatprep.subr.mxu0 0.0
        %2658 = vmatpush1.msra.mxu0 0.0
        %2659 = vmatprep.subr.mxu0 0.0
        %2660 = vmatpush1.msra.mxu0 0.0
        %2661 = vmatprep.subr.mxu0 0.0
        %2662 = vmatpush1.msra.mxu0 0.0
        %2663 = vmatprep.subr.mxu0 0.0
        %2664 = vmatpush1.msra.mxu0 0.0
        %2665 = vmatprep.mubr.f32.mxu0 0.0
        %2666 = vmatmul.mubr.f32.gmra.mrb[0].mxu0 %v2597
        %v2667 = vpop.f32.mrb[0].mxu0
        %v2668 = vadd.f32 0.0, %v2667
        %v2669 = vpop.f32.mrb[0].mxu0
        %2670 = vdwg.mxu0
        %v2671 = vadd.f32 %v2589, %v2668
        %s2672 = scalar_lea.vmem %s1, 24
        %v2673 = vld [vmem:[%s2672] sm:$0xff]
        %2674 = vrot.lane.b32.xlu0 %v2433, 118
        %v2675 = vpop.permute.xlu0 %2674
        %v2677 = vsel %vm2440, %v2673, 0
        %v2679 = vsel %vm2444, %v2675, 0
        %2681 = vmatprep.subr.mxu0 0.0
        %2682 = vmatpush1.msra.mxu0 %v2679
        %2683 = vmatprep.subr.mxu0 0.0
        %2684 = vmatpush1.msra.mxu0 0.0
        %2685 = vmatprep.subr.mxu0 0.0
        %2686 = vmatpush1.msra.mxu0 0.0
        %2687 = vmatprep.subr.mxu0 0.0
        %2688 = vmatpush1.msra.mxu0 0.0
        %2689 = vmatprep.subr.mxu0 0.0
        %2690 = vmatpush1.msra.mxu0 0.0
        %2691 = vmatprep.subr.mxu0 0.0
        %2692 = vmatpush1.msra.mxu0 0.0
        %2693 = vmatprep.subr.mxu0 0.0
        %2694 = vmatpush1.msra.mxu0 0.0
        %2695 = vmatprep.subr.mxu0 0.0
        %2696 = vmatpush1.msra.mxu0 0.0
        %2697 = vmatprep.subr.mxu0 0.0
        %2698 = vmatpush1.msra.mxu0 0.0
        %2699 = vmatprep.subr.mxu0 0.0
        %2700 = vmatpush1.msra.mxu0 0.0
        %2701 = vmatprep.subr.mxu0 0.0
        %2702 = vmatpush1.msra.mxu0 0.0
        %2703 = vmatprep.subr.mxu0 0.0
        %2704 = vmatpush1.msra.mxu0 0.0
        %2705 = vmatprep.subr.mxu0 0.0
        %2706 = vmatpush1.msra.mxu0 0.0
        %2707 = vmatprep.subr.mxu0 0.0
        %2708 = vmatpush1.msra.mxu0 0.0
        %2709 = vmatprep.subr.mxu0 0.0
        %2710 = vmatpush1.msra.mxu0 0.0
        %2711 = vmatprep.subr.mxu0 0.0
        %2712 = vmatpush1.msra.mxu0 0.0
        %2713 = vmatprep.subr.mxu0 0.0
        %2714 = vmatpush1.msra.mxu0 0.0
        %2715 = vmatprep.subr.mxu0 0.0
        %2716 = vmatpush1.msra.mxu0 0.0
        %2717 = vmatprep.subr.mxu0 0.0
        %2718 = vmatpush1.msra.mxu0 0.0
        %2719 = vmatprep.subr.mxu0 0.0
        %2720 = vmatpush1.msra.mxu0 0.0
        %2721 = vmatprep.subr.mxu0 0.0
        %2722 = vmatpush1.msra.mxu0 0.0
        %2723 = vmatprep.subr.mxu0 0.0
        %2724 = vmatpush1.msra.mxu0 0.0
        %2725 = vmatprep.subr.mxu0 0.0
        %2726 = vmatpush1.msra.mxu0 0.0
        %2727 = vmatprep.subr.mxu0 0.0
        %2728 = vmatpush1.msra.mxu0 0.0
        %2729 = vmatprep.subr.mxu0 0.0
        %2730 = vmatpush1.msra.mxu0 0.0
        %2731 = vmatprep.subr.mxu0 0.0
        %2732 = vmatpush1.msra.mxu0 0.0
        %2733 = vmatprep.subr.mxu0 0.0
        %2734 = vmatpush1.msra.mxu0 0.0
        %2735 = vmatprep.subr.mxu0 0.0
        %2736 = vmatpush1.msra.mxu0 0.0
        %2737 = vmatprep.subr.mxu0 0.0
        %2738 = vmatpush1.msra.mxu0 0.0
        %2739 = vmatprep.subr.mxu0 0.0
        %2740 = vmatpush1.msra.mxu0 0.0
        %2741 = vmatprep.subr.mxu0 0.0
        %2742 = vmatpush1.msra.mxu0 0.0
        %2743 = vmatprep.subr.mxu0 0.0
        %2744 = vmatpush1.msra.mxu0 0.0
        %2745 = vmatprep.mubr.f32.mxu0 0.0
        %2746 = vmatmul.mubr.f32.gmra.mrb[0].mxu0 %v2677
        %v2747 = vpop.f32.mrb[0].mxu0
        %v2748 = vadd.f32 0.0, %v2747
        %v2749 = vpop.f32.mrb[0].mxu0
        %2750 = vdwg.mxu0
        %v2751 = vadd.f32 %v2671, %v2748
        %s2752 = scalar_lea.vmem %s1, 32
        %v2753 = vld [vmem:[%s2752] sm:$0xff]
        %2754 = vrot.lane.b32.xlu0 %v2433, 117
        %v2755 = vpop.permute.xlu0 %2754
        %v2757 = vsel %vm2440, %v2753, 0
        %v2759 = vsel %vm2444, %v2755, 0
        %2761 = vmatprep.subr.mxu0 0.0
        %2762 = vmatpush1.msra.mxu0 %v2759
        %2763 = vmatprep.subr.mxu0 0.0
        %2764 = vmatpush1.msra.mxu0 0.0
        %2765 = vmatprep.subr.mxu0 0.0
        %2766 = vmatpush1.msra.mxu0 0.0
        %2767 = vmatprep.subr.mxu0 0.0
        %2768 = vmatpush1.msra.mxu0 0.0
        %2769 = vmatprep.subr.mxu0 0.0
        %2770 = vmatpush1.msra.mxu0 0.0
        %2771 = vmatprep.subr.mxu0 0.0
        %2772 = vmatpush1.msra.mxu0 0.0
        %2773 = vmatprep.subr.mxu0 0.0
        %2774 = vmatpush1.msra.mxu0 0.0
        %2775 = vmatprep.subr.mxu0 0.0
        %2776 = vmatpush1.msra.mxu0 0.0
        %2777 = vmatprep.subr.mxu0 0.0
        %2778 = vmatpush1.msra.mxu0 0.0
        %2779 = vmatprep.subr.mxu0 0.0
        %2780 = vmatpush1.msra.mxu0 0.0
        %2781 = vmatprep.subr.mxu0 0.0
        %2782 = vmatpush1.msra.mxu0 0.0
        %2783 = vmatprep.subr.mxu0 0.0
        %2784 = vmatpush1.msra.mxu0 0.0
        %2785 = vmatprep.subr.mxu0 0.0
        %2786 = vmatpush1.msra.mxu0 0.0
        %2787 = vmatprep.subr.mxu0 0.0
        %2788 = vmatpush1.msra.mxu0 0.0
        %2789 = vmatprep.subr.mxu0 0.0
        %2790 = vmatpush1.msra.mxu0 0.0
        %2791 = vmatprep.subr.mxu0 0.0
        %2792 = vmatpush1.msra.mxu0 0.0
        %2793 = vmatprep.subr.mxu0 0.0
        %2794 = vmatpush1.msra.mxu0 0.0
        %2795 = vmatprep.subr.mxu0 0.0
        %2796 = vmatpush1.msra.mxu0 0.0
        %2797 = vmatprep.subr.mxu0 0.0
        %2798 = vmatpush1.msra.mxu0 0.0
        %2799 = vmatprep.subr.mxu0 0.0
        %2800 = vmatpush1.msra.mxu0 0.0
        %2801 = vmatprep.subr.mxu0 0.0
        %2802 = vmatpush1.msra.mxu0 0.0
        %2803 = vmatprep.subr.mxu0 0.0
        %2804 = vmatpush1.msra.mxu0 0.0
        %2805 = vmatprep.subr.mxu0 0.0
        %2806 = vmatpush1.msra.mxu0 0.0
        %2807 = vmatprep.subr.mxu0 0.0
        %2808 = vmatpush1.msra.mxu0 0.0
        %2809 = vmatprep.subr.mxu0 0.0
        %2810 = vmatpush1.msra.mxu0 0.0
        %2811 = vmatprep.subr.mxu0 0.0
        %2812 = vmatpush1.msra.mxu0 0.0
        %2813 = vmatprep.subr.mxu0 0.0
        %2814 = vmatpush1.msra.mxu0 0.0
        %2815 = vmatprep.subr.mxu0 0.0
        %2816 = vmatpush1.msra.mxu0 0.0
        %2817 = vmatprep.subr.mxu0 0.0
        %2818 = vmatpush1.msra.mxu0 0.0
        %2819 = vmatprep.subr.mxu0 0.0
        %2820 = vmatpush1.msra.mxu0 0.0
        %2821 = vmatprep.subr.mxu0 0.0
        %2822 = vmatpush1.msra.mxu0 0.0
        %2823 = vmatprep.subr.mxu0 0.0
        %2824 = vmatpush1.msra.mxu0 0.0
        %2825 = vmatprep.mubr.f32.mxu0 0.0
        %2826 = vmatmul.mubr.f32.gmra.mrb[0].mxu0 %v2757
        %v2827 = vpop.f32.mrb[0].mxu0
        %v2828 = vadd.f32 0.0, %v2827
        %v2829 = vpop.f32.mrb[0].mxu0
        %2830 = vdwg.mxu0
        %v2831 = vadd.f32 %v2751, %v2828
        %s2832 = scalar_lea.vmem %s1, 40
        %v2833 = vld [vmem:[%s2832] sm:$0xff]
        %2834 = vrot.lane.b32.xlu0 %v2433, 116
        %v2835 = vpop.permute.xlu0 %2834
        %v2837 = vsel %vm2440, %v2833, 0
        %v2839 = vsel %vm2444, %v2835, 0
        %2841 = vmatprep.subr.mxu0 0.0
        %2842 = vmatpush1.msra.mxu0 %v2839
        %2843 = vmatprep.subr.mxu0 0.0
        %2844 = vmatpush1.msra.mxu0 0.0
        %2845 = vmatprep.subr.mxu0 0.0
        %2846 = vmatpush1.msra.mxu0 0.0
        %2847 = vmatprep.subr.mxu0 0.0
        %2848 = vmatpush1.msra.mxu0 0.0
        %2849 = vmatprep.subr.mxu0 0.0
        %2850 = vmatpush1.msra.mxu0 0.0
        %2851 = vmatprep.subr.mxu0 0.0
        %2852 = vmatpush1.msra.mxu0 0.0
        %2853 = vmatprep.subr.mxu0 0.0
        %2854 = vmatpush1.msra.mxu0 0.0
        %2855 = vmatprep.subr.mxu0 0.0
        %2856 = vmatpush1.msra.mxu0 0.0
        %2857 = vmatprep.subr.mxu0 0.0
        %2858 = vmatpush1.msra.mxu0 0.0
        %2859 = vmatprep.subr.mxu0 0.0
        %2860 = vmatpush1.msra.mxu0 0.0
        %2861 = vmatprep.subr.mxu0 0.0
        %2862 = vmatpush1.msra.mxu0 0.0
        %2863 = vmatprep.subr.mxu0 0.0
        %2864 = vmatpush1.msra.mxu0 0.0
        %2865 = vmatprep.subr.mxu0 0.0
        %2866 = vmatpush1.msra.mxu0 0.0
        %2867 = vmatprep.subr.mxu0 0.0
        %2868 = vmatpush1.msra.mxu0 0.0
        %2869 = vmatprep.subr.mxu0 0.0
        %2870 = vmatpush1.msra.mxu0 0.0
        %2871 = vmatprep.subr.mxu0 0.0
        %2872 = vmatpush1.msra.mxu0 0.0
        %2873 = vmatprep.subr.mxu0 0.0
        %2874 = vmatpush1.msra.mxu0 0.0
        %2875 = vmatprep.subr.mxu0 0.0
        %2876 = vmatpush1.msra.mxu0 0.0
        %2877 = vmatprep.subr.mxu0 0.0
        %2878 = vmatpush1.msra.mxu0 0.0
        %2879 = vmatprep.subr.mxu0 0.0
        %2880 = vmatpush1.msra.mxu0 0.0
        %2881 = vmatprep.subr.mxu0 0.0
        %2882 = vmatpush1.msra.mxu0 0.0
        %2883 = vmatprep.subr.mxu0 0.0
        %2884 = vmatpush1.msra.mxu0 0.0
        %2885 = vmatprep.subr.mxu0 0.0
        %2886 = vmatpush1.msra.mxu0 0.0
        %2887 = vmatprep.subr.mxu0 0.0
        %2888 = vmatpush1.msra.mxu0 0.0
        %2889 = vmatprep.subr.mxu0 0.0
        %2890 = vmatpush1.msra.mxu0 0.0
        %2891 = vmatprep.subr.mxu0 0.0
        %2892 = vmatpush1.msra.mxu0 0.0
        %2893 = vmatprep.subr.mxu0 0.0
        %2894 = vmatpush1.msra.mxu0 0.0
        %2895 = vmatprep.subr.mxu0 0.0
        %2896 = vmatpush1.msra.mxu0 0.0
        %2897 = vmatprep.subr.mxu0 0.0
        %2898 = vmatpush1.msra.mxu0 0.0
        %2899 = vmatprep.subr.mxu0 0.0
        %2900 = vmatpush1.msra.mxu0 0.0
        %2901 = vmatprep.subr.mxu0 0.0
        %2902 = vmatpush1.msra.mxu0 0.0
        %2903 = vmatprep.subr.mxu0 0.0
        %2904 = vmatpush1.msra.mxu0 0.0
        %2905 = vmatprep.mubr.f32.mxu0 0.0
        %2906 = vmatmul.mubr.f32.gmra.mrb[0].mxu0 %v2837
        %v2907 = vpop.f32.mrb[0].mxu0
        %v2908 = vadd.f32 0.0, %v2907
        %v2909 = vpop.f32.mrb[0].mxu0
        %2910 = vdwg.mxu0
        %v2911 = vadd.f32 %v2831, %v2908
        %s2912 = scalar_lea.vmem %s1, 48
        %v2913 = vld [vmem:[%s2912] sm:$0xff]
        %2914 = vrot.lane.b32.xlu0 %v2433, 108
        %v2915 = vpop.permute.xlu0 %2914
        %v2917 = vsel %vm2440, %v2913, 0
        %v2919 = vsel %vm2444, %v2915, 0
        %2921 = vmatprep.subr.mxu0 0.0
        %2922 = vmatpush1.msra.mxu0 %v2919
        %2923 = vmatprep.subr.mxu0 0.0
        %2924 = vmatpush1.msra.mxu0 0.0
        %2925 = vmatprep.subr.mxu0 0.0
        %2926 = vmatpush1.msra.mxu0 0.0
        %2927 = vmatprep.subr.mxu0 0.0
        %2928 = vmatpush1.msra.mxu0 0.0
        %2929 = vmatprep.subr.mxu0 0.0
        %2930 = vmatpush1.msra.mxu0 0.0
        %2931 = vmatprep.subr.mxu0 0.0
        %2932 = vmatpush1.msra.mxu0 0.0
        %2933 = vmatprep.subr.mxu0 0.0
        %2934 = vmatpush1.msra.mxu0 0.0
        %2935 = vmatprep.subr.mxu0 0.0
        %2936 = vmatpush1.msra.mxu0 0.0
        %2937 = vmatprep.subr.mxu0 0.0
        %2938 = vmatpush1.msra.mxu0 0.0
        %2939 = vmatprep.subr.mxu0 0.0
        %2940 = vmatpush1.msra.mxu0 0.0
        %2941 = vmatprep.subr.mxu0 0.0
        %2942 = vmatpush1.msra.mxu0 0.0
        %2943 = vmatprep.subr.mxu0 0.0
        %2944 = vmatpush1.msra.mxu0 0.0
        %2945 = vmatprep.subr.mxu0 0.0
        %2946 = vmatpush1.msra.mxu0 0.0
        %2947 = vmatprep.subr.mxu0 0.0
        %2948 = vmatpush1.msra.mxu0 0.0
        %2949 = vmatprep.subr.mxu0 0.0
        %2950 = vmatpush1.msra.mxu0 0.0
        %2951 = vmatprep.subr.mxu0 0.0
        %2952 = vmatpush1.msra.mxu0 0.0
        %2953 = vmatprep.subr.mxu0 0.0
        %2954 = vmatpush1.msra.mxu0 0.0
        %2955 = vmatprep.subr.mxu0 0.0
        %2956 = vmatpush1.msra.mxu0 0.0
        %2957 = vmatprep.subr.mxu0 0.0
        %2958 = vmatpush1.msra.mxu0 0.0
        %2959 = vmatprep.subr.mxu0 0.0
        %2960 = vmatpush1.msra.mxu0 0.0
        %2961 = vmatprep.subr.mxu0 0.0
        %2962 = vmatpush1.msra.mxu0 0.0
        %2963 = vmatprep.subr.mxu0 0.0
        %2964 = vmatpush1.msra.mxu0 0.0
        %2965 = vmatprep.subr.mxu0 0.0
        %2966 = vmatpush1.msra.mxu0 0.0
        %2967 = vmatprep.subr.mxu0 0.0
        %2968 = vmatpush1.msra.mxu0 0.0
        %2969 = vmatprep.subr.mxu0 0.0
        %2970 = vmatpush1.msra.mxu0 0.0
        %2971 = vmatprep.subr.mxu0 0.0
        %2972 = vmatpush1.msra.mxu0 0.0
        %2973 = vmatprep.subr.mxu0 0.0
        %2974 = vmatpush1.msra.mxu0 0.0
        %2975 = vmatprep.subr.mxu0 0.0
        %2976 = vmatpush1.msra.mxu0 0.0
        %2977 = vmatprep.subr.mxu0 0.0
        %2978 = vmatpush1.msra.mxu0 0.0
        %2979 = vmatprep.subr.mxu0 0.0
        %2980 = vmatpush1.msra.mxu0 0.0
        %2981 = vmatprep.subr.mxu0 0.0
        %2982 = vmatpush1.msra.mxu0 0.0
        %2983 = vmatprep.subr.mxu0 0.0
        %2984 = vmatpush1.msra.mxu0 0.0
        %2985 = vmatprep.mubr.f32.mxu0 0.0
        %2986 = vmatmul.mubr.f32.gmra.mrb[0].mxu0 %v2917
        %v2987 = vpop.f32.mrb[0].mxu0
        %v2988 = vadd.f32 0.0, %v2987
        %v2989 = vpop.f32.mrb[0].mxu0
        %2990 = vdwg.mxu0
        %v2991 = vadd.f32 %v2911, %v2988
        %s2992 = scalar_lea.vmem %s1, 56
        %v2993 = vld [vmem:[%s2992] sm:$0xff]
        %2994 = vrot.lane.b32.xlu0 %v2433, 107
        %v2995 = vpop.permute.xlu0 %2994
        %v2997 = vsel %vm2440, %v2993, 0
        %v2999 = vsel %vm2444, %v2995, 0
        %3001 = vmatprep.subr.mxu0 0.0
        %3002 = vmatpush1.msra.mxu0 %v2999
        %3003 = vmatprep.subr.mxu0 0.0
        %3004 = vmatpush1.msra.mxu0 0.0
        %3005 = vmatprep.subr.mxu0 0.0
        %3006 = vmatpush1.msra.mxu0 0.0
        %3007 = vmatprep.subr.mxu0 0.0
        %3008 = vmatpush1.msra.mxu0 0.0
        %3009 = vmatprep.subr.mxu0 0.0
        %3010 = vmatpush1.msra.mxu0 0.0
        %3011 = vmatprep.subr.mxu0 0.0
        %3012 = vmatpush1.msra.mxu0 0.0
        %3013 = vmatprep.subr.mxu0 0.0
        %3014 = vmatpush1.msra.mxu0 0.0
        %3015 = vmatprep.subr.mxu0 0.0
        %3016 = vmatpush1.msra.mxu0 0.0
        %3017 = vmatprep.subr.mxu0 0.0
        %3018 = vmatpush1.msra.mxu0 0.0
        %3019 = vmatprep.subr.mxu0 0.0
        %3020 = vmatpush1.msra.mxu0 0.0
        %3021 = vmatprep.subr.mxu0 0.0
        %3022 = vmatpush1.msra.mxu0 0.0
        %3023 = vmatprep.subr.mxu0 0.0
        %3024 = vmatpush1.msra.mxu0 0.0
        %3025 = vmatprep.subr.mxu0 0.0
        %3026 = vmatpush1.msra.mxu0 0.0
        %3027 = vmatprep.subr.mxu0 0.0
        %3028 = vmatpush1.msra.mxu0 0.0
        %3029 = vmatprep.subr.mxu0 0.0
        %3030 = vmatpush1.msra.mxu0 0.0
        %3031 = vmatprep.subr.mxu0 0.0
        %3032 = vmatpush1.msra.mxu0 0.0
        %3033 = vmatprep.subr.mxu0 0.0
        %3034 = vmatpush1.msra.mxu0 0.0
        %3035 = vmatprep.subr.mxu0 0.0
        %3036 = vmatpush1.msra.mxu0 0.0
        %3037 = vmatprep.subr.mxu0 0.0
        %3038 = vmatpush1.msra.mxu0 0.0
        %3039 = vmatprep.subr.mxu0 0.0
        %3040 = vmatpush1.msra.mxu0 0.0
        %3041 = vmatprep.subr.mxu0 0.0
        %3042 = vmatpush1.msra.mxu0 0.0
        %3043 = vmatprep.subr.mxu0 0.0
        %3044 = vmatpush1.msra.mxu0 0.0
        %3045 = vmatprep.subr.mxu0 0.0
        %3046 = vmatpush1.msra.mxu0 0.0
        %3047 = vmatprep.subr.mxu0 0.0
        %3048 = vmatpush1.msra.mxu0 0.0
        %3049 = vmatprep.subr.mxu0 0.0
        %3050 = vmatpush1.msra.mxu0 0.0
        %3051 = vmatprep.subr.mxu0 0.0
        %3052 = vmatpush1.msra.mxu0 0.0
        %3053 = vmatprep.subr.mxu0 0.0
        %3054 = vmatpush1.msra.mxu0 0.0
        %3055 = vmatprep.subr.mxu0 0.0
        %3056 = vmatpush1.msra.mxu0 0.0
        %3057 = vmatprep.subr.mxu0 0.0
        %3058 = vmatpush1.msra.mxu0 0.0
        %3059 = vmatprep.subr.mxu0 0.0
        %3060 = vmatpush1.msra.mxu0 0.0
        %3061 = vmatprep.subr.mxu0 0.0
        %3062 = vmatpush1.msra.mxu0 0.0
        %3063 = vmatprep.subr.mxu0 0.0
        %3064 = vmatpush1.msra.mxu0 0.0
        %3065 = vmatprep.mubr.f32.mxu0 0.0
        %3066 = vmatmul.mubr.f32.gmra.mrb[0].mxu0 %v2997
        %v3067 = vpop.f32.mrb[0].mxu0
        %v3068 = vadd.f32 0.0, %v3067
        %v3069 = vpop.f32.mrb[0].mxu0
        %3070 = vdwg.mxu0
        %v3071 = vadd.f32 %v2991, %v3068
        %s3072 = scalar_lea.vmem %s1, 64
        %v3073 = vld [vmem:[%s3072] sm:$0xff]
        %3074 = vrot.lane.b32.xlu0 %v2433, 106
        %v3075 = vpop.permute.xlu0 %3074
        %v3077 = vsel %vm2440, %v3073, 0
        %v3079 = vsel %vm2444, %v3075, 0
        %3081 = vmatprep.subr.mxu0 0.0
        %3082 = vmatpush1.msra.mxu0 %v3079
        %3083 = vmatprep.subr.mxu0 0.0
        %3084 = vmatpush1.msra.mxu0 0.0
        %3085 = vmatprep.subr.mxu0 0.0
        %3086 = vmatpush1.msra.mxu0 0.0
        %3087 = vmatprep.subr.mxu0 0.0
        %3088 = vmatpush1.msra.mxu0 0.0
        %3089 = vmatprep.subr.mxu0 0.0
        %3090 = vmatpush1.msra.mxu0 0.0
        %3091 = vmatprep.subr.mxu0 0.0
        %3092 = vmatpush1.msra.mxu0 0.0
        %3093 = vmatprep.subr.mxu0 0.0
        %3094 = vmatpush1.msra.mxu0 0.0
        %3095 = vmatprep.subr.mxu0 0.0
        %3096 = vmatpush1.msra.mxu0 0.0
        %3097 = vmatprep.subr.mxu0 0.0
        %3098 = vmatpush1.msra.mxu0 0.0
        %3099 = vmatprep.subr.mxu0 0.0
        %3100 = vmatpush1.msra.mxu0 0.0
        %3101 = vmatprep.subr.mxu0 0.0
        %3102 = vmatpush1.msra.mxu0 0.0
        %3103 = vmatprep.subr.mxu0 0.0
        %3104 = vmatpush1.msra.mxu0 0.0
        %3105 = vmatprep.subr.mxu0 0.0
        %3106 = vmatpush1.msra.mxu0 0.0
        %3107 = vmatprep.subr.mxu0 0.0
        %3108 = vmatpush1.msra.mxu0 0.0
        %3109 = vmatprep.subr.mxu0 0.0
        %3110 = vmatpush1.msra.mxu0 0.0
        %3111 = vmatprep.subr.mxu0 0.0
        %3112 = vmatpush1.msra.mxu0 0.0
        %3113 = vmatprep.subr.mxu0 0.0
        %3114 = vmatpush1.msra.mxu0 0.0
        %3115 = vmatprep.subr.mxu0 0.0
        %3116 = vmatpush1.msra.mxu0 0.0
        %3117 = vmatprep.subr.mxu0 0.0
        %3118 = vmatpush1.msra.mxu0 0.0
        %3119 = vmatprep.subr.mxu0 0.0
        %3120 = vmatpush1.msra.mxu0 0.0
        %3121 = vmatprep.subr.mxu0 0.0
        %3122 = vmatpush1.msra.mxu0 0.0
        %3123 = vmatprep.subr.mxu0 0.0
        %3124 = vmatpush1.msra.mxu0 0.0
        %3125 = vmatprep.subr.mxu0 0.0
        %3126 = vmatpush1.msra.mxu0 0.0
        %3127 = vmatprep.subr.mxu0 0.0
        %3128 = vmatpush1.msra.mxu0 0.0
        %3129 = vmatprep.subr.mxu0 0.0
        %3130 = vmatpush1.msra.mxu0 0.0
        %3131 = vmatprep.subr.mxu0 0.0
        %3132 = vmatpush1.msra.mxu0 0.0
        %3133 = vmatprep.subr.mxu0 0.0
        %3134 = vmatpush1.msra.mxu0 0.0
        %3135 = vmatprep.subr.mxu0 0.0
        %3136 = vmatpush1.msra.mxu0 0.0
        %3137 = vmatprep.subr.mxu0 0.0
        %3138 = vmatpush1.msra.mxu0 0.0
        %3139 = vmatprep.subr.mxu0 0.0
        %3140 = vmatpush1.msra.mxu0 0.0
        %3141 = vmatprep.subr.mxu0 0.0
        %3142 = vmatpush1.msra.mxu0 0.0
        %3143 = vmatprep.subr.mxu0 0.0
        %3144 = vmatpush1.msra.mxu0 0.0
        %3145 = vmatprep.mubr.f32.mxu0 0.0
        %3146 = vmatmul.mubr.f32.gmra.mrb[0].mxu0 %v3077
        %v3147 = vpop.f32.mrb[0].mxu0
        %v3148 = vadd.f32 0.0, %v3147
        %v3149 = vpop.f32.mrb[0].mxu0
        %3150 = vdwg.mxu0
        %v3151 = vadd.f32 %v3071, %v3148
        %v3152 = vld [vmem:[%s2] sm:$0xff]
        %3154 = vset.pattern.permute.xlu0 0
        %3155 = vperm.xlu0 %3154, %v3152
        %v3156 = vpop.permute.xlu0 %3155
        %v3158 = vadd.f32 %v3151, %v3156
        %v3159 = vmax.f32 %v3158, 0.0
        %3161 = vrot.lane.b32.xlu0 %v3159, 118
        %v3162 = vpop.permute.xlu0 %3161
        %3164 = vrot.lane.b32.xlu0 %v3159, 108
        %v3165 = vpop.permute.xlu0 %3164
        %3167 = vrot.lane.b32.xlu0 %v3159, 98
        %v3168 = vpop.permute.xlu0 %3167
        %3170 = vrot.lane.b32.xlu0 %v3159, 88
        %v3171 = vpop.permute.xlu0 %3170
        %3173 = vrot.lane.b32.xlu0 %v3159, 78
        %v3174 = vpop.permute.xlu0 %3173
        %3176 = vrot.lane.b32.xlu0 %v3159, 68
        %v3177 = vpop.permute.xlu0 %3176
        %3179 = vrot.lane.b32.xlu0 %v3159, 58
        %v3180 = vpop.permute.xlu0 %3179
        %v3182 = vcombine.low %v3159, %v3165
        %v3183 = vcombine.high %v3159, %v3165
        %v3185 = vunpack.c.l.s4 1983009808
        %v3186 = vunpack.c.0.s8 %v3185
        %v3187 = vlaneseq
        %v3188 = vshrl.u32 %v3187, 7
        %v3189 = vsub.s32 %v3186, %v3188
        %v3190 = vrot.slane %v3182, %v3189
        %v3192 = vunpack.c.l.s4 1983009808
        %v3193 = vunpack.c.0.s8 %v3192
        %v3194 = vlaneseq
        %v3195 = vshrl.u32 %v3194, 7
        %v3196 = vsub.s32 %v3193, %v3195
        %v3197 = vrot.slane %v3183, %v3196
        %v3198 = vcombine.low %v3162, %v3168
        %v3199 = vcombine.high %v3162, %v3168
        %v3201 = vunpack.c.l.s4 1983009808
        %v3202 = vunpack.c.0.s8 %v3201
        %v3203 = vlaneseq
        %v3204 = vshrl.u32 %v3203, 7
        %v3205 = vsub.s32 %v3202, %v3204
        %v3206 = vrot.slane %v3198, %v3205
        %v3208 = vunpack.c.l.s4 1983009808
        %v3209 = vunpack.c.0.s8 %v3208
        %v3210 = vlaneseq
        %v3211 = vshrl.u32 %v3210, 7
        %v3212 = vsub.s32 %v3209, %v3211
        %v3213 = vrot.slane %v3199, %v3212
        %v3214 = vcombine.low %v3171, %v3177
        %v3215 = vcombine.high %v3171, %v3177
        %v3217 = vunpack.c.l.s4 1983009808
        %v3218 = vunpack.c.0.s8 %v3217
        %v3219 = vlaneseq
        %v3220 = vshrl.u32 %v3219, 7
        %v3221 = vsub.s32 %v3218, %v3220
        %v3222 = vrot.slane %v3214, %v3221
        %v3224 = vunpack.c.l.s4 1983009808
        %v3225 = vunpack.c.0.s8 %v3224
        %v3226 = vlaneseq
        %v3227 = vshrl.u32 %v3226, 7
        %v3228 = vsub.s32 %v3225, %v3227
        %v3229 = vrot.slane %v3215, %v3228
        %v3230 = vcombine.low %v3174, %v3180
        %v3231 = vcombine.high %v3174, %v3180
        %v3233 = vunpack.c.l.s4 1983009808
        %v3234 = vunpack.c.0.s8 %v3233
        %v3235 = vlaneseq
        %v3236 = vshrl.u32 %v3235, 7
        %v3237 = vsub.s32 %v3234, %v3236
        %v3238 = vrot.slane %v3230, %v3237
        %v3240 = vunpack.c.l.s4 1983009808
        %v3241 = vunpack.c.0.s8 %v3240
        %v3242 = vlaneseq
        %v3243 = vshrl.u32 %v3242, 7
        %v3244 = vsub.s32 %v3241, %v3243
        %v3245 = vrot.slane %v3231, %v3244
        %v3246 = vcombine.low %v3190, %v3206
        %v3247 = vcombine.high %v3190, %v3206
        %v3249 = vunpack.c.l.s4 1934713408
        %v3250 = vunpack.c.0.s8 %v3249
        %v3251 = vlaneseq
        %v3252 = vshrl.u32 %v3251, 7
        %v3253 = vsub.s32 %v3250, %v3252
        %v3254 = vrot.slane %v3246, %v3253
        %v3256 = vunpack.c.l.s4 1934713408
        %v3257 = vunpack.c.0.s8 %v3256
        %v3258 = vlaneseq
        %v3259 = vshrl.u32 %v3258, 7
        %v3260 = vsub.s32 %v3257, %v3259
        %v3261 = vrot.slane %v3247, %v3260
        %v3262 = vcombine.low %v3197, %v3213
        %v3263 = vcombine.high %v3197, %v3213
        %v3265 = vunpack.c.l.s4 1934713408
        %v3266 = vunpack.c.0.s8 %v3265
        %v3267 = vlaneseq
        %v3268 = vshrl.u32 %v3267, 7
        %v3269 = vsub.s32 %v3266, %v3268
        %v3270 = vrot.slane %v3262, %v3269
        %v3272 = vunpack.c.l.s4 1934713408
        %v3273 = vunpack.c.0.s8 %v3272
        %v3274 = vlaneseq
        %v3275 = vshrl.u32 %v3274, 7
        %v3276 = vsub.s32 %v3273, %v3275
        %v3277 = vrot.slane %v3263, %v3276
        %v3278 = vcombine.low %v3222, %v3238
        %v3279 = vcombine.high %v3222, %v3238
        %v3281 = vunpack.c.l.s4 1934713408
        %v3282 = vunpack.c.0.s8 %v3281
        %v3283 = vlaneseq
        %v3284 = vshrl.u32 %v3283, 7
        %v3285 = vsub.s32 %v3282, %v3284
        %v3286 = vrot.slane %v3278, %v3285
        %v3288 = vunpack.c.l.s4 1934713408
        %v3289 = vunpack.c.0.s8 %v3288
        %v3290 = vlaneseq
        %v3291 = vshrl.u32 %v3290, 7
        %v3292 = vsub.s32 %v3289, %v3291
        %v3293 = vrot.slane %v3279, %v3292
        %v3294 = vcombine.low %v3229, %v3245
        %v3295 = vcombine.high %v3229, %v3245
        %v3297 = vunpack.c.l.s4 1934713408
        %v3298 = vunpack.c.0.s8 %v3297
        %v3299 = vlaneseq
        %v3300 = vshrl.u32 %v3299, 7
        %v3301 = vsub.s32 %v3298, %v3300
        %v3302 = vrot.slane %v3294, %v3301
        %v3304 = vunpack.c.l.s4 1934713408
        %v3305 = vunpack.c.0.s8 %v3304
        %v3306 = vlaneseq
        %v3307 = vshrl.u32 %v3306, 7
        %v3308 = vsub.s32 %v3305, %v3307
        %v3309 = vrot.slane %v3295, %v3308
        %v3310 = vcombine.low %v3254, %v3286
        %v3311 = vcombine.high %v3254, %v3286
        %v3312 = vcombine.low %v3261, %v3293
        %v3313 = vcombine.high %v3261, %v3293
        %v3314 = vcombine.low %v3270, %v3302
        %v3315 = vcombine.high %v3270, %v3302
        %v3316 = vcombine.low %v3277, %v3309
        %v3317 = vcombine.high %v3277, %v3309
        %v3318 = vcombine.low %v3310, %v3312
        %v3319 = vcombine.high %v3310, %v3312
        %v3321 = vunpack.c.l.s4 1983009808
        %v3322 = vunpack.c.0.s8 %v3321
        %v3323 = vlaneseq
        %v3324 = vshrl.u32 %v3323, 7
        %v3325 = vsub.s32 %v3322, %v3324
        %v3326 = vrot.slane %v3318, %v3325
        %v3328 = vunpack.c.l.s4 1983009808
        %v3329 = vunpack.c.0.s8 %v3328
        %v3330 = vlaneseq
        %v3331 = vshrl.u32 %v3330, 7
        %v3332 = vsub.s32 %v3329, %v3331
        %v3333 = vrot.slane %v3319, %v3332
        %v3334 = vcombine.low %v3311, %v3313
        %v3335 = vcombine.high %v3311, %v3313
        %v3337 = vunpack.c.l.s4 1983009808
        %v3338 = vunpack.c.0.s8 %v3337
        %v3339 = vlaneseq
        %v3340 = vshrl.u32 %v3339, 7
        %v3341 = vsub.s32 %v3338, %v3340
        %v3342 = vrot.slane %v3334, %v3341
        %v3344 = vunpack.c.l.s4 1983009808
        %v3345 = vunpack.c.0.s8 %v3344
        %v3346 = vlaneseq
        %v3347 = vshrl.u32 %v3346, 7
        %v3348 = vsub.s32 %v3345, %v3347
        %v3349 = vrot.slane %v3335, %v3348
        %v3350 = vcombine.low %v3314, %v3316
        %v3351 = vcombine.high %v3314, %v3316
        %v3353 = vunpack.c.l.s4 1983009808
        %v3354 = vunpack.c.0.s8 %v3353
        %v3355 = vlaneseq
        %v3356 = vshrl.u32 %v3355, 7
        %v3357 = vsub.s32 %v3354, %v3356
        %v3358 = vrot.slane %v3350, %v3357
        %v3360 = vunpack.c.l.s4 1983009808
        %v3361 = vunpack.c.0.s8 %v3360
        %v3362 = vlaneseq
        %v3363 = vshrl.u32 %v3362, 7
        %v3364 = vsub.s32 %v3361, %v3363
        %v3365 = vrot.slane %v3351, %v3364
        %v3366 = vcombine.low %v3315, %v3317
        %v3367 = vcombine.high %v3315, %v3317
        %v3369 = vunpack.c.l.s4 1983009808
        %v3370 = vunpack.c.0.s8 %v3369
        %v3371 = vlaneseq
        %v3372 = vshrl.u32 %v3371, 7
        %v3373 = vsub.s32 %v3370, %v3372
        %v3374 = vrot.slane %v3366, %v3373
        %v3376 = vunpack.c.l.s4 1983009808
        %v3377 = vunpack.c.0.s8 %v3376
        %v3378 = vlaneseq
        %v3379 = vshrl.u32 %v3378, 7
        %v3380 = vsub.s32 %v3377, %v3379
        %v3381 = vrot.slane %v3367, %v3380
        %v3382 = vcombine.low %v3326, %v3342
        %v3383 = vcombine.high %v3326, %v3342
        %v3385 = vunpack.c.l.s4 1934713408
        %v3386 = vunpack.c.0.s8 %v3385
        %v3387 = vlaneseq
        %v3388 = vshrl.u32 %v3387, 7
        %v3389 = vsub.s32 %v3386, %v3388
        %v3390 = vrot.slane %v3382, %v3389
        %v3392 = vunpack.c.l.s4 1934713408
        %v3393 = vunpack.c.0.s8 %v3392
        %v3394 = vlaneseq
        %v3395 = vshrl.u32 %v3394, 7
        %v3396 = vsub.s32 %v3393, %v3395
        %v3397 = vrot.slane %v3383, %v3396
        %v3398 = vcombine.low %v3333, %v3349
        %v3399 = vcombine.high %v3333, %v3349
        %v3401 = vunpack.c.l.s4 1934713408
        %v3402 = vunpack.c.0.s8 %v3401
        %v3403 = vlaneseq
        %v3404 = vshrl.u32 %v3403, 7
        %v3405 = vsub.s32 %v3402, %v3404
        %v3406 = vrot.slane %v3398, %v3405
        %v3408 = vunpack.c.l.s4 1934713408
        %v3409 = vunpack.c.0.s8 %v3408
        %v3410 = vlaneseq
        %v3411 = vshrl.u32 %v3410, 7
        %v3412 = vsub.s32 %v3409, %v3411
        %v3413 = vrot.slane %v3399, %v3412
        %v3414 = vcombine.low %v3358, %v3374
        %v3415 = vcombine.high %v3358, %v3374
        %v3417 = vunpack.c.l.s4 1934713408
        %v3418 = vunpack.c.0.s8 %v3417
        %v3419 = vlaneseq
        %v3420 = vshrl.u32 %v3419, 7
        %v3421 = vsub.s32 %v3418, %v3420
        %v3422 = vrot.slane %v3414, %v3421
        %v3424 = vunpack.c.l.s4 1934713408
        %v3425 = vunpack.c.0.s8 %v3424
        %v3426 = vlaneseq
        %v3427 = vshrl.u32 %v3426, 7
        %v3428 = vsub.s32 %v3425, %v3427
        %v3429 = vrot.slane %v3415, %v3428
        %v3430 = vcombine.low %v3365, %v3381
        %v3431 = vcombine.high %v3365, %v3381
        %v3433 = vunpack.c.l.s4 1934713408
        %v3434 = vunpack.c.0.s8 %v3433
        %v3435 = vlaneseq
        %v3436 = vshrl.u32 %v3435, 7
        %v3437 = vsub.s32 %v3434, %v3436
        %v3438 = vrot.slane %v3430, %v3437
        %v3440 = vunpack.c.l.s4 1934713408
        %v3441 = vunpack.c.0.s8 %v3440
        %v3442 = vlaneseq
        %v3443 = vshrl.u32 %v3442, 7
        %v3444 = vsub.s32 %v3441, %v3443
        %v3445 = vrot.slane %v3431, %v3444
        %v3446 = vcombine.low %v3390, %v3422
        %v3447 = vcombine.high %v3390, %v3422
        %v3448 = vcombine.low %v3397, %v3429
        %v3449 = vcombine.high %v3397, %v3429
        %v3450 = vcombine.low %v3406, %v3438
        %v3451 = vcombine.high %v3406, %v3438
        %v3452 = vcombine.low %v3413, %v3445
        %v3453 = vcombine.high %v3413, %v3445
        %3455 = vrot.lane.b32.xlu0 %v3447, 8
        %v3456 = vpop.permute.xlu0 %3455
        %3459 = vrot.lane.b32.xlu0 %v3448, 16
        %v3460 = vpop.permute.xlu0 %3459
        %3463 = vrot.lane.b32.xlu0 %v3449, 24
        %v3464 = vpop.permute.xlu0 %3463
        %3467 = vrot.lane.b32.xlu0 %v3450, 32
        %v3468 = vpop.permute.xlu0 %3467
        %3471 = vrot.lane.b32.xlu0 %v3451, 40
        %v3472 = vpop.permute.xlu0 %3471
        %3475 = vrot.lane.b32.xlu0 %v3452, 48
        %v3476 = vpop.permute.xlu0 %3475
        %3479 = vrot.lane.b32.xlu0 %v3453, 56
        %v3480 = vpop.permute.xlu0 %3479
        %vm3482 = vcmask 64512
        %v3483 = vsel %vm3482, %v3446, %v3456
        %vm3484 = vcmask 130048
        %v3485 = vsel %vm3484, %v3483, %v3460
        %vm3486 = vcmask 195584
        %v3487 = vsel %vm3486, %v3485, %v3464
        %vm3488 = vcmask 261120
        %v3489 = vsel %vm3488, %v3487, %v3468
        %v3490 = vsel %vm2419, %v3489, %v3472
        %vm3491 = vcmask 392192
        %v3492 = vsel %vm3491, %v3490, %v3476
        %vm3493 = vcmask 457728
        %v3494 = vsel %vm3493, %v3492, %v3480
        %vm3495 = vcmask 523264
        %v3496 = vsel %vm3495, %v3494, 0.0
        %3497 = vadd.xlane.f32.xlu0 %v3496
        %v3498 = vpop.xlane.xlu0 %3497
        %v3499 = vmul.f32 %v3494, %v3494
        %v3500 = vsel %vm3495, %v3499, 0.0
        %3501 = vadd.xlane.f32.xlu0 %v3500
        %v3502 = vpop.xlane.xlu0 %3501
        %v3503 = vsel %vm2307, %v3498, %v3502
        %v3504 = vld [vmem:[%s5] sm:$0xff]
        %v3506 = vsel %vm3482, %v3504, 0
        %3508 = vmatprep.subr.mxu0 0.0
        %3509 = vmatpush1.msra.mxu0 %v3503
        %3510 = vmatprep.subr.mxu0 0.0
        %3511 = vmatpush1.msra.mxu0 0.0
        %3512 = vmatprep.subr.mxu0 0.0
        %3513 = vmatpush1.msra.mxu0 0.0
        %3514 = vmatprep.subr.mxu0 0.0
        %3515 = vmatpush1.msra.mxu0 0.0
        %3516 = vmatprep.subr.mxu0 0.0
        %3517 = vmatpush1.msra.mxu0 0.0
        %3518 = vmatprep.subr.mxu0 0.0
        %3519 = vmatpush1.msra.mxu0 0.0
        %3520 = vmatprep.subr.mxu0 0.0
        %3521 = vmatpush1.msra.mxu0 0.0
        %3522 = vmatprep.subr.mxu0 0.0
        %3523 = vmatpush1.msra.mxu0 0.0
        %3524 = vmatprep.subr.mxu0 0.0
        %3525 = vmatpush1.msra.mxu0 0.0
        %3526 = vmatprep.subr.mxu0 0.0
        %3527 = vmatpush1.msra.mxu0 0.0
        %3528 = vmatprep.subr.mxu0 0.0
        %3529 = vmatpush1.msra.mxu0 0.0
        %3530 = vmatprep.subr.mxu0 0.0
        %3531 = vmatpush1.msra.mxu0 0.0
        %3532 = vmatprep.subr.mxu0 0.0
        %3533 = vmatpush1.msra.mxu0 0.0
        %3534 = vmatprep.subr.mxu0 0.0
        %3535 = vmatpush1.msra.mxu0 0.0
        %3536 = vmatprep.subr.mxu0 0.0
        %3537 = vmatpush1.msra.mxu0 0.0
        %3538 = vmatprep.subr.mxu0 0.0
        %3539 = vmatpush1.msra.mxu0 0.0
        %3540 = vmatprep.subr.mxu0 0.0
        %3541 = vmatpush1.msra.mxu0 0.0
        %3542 = vmatprep.subr.mxu0 0.0
        %3543 = vmatpush1.msra.mxu0 0.0
        %3544 = vmatprep.subr.mxu0 0.0
        %3545 = vmatpush1.msra.mxu0 0.0
        %3546 = vmatprep.subr.mxu0 0.0
        %3547 = vmatpush1.msra.mxu0 0.0
        %3548 = vmatprep.subr.mxu0 0.0
        %3549 = vmatpush1.msra.mxu0 0.0
        %3550 = vmatprep.subr.mxu0 0.0
        %3551 = vmatpush1.msra.mxu0 0.0
        %3552 = vmatprep.subr.mxu0 0.0
        %3553 = vmatpush1.msra.mxu0 0.0
        %3554 = vmatprep.subr.mxu0 0.0
        %3555 = vmatpush1.msra.mxu0 0.0
        %3556 = vmatprep.subr.mxu0 0.0
        %3557 = vmatpush1.msra.mxu0 0.0
        %3558 = vmatprep.subr.mxu0 0.0
        %3559 = vmatpush1.msra.mxu0 0.0
        %3560 = vmatprep.subr.mxu0 0.0
        %3561 = vmatpush1.msra.mxu0 0.0
        %3562 = vmatprep.subr.mxu0 0.0
        %3563 = vmatpush1.msra.mxu0 0.0
        %3564 = vmatprep.subr.mxu0 0.0
        %3565 = vmatpush1.msra.mxu0 0.0
        %3566 = vmatprep.subr.mxu0 0.0
        %3567 = vmatpush1.msra.mxu0 0.0
        %3568 = vmatprep.subr.mxu0 0.0
        %3569 = vmatpush1.msra.mxu0 0.0
        %3570 = vmatprep.subr.mxu0 0.0
        %3571 = vmatpush1.msra.mxu0 0.0
        %3572 = vmatprep.mubr.f32.mxu0 0.0
        %3573 = vmatmul.mubr.f32.gmra.mrb[0].mxu0 %v3506
        %v3574 = vpop.f32.mrb[0].mxu0
        %v3575 = vadd.f32 0.0, %v3574
        %v3576 = vpop.f32.mrb[0].mxu0
        %3577 = vdwg.mxu0
        %v3578 = vmul.f32 %v3575, %v3575
        %3580 = vrot.lane.b32.xlu0 %v3578, 1
        %v3581 = vpop.permute.xlu0 %3580
        %v3583 = vsub.f32 %v3575, %v3581
        %v3584 = vadd.f32 %v3583, 1e-05
        %v3585 = vrsqrt.pop %v3584
        %v3586 = vld [vmem:[%s3] sm:$0xff]
        %3588 = vrot.lane.b32.xlu0 %v3586, 1
        %v3589 = vpop.permute.xlu0 %3588
        %v3591 = vmul.f32 %v3585, %v3589
        %v3592 = vld [vmem:[%s4] sm:$0xff]
        %3594 = vrot.lane.b32.xlu0 %v3591, 127
        %v3595 = vpop.permute.xlu0 %3594
        %v3597 = vmul.f32 %v3575, %v3595
        %v3598 = vsub.f32 %v3592, %v3597
        %3599 = vset.pattern.permute.xlu0 1
        %3600 = vperm.xlu0 %3599, %v3591
        %v3601 = vpop.permute.xlu0 %3600
        %v3603 = vmul.f32 %v3494, %v3601
        %3605 = vset.pattern.permute.xlu0 0
        %3606 = vperm.xlu0 %3605, %v3598
        %v3607 = vpop.permute.xlu0 %3606
        %v3609 = vadd.f32 %v3603, %v3607
        %3611 = vrot.lane.b32.xlu0 %v3609, 120
        %v3612 = vpop.permute.xlu0 %3611
        %3614 = vrot.lane.b32.xlu0 %v3609, 112
        %v3615 = vpop.permute.xlu0 %3614
        %3617 = vrot.lane.b32.xlu0 %v3609, 104
        %v3618 = vpop.permute.xlu0 %3617
        %3620 = vrot.lane.b32.xlu0 %v3609, 96
        %v3621 = vpop.permute.xlu0 %3620
        %3623 = vrot.lane.b32.xlu0 %v3609, 88
        %v3624 = vpop.permute.xlu0 %3623
        %3626 = vrot.lane.b32.xlu0 %v3609, 80
        %v3627 = vpop.permute.xlu0 %3626
        %3629 = vrot.lane.b32.xlu0 %v3609, 72
        %v3630 = vpop.permute.xlu0 %3629
        %v3632 = vcombine.low %v3609, %v3615
        %v3633 = vcombine.high %v3609, %v3615
        %v3635 = vunpack.c.l.s4 1983009808
        %v3636 = vunpack.c.0.s8 %v3635
        %v3637 = vlaneseq
        %v3638 = vshrl.u32 %v3637, 7
        %v3639 = vsub.s32 %v3636, %v3638
        %v3640 = vrot.slane %v3632, %v3639
        %v3642 = vunpack.c.l.s4 1983009808
        %v3643 = vunpack.c.0.s8 %v3642
        %v3644 = vlaneseq
        %v3645 = vshrl.u32 %v3644, 7
        %v3646 = vsub.s32 %v3643, %v3645
        %v3647 = vrot.slane %v3633, %v3646
        %v3648 = vcombine.low %v3612, %v3618
        %v3649 = vcombine.high %v3612, %v3618
        %v3651 = vunpack.c.l.s4 1983009808
        %v3652 = vunpack.c.0.s8 %v3651
        %v3653 = vlaneseq
        %v3654 = vshrl.u32 %v3653, 7
        %v3655 = vsub.s32 %v3652, %v3654
        %v3656 = vrot.slane %v3648, %v3655
        %v3658 = vunpack.c.l.s4 1983009808
        %v3659 = vunpack.c.0.s8 %v3658
        %v3660 = vlaneseq
        %v3661 = vshrl.u32 %v3660, 7
        %v3662 = vsub.s32 %v3659, %v3661
        %v3663 = vrot.slane %v3649, %v3662
        %v3664 = vcombine.low %v3621, %v3627
        %v3665 = vcombine.high %v3621, %v3627
        %v3667 = vunpack.c.l.s4 1983009808
        %v3668 = vunpack.c.0.s8 %v3667
        %v3669 = vlaneseq
        %v3670 = vshrl.u32 %v3669, 7
        %v3671 = vsub.s32 %v3668, %v3670
        %v3672 = vrot.slane %v3664, %v3671
        %v3674 = vunpack.c.l.s4 1983009808
        %v3675 = vunpack.c.0.s8 %v3674
        %v3676 = vlaneseq
        %v3677 = vshrl.u32 %v3676, 7
        %v3678 = vsub.s32 %v3675, %v3677
        %v3679 = vrot.slane %v3665, %v3678
        %v3680 = vcombine.low %v3624, %v3630
        %v3681 = vcombine.high %v3624, %v3630
        %v3683 = vunpack.c.l.s4 1983009808
        %v3684 = vunpack.c.0.s8 %v3683
        %v3685 = vlaneseq
        %v3686 = vshrl.u32 %v3685, 7
        %v3687 = vsub.s32 %v3684, %v3686
        %v3688 = vrot.slane %v3680, %v3687
        %v3690 = vunpack.c.l.s4 1983009808
        %v3691 = vunpack.c.0.s8 %v3690
        %v3692 = vlaneseq
        %v3693 = vshrl.u32 %v3692, 7
        %v3694 = vsub.s32 %v3691, %v3693
        %v3695 = vrot.slane %v3681, %v3694
        %v3696 = vcombine.low %v3640, %v3656
        %v3697 = vcombine.high %v3640, %v3656
        %v3699 = vunpack.c.l.s4 1934713408
        %v3700 = vunpack.c.0.s8 %v3699
        %v3701 = vlaneseq
        %v3702 = vshrl.u32 %v3701, 7
        %v3703 = vsub.s32 %v3700, %v3702
        %v3704 = vrot.slane %v3696, %v3703
        %v3706 = vunpack.c.l.s4 1934713408
        %v3707 = vunpack.c.0.s8 %v3706
        %v3708 = vlaneseq
        %v3709 = vshrl.u32 %v3708, 7
        %v3710 = vsub.s32 %v3707, %v3709
        %v3711 = vrot.slane %v3697, %v3710
        %v3712 = vcombine.low %v3647, %v3663
        %v3713 = vcombine.high %v3647, %v3663
        %v3715 = vunpack.c.l.s4 1934713408
        %v3716 = vunpack.c.0.s8 %v3715
        %v3717 = vlaneseq
        %v3718 = vshrl.u32 %v3717, 7
        %v3719 = vsub.s32 %v3716, %v3718
        %v3720 = vrot.slane %v3712, %v3719
        %v3722 = vunpack.c.l.s4 1934713408
        %v3723 = vunpack.c.0.s8 %v3722
        %v3724 = vlaneseq
        %v3725 = vshrl.u32 %v3724, 7
        %v3726 = vsub.s32 %v3723, %v3725
        %v3727 = vrot.slane %v3713, %v3726
        %v3728 = vcombine.low %v3672, %v3688
        %v3729 = vcombine.high %v3672, %v3688
        %v3731 = vunpack.c.l.s4 1934713408
        %v3732 = vunpack.c.0.s8 %v3731
        %v3733 = vlaneseq
        %v3734 = vshrl.u32 %v3733, 7
        %v3735 = vsub.s32 %v3732, %v3734
        %v3736 = vrot.slane %v3728, %v3735
        %v3738 = vunpack.c.l.s4 1934713408
        %v3739 = vunpack.c.0.s8 %v3738
        %v3740 = vlaneseq
        %v3741 = vshrl.u32 %v3740, 7
        %v3742 = vsub.s32 %v3739, %v3741
        %v3743 = vrot.slane %v3729, %v3742
        %v3744 = vcombine.low %v3679, %v3695
        %v3745 = vcombine.high %v3679, %v3695
        %v3747 = vunpack.c.l.s4 1934713408
        %v3748 = vunpack.c.0.s8 %v3747
        %v3749 = vlaneseq
        %v3750 = vshrl.u32 %v3749, 7
        %v3751 = vsub.s32 %v3748, %v3750
        %v3752 = vrot.slane %v3744, %v3751
        %v3754 = vunpack.c.l.s4 1934713408
        %v3755 = vunpack.c.0.s8 %v3754
        %v3756 = vlaneseq
        %v3757 = vshrl.u32 %v3756, 7
        %v3758 = vsub.s32 %v3755, %v3757
        %v3759 = vrot.slane %v3745, %v3758
        %v3760 = vcombine.low %v3704, %v3736
        %v3761 = vcombine.high %v3704, %v3736
        %v3762 = vcombine.low %v3711, %v3743
        %v3763 = vcombine.high %v3711, %v3743
        %v3764 = vcombine.low %v3720, %v3752
        %v3765 = vcombine.high %v3720, %v3752
        %v3766 = vcombine.low %v3727, %v3759
        %v3767 = vcombine.high %v3727, %v3759
        %3776 = vrot.lane.b32.xlu0 %v3760, 1
        %v3777 = vpop.permute.xlu0 %3776
        %3778 = vrot.lane.b32.xlu0 %v3761, 1
        %v3779 = vpop.permute.xlu0 %3778
        %3780 = vrot.lane.b32.xlu0 %v3762, 1
        %v3781 = vpop.permute.xlu0 %3780
        %3782 = vrot.lane.b32.xlu0 %v3763, 1
        %v3783 = vpop.permute.xlu0 %3782
        %3784 = vrot.lane.b32.xlu0 %v3764, 1
        %v3785 = vpop.permute.xlu0 %3784
        %3786 = vrot.lane.b32.xlu0 %v3765, 1
        %v3787 = vpop.permute.xlu0 %3786
        %3788 = vrot.lane.b32.xlu0 %v3766, 1
        %v3789 = vpop.permute.xlu0 %3788
        %3790 = vrot.lane.b32.xlu0 %v3767, 1
        %v3791 = vpop.permute.xlu0 %3790
        %v3800 = vsel %vm2307, 0.0, %v3777
        %v3801 = vsel %vm2307, 0.0, %v3779
        %v3802 = vsel %vm2307, 0.0, %v3781
        %v3803 = vsel %vm2307, 0.0, %v3783
        %v3804 = vsel %vm2307, 0.0, %v3785
        %v3805 = vsel %vm2307, 0.0, %v3787
        %v3806 = vsel %vm2307, 0.0, %v3789
        %v3807 = vsel %vm2307, 0.0, %v3791
        %v3808 = vsel %vm2312, %v3800, 0.0
        %v3809 = vsel %vm2312, %v3801, 0.0
        %v3810 = vsel %vm2312, %v3802, 0.0
        %v3811 = vsel %vm2312, %v3803, 0.0
        %v3812 = vsel %vm2312, %v3804, 0.0
        %v3813 = vsel %vm2312, %v3805, 0.0
        %v3814 = vsel %vm2312, %v3806, 0.0
        %v3815 = vsel %vm2312, %v3807, 0.0
        %v3816 = vcombine.low %v3808, %v3810
        %v3817 = vcombine.high %v3808, %v3810
        %v3819 = vunpack.c.l.s4 1983009808
        %v3820 = vunpack.c.0.s8 %v3819
        %v3821 = vlaneseq
        %v3822 = vshrl.u32 %v3821, 7
        %v3823 = vsub.s32 %v3820, %v3822
        %v3824 = vrot.slane %v3816, %v3823
        %v3826 = vunpack.c.l.s4 1983009808
        %v3827 = vunpack.c.0.s8 %v3826
        %v3828 = vlaneseq
        %v3829 = vshrl.u32 %v3828, 7
        %v3830 = vsub.s32 %v3827, %v3829
        %v3831 = vrot.slane %v3817, %v3830
        %v3832 = vcombine.low %v3809, %v3811
        %v3833 = vcombine.high %v3809, %v3811
        %v3835 = vunpack.c.l.s4 1983009808
        %v3836 = vunpack.c.0.s8 %v3835
        %v3837 = vlaneseq
        %v3838 = vshrl.u32 %v3837, 7
        %v3839 = vsub.s32 %v3836, %v3838
        %v3840 = vrot.slane %v3832, %v3839
        %v3842 = vunpack.c.l.s4 1983009808
        %v3843 = vunpack.c.0.s8 %v3842
        %v3844 = vlaneseq
        %v3845 = vshrl.u32 %v3844, 7
        %v3846 = vsub.s32 %v3843, %v3845
        %v3847 = vrot.slane %v3833, %v3846
        %v3848 = vcombine.low %v3812, %v3814
        %v3849 = vcombine.high %v3812, %v3814
        %v3851 = vunpack.c.l.s4 1983009808
        %v3852 = vunpack.c.0.s8 %v3851
        %v3853 = vlaneseq
        %v3854 = vshrl.u32 %v3853, 7
        %v3855 = vsub.s32 %v3852, %v3854
        %v3856 = vrot.slane %v3848, %v3855
        %v3858 = vunpack.c.l.s4 1983009808
        %v3859 = vunpack.c.0.s8 %v3858
        %v3860 = vlaneseq
        %v3861 = vshrl.u32 %v3860, 7
        %v3862 = vsub.s32 %v3859, %v3861
        %v3863 = vrot.slane %v3849, %v3862
        %v3864 = vcombine.low %v3813, %v3815
        %v3865 = vcombine.high %v3813, %v3815
        %v3867 = vunpack.c.l.s4 1983009808
        %v3868 = vunpack.c.0.s8 %v3867
        %v3869 = vlaneseq
        %v3870 = vshrl.u32 %v3869, 7
        %v3871 = vsub.s32 %v3868, %v3870
        %v3872 = vrot.slane %v3864, %v3871
        %v3874 = vunpack.c.l.s4 1983009808
        %v3875 = vunpack.c.0.s8 %v3874
        %v3876 = vlaneseq
        %v3877 = vshrl.u32 %v3876, 7
        %v3878 = vsub.s32 %v3875, %v3877
        %v3879 = vrot.slane %v3865, %v3878
        %v3880 = vcombine.low %v3824, %v3840
        %v3881 = vcombine.high %v3824, %v3840
        %v3883 = vunpack.c.l.s4 1934713408
        %v3884 = vunpack.c.0.s8 %v3883
        %v3885 = vlaneseq
        %v3886 = vshrl.u32 %v3885, 7
        %v3887 = vsub.s32 %v3884, %v3886
        %v3888 = vrot.slane %v3880, %v3887
        %v3890 = vunpack.c.l.s4 1934713408
        %v3891 = vunpack.c.0.s8 %v3890
        %v3892 = vlaneseq
        %v3893 = vshrl.u32 %v3892, 7
        %v3894 = vsub.s32 %v3891, %v3893
        %v3895 = vrot.slane %v3881, %v3894
        %v3896 = vcombine.low %v3831, %v3847
        %v3897 = vcombine.high %v3831, %v3847
        %v3899 = vunpack.c.l.s4 1934713408
        %v3900 = vunpack.c.0.s8 %v3899
        %v3901 = vlaneseq
        %v3902 = vshrl.u32 %v3901, 7
        %v3903 = vsub.s32 %v3900, %v3902
        %v3904 = vrot.slane %v3896, %v3903
        %v3906 = vunpack.c.l.s4 1934713408
        %v3907 = vunpack.c.0.s8 %v3906
        %v3908 = vlaneseq
        %v3909 = vshrl.u32 %v3908, 7
        %v3910 = vsub.s32 %v3907, %v3909
        %v3911 = vrot.slane %v3897, %v3910
        %v3912 = vcombine.low %v3856, %v3872
        %v3913 = vcombine.high %v3856, %v3872
        %v3915 = vunpack.c.l.s4 1934713408
        %v3916 = vunpack.c.0.s8 %v3915
        %v3917 = vlaneseq
        %v3918 = vshrl.u32 %v3917, 7
        %v3919 = vsub.s32 %v3916, %v3918
        %v3920 = vrot.slane %v3912, %v3919
        %v3922 = vunpack.c.l.s4 1934713408
        %v3923 = vunpack.c.0.s8 %v3922
        %v3924 = vlaneseq
        %v3925 = vshrl.u32 %v3924, 7
        %v3926 = vsub.s32 %v3923, %v3925
        %v3927 = vrot.slane %v3913, %v3926
        %v3928 = vcombine.low %v3863, %v3879
        %v3929 = vcombine.high %v3863, %v3879
        %v3931 = vunpack.c.l.s4 1934713408
        %v3932 = vunpack.c.0.s8 %v3931
        %v3933 = vlaneseq
        %v3934 = vshrl.u32 %v3933, 7
        %v3935 = vsub.s32 %v3932, %v3934
        %v3936 = vrot.slane %v3928, %v3935
        %v3938 = vunpack.c.l.s4 1934713408
        %v3939 = vunpack.c.0.s8 %v3938
        %v3940 = vlaneseq
        %v3941 = vshrl.u32 %v3940, 7
        %v3942 = vsub.s32 %v3939, %v3941
        %v3943 = vrot.slane %v3929, %v3942
        %v3944 = vcombine.low %v3888, %v3920
        %v3945 = vcombine.high %v3888, %v3920
        %v3946 = vcombine.low %v3895, %v3927
        %v3947 = vcombine.high %v3895, %v3927
        %v3948 = vcombine.low %v3904, %v3936
        %v3949 = vcombine.high %v3904, %v3936
        %v3950 = vcombine.low %v3911, %v3943
        %v3951 = vcombine.high %v3911, %v3943
        %3953 = vrot.lane.b32.xlu0 %v3945, 10
        %v3954 = vpop.permute.xlu0 %3953
        %3957 = vrot.lane.b32.xlu0 %v3946, 20
        %v3958 = vpop.permute.xlu0 %3957
        %3961 = vrot.lane.b32.xlu0 %v3947, 30
        %v3962 = vpop.permute.xlu0 %3961
        %3965 = vrot.lane.b32.xlu0 %v3948, 40
        %v3966 = vpop.permute.xlu0 %3965
        %3969 = vrot.lane.b32.xlu0 %v3949, 50
        %v3970 = vpop.permute.xlu0 %3969
        %3973 = vrot.lane.b32.xlu0 %v3950, 60
        %v3974 = vpop.permute.xlu0 %3973
        %3977 = vrot.lane.b32.xlu0 %v3951, 70
        %v3978 = vpop.permute.xlu0 %3977
        %v3980 = vsel %vm2413, %v3944, %v3954
        %v3981 = vsel %vm2415, %v3980, %v3958
        %v3982 = vsel %vm2417, %v3981, %v3962
        %v3983 = vsel %vm2419, %v3982, %v3966
        %v3984 = vsel %vm2421, %v3983, %v3970
        %v3985 = vsel %vm2423, %v3984, %v3974
        %v3986 = vsel %vm2425, %v3985, %v3978
        %3988 = vrot.lane.b32.xlu0 %v3986, 10
        %v3989 = vpop.permute.xlu0 %3988
        %v3991 = vsel %vm2413, 0.0, %v3989
        %v3992 = vsel %vm2432, %v3991, 0.0
        %v3993 = vld [vmem:[%s6] sm:$0xff]
        %s3994 = scalar_lea.vmem %s6, 8
        %v3995 = vld [vmem:[%s3994] sm:$0xff]
        %3997 = vrot.lane.b32.xlu0 %v3992, 127
        %v3998 = vpop.permute.xlu0 %3997
        %v4001 = vsel %vm3482, %v3995, 0
        %4003 = vmatprep.subr.mxu0 0.0
        %4004 = vmatpush1.msra.mxu0 %v3998
        %4005 = vmatprep.subr.mxu0 0.0
        %4006 = vmatpush1.msra.mxu0 0.0
        %4007 = vmatprep.subr.mxu0 0.0
        %4008 = vmatpush1.msra.mxu0 0.0
        %4009 = vmatprep.subr.mxu0 0.0
        %4010 = vmatpush1.msra.mxu0 0.0
        %4011 = vmatprep.subr.mxu0 0.0
        %4012 = vmatpush1.msra.mxu0 0.0
        %4013 = vmatprep.subr.mxu0 0.0
        %4014 = vmatpush1.msra.mxu0 0.0
        %4015 = vmatprep.subr.mxu0 0.0
        %4016 = vmatpush1.msra.mxu0 0.0
        %4017 = vmatprep.subr.mxu0 0.0
        %4018 = vmatpush1.msra.mxu0 0.0
        %4019 = vmatprep.subr.mxu0 0.0
        %4020 = vmatpush1.msra.mxu0 0.0
        %4021 = vmatprep.subr.mxu0 0.0
        %4022 = vmatpush1.msra.mxu0 0.0
        %4023 = vmatprep.subr.mxu0 0.0
        %4024 = vmatpush1.msra.mxu0 0.0
        %4025 = vmatprep.subr.mxu0 0.0
        %4026 = vmatpush1.msra.mxu0 0.0
        %4027 = vmatprep.subr.mxu0 0.0
        %4028 = vmatpush1.msra.mxu0 0.0
        %4029 = vmatprep.subr.mxu0 0.0
        %4030 = vmatpush1.msra.mxu0 0.0
        %4031 = vmatprep.subr.mxu0 0.0
        %4032 = vmatpush1.msra.mxu0 0.0
        %4033 = vmatprep.subr.mxu0 0.0
        %4034 = vmatpush1.msra.mxu0 0.0
        %4035 = vmatprep.subr.mxu0 0.0
        %4036 = vmatpush1.msra.mxu0 0.0
        %4037 = vmatprep.subr.mxu0 0.0
        %4038 = vmatpush1.msra.mxu0 0.0
        %4039 = vmatprep.subr.mxu0 0.0
        %4040 = vmatpush1.msra.mxu0 0.0
        %4041 = vmatprep.subr.mxu0 0.0
        %4042 = vmatpush1.msra.mxu0 0.0
        %4043 = vmatprep.subr.mxu0 0.0
        %4044 = vmatpush1.msra.mxu0 0.0
        %4045 = vmatprep.subr.mxu0 0.0
        %4046 = vmatpush1.msra.mxu0 0.0
        %4047 = vmatprep.subr.mxu0 0.0
        %4048 = vmatpush1.msra.mxu0 0.0
        %4049 = vmatprep.subr.mxu0 0.0
        %4050 = vmatpush1.msra.mxu0 0.0
        %4051 = vmatprep.subr.mxu0 0.0
        %4052 = vmatpush1.msra.mxu0 0.0
        %4053 = vmatprep.subr.mxu0 0.0
        %4054 = vmatpush1.msra.mxu0 0.0
        %4055 = vmatprep.subr.mxu0 0.0
        %4056 = vmatpush1.msra.mxu0 0.0
        %4057 = vmatprep.subr.mxu0 0.0
        %4058 = vmatpush1.msra.mxu0 0.0
        %4059 = vmatprep.subr.mxu0 0.0
        %4060 = vmatpush1.msra.mxu0 0.0
        %4061 = vmatprep.subr.mxu0 0.0
        %4062 = vmatpush1.msra.mxu0 0.0
        %4063 = vmatprep.subr.mxu0 0.0
        %4064 = vmatpush1.msra.mxu0 0.0
        %4065 = vmatprep.subr.mxu0 0.0
        %4066 = vmatpush1.msra.mxu0 0.0
        %4067 = vmatprep.mubr.f32.mxu0 0.0
        %4068 = vmatmul.mubr.f32.gmra.mrb[0].mxu0 %v4001
        %v4069 = vpop.f32.mrb[0].mxu0
        %v4070 = vadd.f32 0.0, %v4069
        %v4071 = vpop.f32.mrb[0].mxu0
        %4072 = vdwg.mxu0
        %v4074 = vsel %vm3482, %v3993, 0
        %4076 = vmatprep.subr.mxu0 0.0
        %4077 = vmatpush1.msra.mxu0 %v3992
        %4078 = vmatprep.subr.mxu0 0.0
        %4079 = vmatpush1.msra.mxu0 0.0
        %4080 = vmatprep.subr.mxu0 0.0
        %4081 = vmatpush1.msra.mxu0 0.0
        %4082 = vmatprep.subr.mxu0 0.0
        %4083 = vmatpush1.msra.mxu0 0.0
        %4084 = vmatprep.subr.mxu0 0.0
        %4085 = vmatpush1.msra.mxu0 0.0
        %4086 = vmatprep.subr.mxu0 0.0
        %4087 = vmatpush1.msra.mxu0 0.0
        %4088 = vmatprep.subr.mxu0 0.0
        %4089 = vmatpush1.msra.mxu0 0.0
        %4090 = vmatprep.subr.mxu0 0.0
        %4091 = vmatpush1.msra.mxu0 0.0
        %4092 = vmatprep.subr.mxu0 0.0
        %4093 = vmatpush1.msra.mxu0 0.0
        %4094 = vmatprep.subr.mxu0 0.0
        %4095 = vmatpush1.msra.mxu0 0.0
        %4096 = vmatprep.subr.mxu0 0.0
        %4097 = vmatpush1.msra.mxu0 0.0
        %4098 = vmatprep.subr.mxu0 0.0
        %4099 = vmatpush1.msra.mxu0 0.0
        %4100 = vmatprep.subr.mxu0 0.0
        %4101 = vmatpush1.msra.mxu0 0.0
        %4102 = vmatprep.subr.mxu0 0.0
        %4103 = vmatpush1.msra.mxu0 0.0
        %4104 = vmatprep.subr.mxu0 0.0
        %4105 = vmatpush1.msra.mxu0 0.0
        %4106 = vmatprep.subr.mxu0 0.0
        %4107 = vmatpush1.msra.mxu0 0.0
        %4108 = vmatprep.subr.mxu0 0.0
        %4109 = vmatpush1.msra.mxu0 0.0
        %4110 = vmatprep.subr.mxu0 0.0
        %4111 = vmatpush1.msra.mxu0 0.0
        %4112 = vmatprep.subr.mxu0 0.0
        %4113 = vmatpush1.msra.mxu0 0.0
        %4114 = vmatprep.subr.mxu0 0.0
        %4115 = vmatpush1.msra.mxu0 0.0
        %4116 = vmatprep.subr.mxu0 0.0
        %4117 = vmatpush1.msra.mxu0 0.0
        %4118 = vmatprep.subr.mxu0 0.0
        %4119 = vmatpush1.msra.mxu0 0.0
        %4120 = vmatprep.subr.mxu0 0.0
        %4121 = vmatpush1.msra.mxu0 0.0
        %4122 = vmatprep.subr.mxu0 0.0
        %4123 = vmatpush1.msra.mxu0 0.0
        %4124 = vmatprep.subr.mxu0 0.0
        %4125 = vmatpush1.msra.mxu0 0.0
        %4126 = vmatprep.subr.mxu0 0.0
        %4127 = vmatpush1.msra.mxu0 0.0
        %4128 = vmatprep.subr.mxu0 0.0
        %4129 = vmatpush1.msra.mxu0 0.0
        %4130 = vmatprep.subr.mxu0 0.0
        %4131 = vmatpush1.msra.mxu0 0.0
        %4132 = vmatprep.subr.mxu0 0.0
        %4133 = vmatpush1.msra.mxu0 0.0
        %4134 = vmatprep.subr.mxu0 0.0
        %4135 = vmatpush1.msra.mxu0 0.0
        %4136 = vmatprep.subr.mxu0 0.0
        %4137 = vmatpush1.msra.mxu0 0.0
        %4138 = vmatprep.subr.mxu0 0.0
        %4139 = vmatpush1.msra.mxu0 0.0
        %4140 = vmatprep.mubr.f32.mxu0 0.0
        %4141 = vmatmul.mubr.f32.gmra.mrb[0].mxu0 %v4074
        %v4142 = vpop.f32.mrb[0].mxu0
        %v4143 = vadd.f32 %v4070, %v4142
        %v4144 = vpop.f32.mrb[0].mxu0
        %4145 = vdwg.mxu0
        %s4146 = scalar_lea.vmem %s6, 16
        %v4147 = vld [vmem:[%s4146] sm:$0xff]
        %4148 = vrot.lane.b32.xlu0 %v3992, 126
        %v4149 = vpop.permute.xlu0 %4148
        %v4152 = vsel %vm3482, %v4147, 0
        %4154 = vmatprep.subr.mxu0 0.0
        %4155 = vmatpush1.msra.mxu0 %v4149
        %4156 = vmatprep.subr.mxu0 0.0
        %4157 = vmatpush1.msra.mxu0 0.0
        %4158 = vmatprep.subr.mxu0 0.0
        %4159 = vmatpush1.msra.mxu0 0.0
        %4160 = vmatprep.subr.mxu0 0.0
        %4161 = vmatpush1.msra.mxu0 0.0
        %4162 = vmatprep.subr.mxu0 0.0
        %4163 = vmatpush1.msra.mxu0 0.0
        %4164 = vmatprep.subr.mxu0 0.0
        %4165 = vmatpush1.msra.mxu0 0.0
        %4166 = vmatprep.subr.mxu0 0.0
        %4167 = vmatpush1.msra.mxu0 0.0
        %4168 = vmatprep.subr.mxu0 0.0
        %4169 = vmatpush1.msra.mxu0 0.0
        %4170 = vmatprep.subr.mxu0 0.0
        %4171 = vmatpush1.msra.mxu0 0.0
        %4172 = vmatprep.subr.mxu0 0.0
        %4173 = vmatpush1.msra.mxu0 0.0
        %4174 = vmatprep.subr.mxu0 0.0
        %4175 = vmatpush1.msra.mxu0 0.0
        %4176 = vmatprep.subr.mxu0 0.0
        %4177 = vmatpush1.msra.mxu0 0.0
        %4178 = vmatprep.subr.mxu0 0.0
        %4179 = vmatpush1.msra.mxu0 0.0
        %4180 = vmatprep.subr.mxu0 0.0
        %4181 = vmatpush1.msra.mxu0 0.0
        %4182 = vmatprep.subr.mxu0 0.0
        %4183 = vmatpush1.msra.mxu0 0.0
        %4184 = vmatprep.subr.mxu0 0.0
        %4185 = vmatpush1.msra.mxu0 0.0
        %4186 = vmatprep.subr.mxu0 0.0
        %4187 = vmatpush1.msra.mxu0 0.0
        %4188 = vmatprep.subr.mxu0 0.0
        %4189 = vmatpush1.msra.mxu0 0.0
        %4190 = vmatprep.subr.mxu0 0.0
        %4191 = vmatpush1.msra.mxu0 0.0
        %4192 = vmatprep.subr.mxu0 0.0
        %4193 = vmatpush1.msra.mxu0 0.0
        %4194 = vmatprep.subr.mxu0 0.0
        %4195 = vmatpush1.msra.mxu0 0.0
        %4196 = vmatprep.subr.mxu0 0.0
        %4197 = vmatpush1.msra.mxu0 0.0
        %4198 = vmatprep.subr.mxu0 0.0
        %4199 = vmatpush1.msra.mxu0 0.0
        %4200 = vmatprep.subr.mxu0 0.0
        %4201 = vmatpush1.msra.mxu0 0.0
        %4202 = vmatprep.subr.mxu0 0.0
        %4203 = vmatpush1.msra.mxu0 0.0
        %4204 = vmatprep.subr.mxu0 0.0
        %4205 = vmatpush1.msra.mxu0 0.0
        %4206 = vmatprep.subr.mxu0 0.0
        %4207 = vmatpush1.msra.mxu0 0.0
        %4208 = vmatprep.subr.mxu0 0.0
        %4209 = vmatpush1.msra.mxu0 0.0
        %4210 = vmatprep.subr.mxu0 0.0
        %4211 = vmatpush1.msra.mxu0 0.0
        %4212 = vmatprep.subr.mxu0 0.0
        %4213 = vmatpush1.msra.mxu0 0.0
        %4214 = vmatprep.subr.mxu0 0.0
        %4215 = vmatpush1.msra.mxu0 0.0
        %4216 = vmatprep.subr.mxu0 0.0
        %4217 = vmatpush1.msra.mxu0 0.0
        %4218 = vmatprep.mubr.f32.mxu0 0.0
        %4219 = vmatmul.mubr.f32.gmra.mrb[0].mxu0 %v4152
        %v4220 = vpop.f32.mrb[0].mxu0
        %v4221 = vadd.f32 0.0, %v4220
        %v4222 = vpop.f32.mrb[0].mxu0
        %4223 = vdwg.mxu0
        %v4224 = vadd.f32 %v4143, %v4221
        %s4225 = scalar_lea.vmem %s6, 24
        %v4226 = vld [vmem:[%s4225] sm:$0xff]
        %4227 = vrot.lane.b32.xlu0 %v3992, 118
        %v4228 = vpop.permute.xlu0 %4227
        %v4231 = vsel %vm3482, %v4226, 0
        %4233 = vmatprep.subr.mxu0 0.0
        %4234 = vmatpush1.msra.mxu0 %v4228
        %4235 = vmatprep.subr.mxu0 0.0
        %4236 = vmatpush1.msra.mxu0 0.0
        %4237 = vmatprep.subr.mxu0 0.0
        %4238 = vmatpush1.msra.mxu0 0.0
        %4239 = vmatprep.subr.mxu0 0.0
        %4240 = vmatpush1.msra.mxu0 0.0
        %4241 = vmatprep.subr.mxu0 0.0
        %4242 = vmatpush1.msra.mxu0 0.0
        %4243 = vmatprep.subr.mxu0 0.0
        %4244 = vmatpush1.msra.mxu0 0.0
        %4245 = vmatprep.subr.mxu0 0.0
        %4246 = vmatpush1.msra.mxu0 0.0
        %4247 = vmatprep.subr.mxu0 0.0
        %4248 = vmatpush1.msra.mxu0 0.0
        %4249 = vmatprep.subr.mxu0 0.0
        %4250 = vmatpush1.msra.mxu0 0.0
        %4251 = vmatprep.subr.mxu0 0.0
        %4252 = vmatpush1.msra.mxu0 0.0
        %4253 = vmatprep.subr.mxu0 0.0
        %4254 = vmatpush1.msra.mxu0 0.0
        %4255 = vmatprep.subr.mxu0 0.0
        %4256 = vmatpush1.msra.mxu0 0.0
        %4257 = vmatprep.subr.mxu0 0.0
        %4258 = vmatpush1.msra.mxu0 0.0
        %4259 = vmatprep.subr.mxu0 0.0
        %4260 = vmatpush1.msra.mxu0 0.0
        %4261 = vmatprep.subr.mxu0 0.0
        %4262 = vmatpush1.msra.mxu0 0.0
        %4263 = vmatprep.subr.mxu0 0.0
        %4264 = vmatpush1.msra.mxu0 0.0
        %4265 = vmatprep.subr.mxu0 0.0
        %4266 = vmatpush1.msra.mxu0 0.0
        %4267 = vmatprep.subr.mxu0 0.0
        %4268 = vmatpush1.msra.mxu0 0.0
        %4269 = vmatprep.subr.mxu0 0.0
        %4270 = vmatpush1.msra.mxu0 0.0
        %4271 = vmatprep.subr.mxu0 0.0
        %4272 = vmatpush1.msra.mxu0 0.0
        %4273 = vmatprep.subr.mxu0 0.0
        %4274 = vmatpush1.msra.mxu0 0.0
        %4275 = vmatprep.subr.mxu0 0.0
        %4276 = vmatpush1.msra.mxu0 0.0
        %4277 = vmatprep.subr.mxu0 0.0
        %4278 = vmatpush1.msra.mxu0 0.0
        %4279 = vmatprep.subr.mxu0 0.0
        %4280 = vmatpush1.msra.mxu0 0.0
        %4281 = vmatprep.subr.mxu0 0.0
        %4282 = vmatpush1.msra.mxu0 0.0
        %4283 = vmatprep.subr.mxu0 0.0
        %4284 = vmatpush1.msra.mxu0 0.0
        %4285 = vmatprep.subr.mxu0 0.0
        %4286 = vmatpush1.msra.mxu0 0.0
        %4287 = vmatprep.subr.mxu0 0.0
        %4288 = vmatpush1.msra.mxu0 0.0
        %4289 = vmatprep.subr.mxu0 0.0
        %4290 = vmatpush1.msra.mxu0 0.0
        %4291 = vmatprep.subr.mxu0 0.0
        %4292 = vmatpush1.msra.mxu0 0.0
        %4293 = vmatprep.subr.mxu0 0.0
        %4294 = vmatpush1.msra.mxu0 0.0
        %4295 = vmatprep.subr.mxu0 0.0
        %4296 = vmatpush1.msra.mxu0 0.0
        %4297 = vmatprep.mubr.f32.mxu0 0.0
        %4298 = vmatmul.mubr.f32.gmra.mrb[0].mxu0 %v4231
        %v4299 = vpop.f32.mrb[0].mxu0
        %v4300 = vadd.f32 0.0, %v4299
        %v4301 = vpop.f32.mrb[0].mxu0
        %4302 = vdwg.mxu0
        %v4303 = vadd.f32 %v4224, %v4300
        %s4304 = scalar_lea.vmem %s6, 32
        %v4305 = vld [vmem:[%s4304] sm:$0xff]
        %4306 = vrot.lane.b32.xlu0 %v3992, 117
        %v4307 = vpop.permute.xlu0 %4306
        %v4310 = vsel %vm3482, %v4305, 0
        %4312 = vmatprep.subr.mxu0 0.0
        %4313 = vmatpush1.msra.mxu0 %v4307
        %4314 = vmatprep.subr.mxu0 0.0
        %4315 = vmatpush1.msra.mxu0 0.0
        %4316 = vmatprep.subr.mxu0 0.0
        %4317 = vmatpush1.msra.mxu0 0.0
        %4318 = vmatprep.subr.mxu0 0.0
        %4319 = vmatpush1.msra.mxu0 0.0
        %4320 = vmatprep.subr.mxu0 0.0
        %4321 = vmatpush1.msra.mxu0 0.0
        %4322 = vmatprep.subr.mxu0 0.0
        %4323 = vmatpush1.msra.mxu0 0.0
        %4324 = vmatprep.subr.mxu0 0.0
        %4325 = vmatpush1.msra.mxu0 0.0
        %4326 = vmatprep.subr.mxu0 0.0
        %4327 = vmatpush1.msra.mxu0 0.0
        %4328 = vmatprep.subr.mxu0 0.0
        %4329 = vmatpush1.msra.mxu0 0.0
        %4330 = vmatprep.subr.mxu0 0.0
        %4331 = vmatpush1.msra.mxu0 0.0
        %4332 = vmatprep.subr.mxu0 0.0
        %4333 = vmatpush1.msra.mxu0 0.0
        %4334 = vmatprep.subr.mxu0 0.0
        %4335 = vmatpush1.msra.mxu0 0.0
        %4336 = vmatprep.subr.mxu0 0.0
        %4337 = vmatpush1.msra.mxu0 0.0
        %4338 = vmatprep.subr.mxu0 0.0
        %4339 = vmatpush1.msra.mxu0 0.0
        %4340 = vmatprep.subr.mxu0 0.0
        %4341 = vmatpush1.msra.mxu0 0.0
        %4342 = vmatprep.subr.mxu0 0.0
        %4343 = vmatpush1.msra.mxu0 0.0
        %4344 = vmatprep.subr.mxu0 0.0
        %4345 = vmatpush1.msra.mxu0 0.0
        %4346 = vmatprep.subr.mxu0 0.0
        %4347 = vmatpush1.msra.mxu0 0.0
        %4348 = vmatprep.subr.mxu0 0.0
        %4349 = vmatpush1.msra.mxu0 0.0
        %4350 = vmatprep.subr.mxu0 0.0
        %4351 = vmatpush1.msra.mxu0 0.0
        %4352 = vmatprep.subr.mxu0 0.0
        %4353 = vmatpush1.msra.mxu0 0.0
        %4354 = vmatprep.subr.mxu0 0.0
        %4355 = vmatpush1.msra.mxu0 0.0
        %4356 = vmatprep.subr.mxu0 0.0
        %4357 = vmatpush1.msra.mxu0 0.0
        %4358 = vmatprep.subr.mxu0 0.0
        %4359 = vmatpush1.msra.mxu0 0.0
        %4360 = vmatprep.subr.mxu0 0.0
        %4361 = vmatpush1.msra.mxu0 0.0
        %4362 = vmatprep.subr.mxu0 0.0
        %4363 = vmatpush1.msra.mxu0 0.0
        %4364 = vmatprep.subr.mxu0 0.0
        %4365 = vmatpush1.msra.mxu0 0.0
        %4366 = vmatprep.subr.mxu0 0.0
        %4367 = vmatpush1.msra.mxu0 0.0
        %4368 = vmatprep.subr.mxu0 0.0
        %4369 = vmatpush1.msra.mxu0 0.0
        %4370 = vmatprep.subr.mxu0 0.0
        %4371 = vmatpush1.msra.mxu0 0.0
        %4372 = vmatprep.subr.mxu0 0.0
        %4373 = vmatpush1.msra.mxu0 0.0
        %4374 = vmatprep.subr.mxu0 0.0
        %4375 = vmatpush1.msra.mxu0 0.0
        %4376 = vmatprep.mubr.f32.mxu0 0.0
        %4377 = vmatmul.mubr.f32.gmra.mrb[0].mxu0 %v4310
        %v4378 = vpop.f32.mrb[0].mxu0
        %v4379 = vadd.f32 0.0, %v4378
        %v4380 = vpop.f32.mrb[0].mxu0
        %4381 = vdwg.mxu0
        %v4382 = vadd.f32 %v4303, %v4379
        %s4383 = scalar_lea.vmem %s6, 40
        %v4384 = vld [vmem:[%s4383] sm:$0xff]
        %4385 = vrot.lane.b32.xlu0 %v3992, 116
        %v4386 = vpop.permute.xlu0 %4385
        %v4389 = vsel %vm3482, %v4384, 0
        %4391 = vmatprep.subr.mxu0 0.0
        %4392 = vmatpush1.msra.mxu0 %v4386
        %4393 = vmatprep.subr.mxu0 0.0
        %4394 = vmatpush1.msra.mxu0 0.0
        %4395 = vmatprep.subr.mxu0 0.0
        %4396 = vmatpush1.msra.mxu0 0.0
        %4397 = vmatprep.subr.mxu0 0.0
        %4398 = vmatpush1.msra.mxu0 0.0
        %4399 = vmatprep.subr.mxu0 0.0
        %4400 = vmatpush1.msra.mxu0 0.0
        %4401 = vmatprep.subr.mxu0 0.0
        %4402 = vmatpush1.msra.mxu0 0.0
        %4403 = vmatprep.subr.mxu0 0.0
        %4404 = vmatpush1.msra.mxu0 0.0
        %4405 = vmatprep.subr.mxu0 0.0
        %4406 = vmatpush1.msra.mxu0 0.0
        %4407 = vmatprep.subr.mxu0 0.0
        %4408 = vmatpush1.msra.mxu0 0.0
        %4409 = vmatprep.subr.mxu0 0.0
        %4410 = vmatpush1.msra.mxu0 0.0
        %4411 = vmatprep.subr.mxu0 0.0
        %4412 = vmatpush1.msra.mxu0 0.0
        %4413 = vmatprep.subr.mxu0 0.0
        %4414 = vmatpush1.msra.mxu0 0.0
        %4415 = vmatprep.subr.mxu0 0.0
        %4416 = vmatpush1.msra.mxu0 0.0
        %4417 = vmatprep.subr.mxu0 0.0
        %4418 = vmatpush1.msra.mxu0 0.0
        %4419 = vmatprep.subr.mxu0 0.0
        %4420 = vmatpush1.msra.mxu0 0.0
        %4421 = vmatprep.subr.mxu0 0.0
        %4422 = vmatpush1.msra.mxu0 0.0
        %4423 = vmatprep.subr.mxu0 0.0
        %4424 = vmatpush1.msra.mxu0 0.0
        %4425 = vmatprep.subr.mxu0 0.0
        %4426 = vmatpush1.msra.mxu0 0.0
        %4427 = vmatprep.subr.mxu0 0.0
        %4428 = vmatpush1.msra.mxu0 0.0
        %4429 = vmatprep.subr.mxu0 0.0
        %4430 = vmatpush1.msra.mxu0 0.0
        %4431 = vmatprep.subr.mxu0 0.0
        %4432 = vmatpush1.msra.mxu0 0.0
        %4433 = vmatprep.subr.mxu0 0.0
        %4434 = vmatpush1.msra.mxu0 0.0
        %4435 = vmatprep.subr.mxu0 0.0
        %4436 = vmatpush1.msra.mxu0 0.0
        %4437 = vmatprep.subr.mxu0 0.0
        %4438 = vmatpush1.msra.mxu0 0.0
        %4439 = vmatprep.subr.mxu0 0.0
        %4440 = vmatpush1.msra.mxu0 0.0
        %4441 = vmatprep.subr.mxu0 0.0
        %4442 = vmatpush1.msra.mxu0 0.0
        %4443 = vmatprep.subr.mxu0 0.0
        %4444 = vmatpush1.msra.mxu0 0.0
        %4445 = vmatprep.subr.mxu0 0.0
        %4446 = vmatpush1.msra.mxu0 0.0
        %4447 = vmatprep.subr.mxu0 0.0
        %4448 = vmatpush1.msra.mxu0 0.0
        %4449 = vmatprep.subr.mxu0 0.0
        %4450 = vmatpush1.msra.mxu0 0.0
        %4451 = vmatprep.subr.mxu0 0.0
        %4452 = vmatpush1.msra.mxu0 0.0
        %4453 = vmatprep.subr.mxu0 0.0
        %4454 = vmatpush1.msra.mxu0 0.0
        %4455 = vmatprep.mubr.f32.mxu0 0.0
        %4456 = vmatmul.mubr.f32.gmra.mrb[0].mxu0 %v4389
        %v4457 = vpop.f32.mrb[0].mxu0
        %v4458 = vadd.f32 0.0, %v4457
        %v4459 = vpop.f32.mrb[0].mxu0
        %4460 = vdwg.mxu0
        %v4461 = vadd.f32 %v4382, %v4458
        %s4462 = scalar_lea.vmem %s6, 48
        %v4463 = vld [vmem:[%s4462] sm:$0xff]
        %4464 = vrot.lane.b32.xlu0 %v3992, 108
        %v4465 = vpop.permute.xlu0 %4464
        %v4468 = vsel %vm3482, %v4463, 0
        %4470 = vmatprep.subr.mxu0 0.0
        %4471 = vmatpush1.msra.mxu0 %v4465
        %4472 = vmatprep.subr.mxu0 0.0
        %4473 = vmatpush1.msra.mxu0 0.0
        %4474 = vmatprep.subr.mxu0 0.0
        %4475 = vmatpush1.msra.mxu0 0.0
        %4476 = vmatprep.subr.mxu0 0.0
        %4477 = vmatpush1.msra.mxu0 0.0
        %4478 = vmatprep.subr.mxu0 0.0
        %4479 = vmatpush1.msra.mxu0 0.0
        %4480 = vmatprep.subr.mxu0 0.0
        %4481 = vmatpush1.msra.mxu0 0.0
        %4482 = vmatprep.subr.mxu0 0.0
        %4483 = vmatpush1.msra.mxu0 0.0
        %4484 = vmatprep.subr.mxu0 0.0
        %4485 = vmatpush1.msra.mxu0 0.0
        %4486 = vmatprep.subr.mxu0 0.0
        %4487 = vmatpush1.msra.mxu0 0.0
        %4488 = vmatprep.subr.mxu0 0.0
        %4489 = vmatpush1.msra.mxu0 0.0
        %4490 = vmatprep.subr.mxu0 0.0
        %4491 = vmatpush1.msra.mxu0 0.0
        %4492 = vmatprep.subr.mxu0 0.0
        %4493 = vmatpush1.msra.mxu0 0.0
        %4494 = vmatprep.subr.mxu0 0.0
        %4495 = vmatpush1.msra.mxu0 0.0
        %4496 = vmatprep.subr.mxu0 0.0
        %4497 = vmatpush1.msra.mxu0 0.0
        %4498 = vmatprep.subr.mxu0 0.0
        %4499 = vmatpush1.msra.mxu0 0.0
        %4500 = vmatprep.subr.mxu0 0.0
        %4501 = vmatpush1.msra.mxu0 0.0
        %4502 = vmatprep.subr.mxu0 0.0
        %4503 = vmatpush1.msra.mxu0 0.0
        %4504 = vmatprep.subr.mxu0 0.0
        %4505 = vmatpush1.msra.mxu0 0.0
        %4506 = vmatprep.subr.mxu0 0.0
        %4507 = vmatpush1.msra.mxu0 0.0
        %4508 = vmatprep.subr.mxu0 0.0
        %4509 = vmatpush1.msra.mxu0 0.0
        %4510 = vmatprep.subr.mxu0 0.0
        %4511 = vmatpush1.msra.mxu0 0.0
        %4512 = vmatprep.subr.mxu0 0.0
        %4513 = vmatpush1.msra.mxu0 0.0
        %4514 = vmatprep.subr.mxu0 0.0
        %4515 = vmatpush1.msra.mxu0 0.0
        %4516 = vmatprep.subr.mxu0 0.0
        %4517 = vmatpush1.msra.mxu0 0.0
        %4518 = vmatprep.subr.mxu0 0.0
        %4519 = vmatpush1.msra.mxu0 0.0
        %4520 = vmatprep.subr.mxu0 0.0
        %4521 = vmatpush1.msra.mxu0 0.0
        %4522 = vmatprep.subr.mxu0 0.0
        %4523 = vmatpush1.msra.mxu0 0.0
        %4524 = vmatprep.subr.mxu0 0.0
        %4525 = vmatpush1.msra.mxu0 0.0
        %4526 = vmatprep.subr.mxu0 0.0
        %4527 = vmatpush1.msra.mxu0 0.0
        %4528 = vmatprep.subr.mxu0 0.0
        %4529 = vmatpush1.msra.mxu0 0.0
        %4530 = vmatprep.subr.mxu0 0.0
        %4531 = vmatpush1.msra.mxu0 0.0
        %4532 = vmatprep.subr.mxu0 0.0
        %4533 = vmatpush1.msra.mxu0 0.0
        %4534 = vmatprep.mubr.f32.mxu0 0.0
        %4535 = vmatmul.mubr.f32.gmra.mrb[0].mxu0 %v4468
        %v4536 = vpop.f32.mrb[0].mxu0
        %v4537 = vadd.f32 0.0, %v4536
        %v4538 = vpop.f32.mrb[0].mxu0
        %4539 = vdwg.mxu0
        %v4540 = vadd.f32 %v4461, %v4537
        %s4541 = scalar_lea.vmem %s6, 56
        %v4542 = vld [vmem:[%s4541] sm:$0xff]
        %4543 = vrot.lane.b32.xlu0 %v3992, 107
        %v4544 = vpop.permute.xlu0 %4543
        %v4547 = vsel %vm3482, %v4542, 0
        %4549 = vmatprep.subr.mxu0 0.0
        %4550 = vmatpush1.msra.mxu0 %v4544
        %4551 = vmatprep.subr.mxu0 0.0
        %4552 = vmatpush1.msra.mxu0 0.0
        %4553 = vmatprep.subr.mxu0 0.0
        %4554 = vmatpush1.msra.mxu0 0.0
        %4555 = vmatprep.subr.mxu0 0.0
        %4556 = vmatpush1.msra.mxu0 0.0
        %4557 = vmatprep.subr.mxu0 0.0
        %4558 = vmatpush1.msra.mxu0 0.0
        %4559 = vmatprep.subr.mxu0 0.0
        %4560 = vmatpush1.msra.mxu0 0.0
        %4561 = vmatprep.subr.mxu0 0.0
        %4562 = vmatpush1.msra.mxu0 0.0
        %4563 = vmatprep.subr.mxu0 0.0
        %4564 = vmatpush1.msra.mxu0 0.0
        %4565 = vmatprep.subr.mxu0 0.0
        %4566 = vmatpush1.msra.mxu0 0.0
        %4567 = vmatprep.subr.mxu0 0.0
        %4568 = vmatpush1.msra.mxu0 0.0
        %4569 = vmatprep.subr.mxu0 0.0
        %4570 = vmatpush1.msra.mxu0 0.0
        %4571 = vmatprep.subr.mxu0 0.0
        %4572 = vmatpush1.msra.mxu0 0.0
        %4573 = vmatprep.subr.mxu0 0.0
        %4574 = vmatpush1.msra.mxu0 0.0
        %4575 = vmatprep.subr.mxu0 0.0
        %4576 = vmatpush1.msra.mxu0 0.0
        %4577 = vmatprep.subr.mxu0 0.0
        %4578 = vmatpush1.msra.mxu0 0.0
        %4579 = vmatprep.subr.mxu0 0.0
        %4580 = vmatpush1.msra.mxu0 0.0
        %4581 = vmatprep.subr.mxu0 0.0
        %4582 = vmatpush1.msra.mxu0 0.0
        %4583 = vmatprep.subr.mxu0 0.0
        %4584 = vmatpush1.msra.mxu0 0.0
        %4585 = vmatprep.subr.mxu0 0.0
        %4586 = vmatpush1.msra.mxu0 0.0
        %4587 = vmatprep.subr.mxu0 0.0
        %4588 = vmatpush1.msra.mxu0 0.0
        %4589 = vmatprep.subr.mxu0 0.0
        %4590 = vmatpush1.msra.mxu0 0.0
        %4591 = vmatprep.subr.mxu0 0.0
        %4592 = vmatpush1.msra.mxu0 0.0
        %4593 = vmatprep.subr.mxu0 0.0
        %4594 = vmatpush1.msra.mxu0 0.0
        %4595 = vmatprep.subr.mxu0 0.0
        %4596 = vmatpush1.msra.mxu0 0.0
        %4597 = vmatprep.subr.mxu0 0.0
        %4598 = vmatpush1.msra.mxu0 0.0
        %4599 = vmatprep.subr.mxu0 0.0
        %4600 = vmatpush1.msra.mxu0 0.0
        %4601 = vmatprep.subr.mxu0 0.0
        %4602 = vmatpush1.msra.mxu0 0.0
        %4603 = vmatprep.subr.mxu0 0.0
        %4604 = vmatpush1.msra.mxu0 0.0
        %4605 = vmatprep.subr.mxu0 0.0
        %4606 = vmatpush1.msra.mxu0 0.0
        %4607 = vmatprep.subr.mxu0 0.0
        %4608 = vmatpush1.msra.mxu0 0.0
        %4609 = vmatprep.subr.mxu0 0.0
        %4610 = vmatpush1.msra.mxu0 0.0
        %4611 = vmatprep.subr.mxu0 0.0
        %4612 = vmatpush1.msra.mxu0 0.0
        %4613 = vmatprep.mubr.f32.mxu0 0.0
        %4614 = vmatmul.mubr.f32.gmra.mrb[0].mxu0 %v4547
        %v4615 = vpop.f32.mrb[0].mxu0
        %v4616 = vadd.f32 0.0, %v4615
        %v4617 = vpop.f32.mrb[0].mxu0
        %4618 = vdwg.mxu0
        %v4619 = vadd.f32 %v4540, %v4616
        %s4620 = scalar_lea.vmem %s6, 64
        %v4621 = vld [vmem:[%s4620] sm:$0xff]
        %4622 = vrot.lane.b32.xlu0 %v3992, 106
        %v4623 = vpop.permute.xlu0 %4622
        %v4626 = vsel %vm3482, %v4621, 0
        %4628 = vmatprep.subr.mxu0 0.0
        %4629 = vmatpush1.msra.mxu0 %v4623
        %4630 = vmatprep.subr.mxu0 0.0
        %4631 = vmatpush1.msra.mxu0 0.0
        %4632 = vmatprep.subr.mxu0 0.0
        %4633 = vmatpush1.msra.mxu0 0.0
        %4634 = vmatprep.subr.mxu0 0.0
        %4635 = vmatpush1.msra.mxu0 0.0
        %4636 = vmatprep.subr.mxu0 0.0
        %4637 = vmatpush1.msra.mxu0 0.0
        %4638 = vmatprep.subr.mxu0 0.0
        %4639 = vmatpush1.msra.mxu0 0.0
        %4640 = vmatprep.subr.mxu0 0.0
        %4641 = vmatpush1.msra.mxu0 0.0
        %4642 = vmatprep.subr.mxu0 0.0
        %4643 = vmatpush1.msra.mxu0 0.0
        %4644 = vmatprep.subr.mxu0 0.0
        %4645 = vmatpush1.msra.mxu0 0.0
        %4646 = vmatprep.subr.mxu0 0.0
        %4647 = vmatpush1.msra.mxu0 0.0
        %4648 = vmatprep.subr.mxu0 0.0
        %4649 = vmatpush1.msra.mxu0 0.0
        %4650 = vmatprep.subr.mxu0 0.0
        %4651 = vmatpush1.msra.mxu0 0.0
        %4652 = vmatprep.subr.mxu0 0.0
        %4653 = vmatpush1.msra.mxu0 0.0
        %4654 = vmatprep.subr.mxu0 0.0
        %4655 = vmatpush1.msra.mxu0 0.0
        %4656 = vmatprep.subr.mxu0 0.0
        %4657 = vmatpush1.msra.mxu0 0.0
        %4658 = vmatprep.subr.mxu0 0.0
        %4659 = vmatpush1.msra.mxu0 0.0
        %4660 = vmatprep.subr.mxu0 0.0
        %4661 = vmatpush1.msra.mxu0 0.0
        %4662 = vmatprep.subr.mxu0 0.0
        %4663 = vmatpush1.msra.mxu0 0.0
        %4664 = vmatprep.subr.mxu0 0.0
        %4665 = vmatpush1.msra.mxu0 0.0
        %4666 = vmatprep.subr.mxu0 0.0
        %4667 = vmatpush1.msra.mxu0 0.0
        %4668 = vmatprep.subr.mxu0 0.0
        %4669 = vmatpush1.msra.mxu0 0.0
        %4670 = vmatprep.subr.mxu0 0.0
        %4671 = vmatpush1.msra.mxu0 0.0
        %4672 = vmatprep.subr.mxu0 0.0
        %4673 = vmatpush1.msra.mxu0 0.0
        %4674 = vmatprep.subr.mxu0 0.0
        %4675 = vmatpush1.msra.mxu0 0.0
        %4676 = vmatprep.subr.mxu0 0.0
        %4677 = vmatpush1.msra.mxu0 0.0
        %4678 = vmatprep.subr.mxu0 0.0
        %4679 = vmatpush1.msra.mxu0 0.0
        %4680 = vmatprep.subr.mxu0 0.0
        %4681 = vmatpush1.msra.mxu0 0.0
        %4682 = vmatprep.subr.mxu0 0.0
        %4683 = vmatpush1.msra.mxu0 0.0
        %4684 = vmatprep.subr.mxu0 0.0
        %4685 = vmatpush1.msra.mxu0 0.0
        %4686 = vmatprep.subr.mxu0 0.0
        %4687 = vmatpush1.msra.mxu0 0.0
        %4688 = vmatprep.subr.mxu0 0.0
        %4689 = vmatpush1.msra.mxu0 0.0
        %4690 = vmatprep.subr.mxu0 0.0
        %4691 = vmatpush1.msra.mxu0 0.0
        %4692 = vmatprep.mubr.f32.mxu0 0.0
        %4693 = vmatmul.mubr.f32.gmra.mrb[0].mxu0 %v4626
        %v4694 = vpop.f32.mrb[0].mxu0
        %v4695 = vadd.f32 0.0, %v4694
        %v4696 = vpop.f32.mrb[0].mxu0
        %4697 = vdwg.mxu0
        %v4698 = vadd.f32 %v4619, %v4695
        %v4699 = vld [vmem:[%s7] sm:$0xff]
        %4701 = vset.pattern.permute.xlu0 0
        %4702 = vperm.xlu0 %4701, %v4699
        %v4703 = vpop.permute.xlu0 %4702
        %v4705 = vadd.f32 %v4698, %v4703
        %v4706 = vmax.f32 %v4705, 0.0
        %4708 = vrot.lane.b32.xlu0 %v4706, 118
        %v4709 = vpop.permute.xlu0 %4708
        %4711 = vrot.lane.b32.xlu0 %v4706, 108
        %v4712 = vpop.permute.xlu0 %4711
        %4714 = vrot.lane.b32.xlu0 %v4706, 98
        %v4715 = vpop.permute.xlu0 %4714
        %4717 = vrot.lane.b32.xlu0 %v4706, 88
        %v4718 = vpop.permute.xlu0 %4717
        %4720 = vrot.lane.b32.xlu0 %v4706, 78
        %v4721 = vpop.permute.xlu0 %4720
        %4723 = vrot.lane.b32.xlu0 %v4706, 68
        %v4724 = vpop.permute.xlu0 %4723
        %4726 = vrot.lane.b32.xlu0 %v4706, 58
        %v4727 = vpop.permute.xlu0 %4726
        %v4729 = vcombine.low %v4706, %v4712
        %v4730 = vcombine.high %v4706, %v4712
        %v4732 = vunpack.c.l.s4 1983009808
        %v4733 = vunpack.c.0.s8 %v4732
        %v4734 = vlaneseq
        %v4735 = vshrl.u32 %v4734, 7
        %v4736 = vsub.s32 %v4733, %v4735
        %v4737 = vrot.slane %v4729, %v4736
        %v4739 = vunpack.c.l.s4 1983009808
        %v4740 = vunpack.c.0.s8 %v4739
        %v4741 = vlaneseq
        %v4742 = vshrl.u32 %v4741, 7
        %v4743 = vsub.s32 %v4740, %v4742
        %v4744 = vrot.slane %v4730, %v4743
        %v4745 = vcombine.low %v4709, %v4715
        %v4746 = vcombine.high %v4709, %v4715
        %v4748 = vunpack.c.l.s4 1983009808
        %v4749 = vunpack.c.0.s8 %v4748
        %v4750 = vlaneseq
        %v4751 = vshrl.u32 %v4750, 7
        %v4752 = vsub.s32 %v4749, %v4751
        %v4753 = vrot.slane %v4745, %v4752
        %v4755 = vunpack.c.l.s4 1983009808
        %v4756 = vunpack.c.0.s8 %v4755
        %v4757 = vlaneseq
        %v4758 = vshrl.u32 %v4757, 7
        %v4759 = vsub.s32 %v4756, %v4758
        %v4760 = vrot.slane %v4746, %v4759
        %v4761 = vcombine.low %v4718, %v4724
        %v4762 = vcombine.high %v4718, %v4724
        %v4764 = vunpack.c.l.s4 1983009808
        %v4765 = vunpack.c.0.s8 %v4764
        %v4766 = vlaneseq
        %v4767 = vshrl.u32 %v4766, 7
        %v4768 = vsub.s32 %v4765, %v4767
        %v4769 = vrot.slane %v4761, %v4768
        %v4771 = vunpack.c.l.s4 1983009808
        %v4772 = vunpack.c.0.s8 %v4771
        %v4773 = vlaneseq
        %v4774 = vshrl.u32 %v4773, 7
        %v4775 = vsub.s32 %v4772, %v4774
        %v4776 = vrot.slane %v4762, %v4775
        %v4777 = vcombine.low %v4721, %v4727
        %v4778 = vcombine.high %v4721, %v4727
        %v4780 = vunpack.c.l.s4 1983009808
        %v4781 = vunpack.c.0.s8 %v4780
        %v4782 = vlaneseq
        %v4783 = vshrl.u32 %v4782, 7
        %v4784 = vsub.s32 %v4781, %v4783
        %v4785 = vrot.slane %v4777, %v4784
        %v4787 = vunpack.c.l.s4 1983009808
        %v4788 = vunpack.c.0.s8 %v4787
        %v4789 = vlaneseq
        %v4790 = vshrl.u32 %v4789, 7
        %v4791 = vsub.s32 %v4788, %v4790
        %v4792 = vrot.slane %v4778, %v4791
        %v4793 = vcombine.low %v4737, %v4753
        %v4794 = vcombine.high %v4737, %v4753
        %v4796 = vunpack.c.l.s4 1934713408
        %v4797 = vunpack.c.0.s8 %v4796
        %v4798 = vlaneseq
        %v4799 = vshrl.u32 %v4798, 7
        %v4800 = vsub.s32 %v4797, %v4799
        %v4801 = vrot.slane %v4793, %v4800
        %v4803 = vunpack.c.l.s4 1934713408
        %v4804 = vunpack.c.0.s8 %v4803
        %v4805 = vlaneseq
        %v4806 = vshrl.u32 %v4805, 7
        %v4807 = vsub.s32 %v4804, %v4806
        %v4808 = vrot.slane %v4794, %v4807
        %v4809 = vcombine.low %v4744, %v4760
        %v4810 = vcombine.high %v4744, %v4760
        %v4812 = vunpack.c.l.s4 1934713408
        %v4813 = vunpack.c.0.s8 %v4812
        %v4814 = vlaneseq
        %v4815 = vshrl.u32 %v4814, 7
        %v4816 = vsub.s32 %v4813, %v4815
        %v4817 = vrot.slane %v4809, %v4816
        %v4819 = vunpack.c.l.s4 1934713408
        %v4820 = vunpack.c.0.s8 %v4819
        %v4821 = vlaneseq
        %v4822 = vshrl.u32 %v4821, 7
        %v4823 = vsub.s32 %v4820, %v4822
        %v4824 = vrot.slane %v4810, %v4823
        %v4825 = vcombine.low %v4769, %v4785
        %v4826 = vcombine.high %v4769, %v4785
        %v4828 = vunpack.c.l.s4 1934713408
        %v4829 = vunpack.c.0.s8 %v4828
        %v4830 = vlaneseq
        %v4831 = vshrl.u32 %v4830, 7
        %v4832 = vsub.s32 %v4829, %v4831
        %v4833 = vrot.slane %v4825, %v4832
        %v4835 = vunpack.c.l.s4 1934713408
        %v4836 = vunpack.c.0.s8 %v4835
        %v4837 = vlaneseq
        %v4838 = vshrl.u32 %v4837, 7
        %v4839 = vsub.s32 %v4836, %v4838
        %v4840 = vrot.slane %v4826, %v4839
        %v4841 = vcombine.low %v4776, %v4792
        %v4842 = vcombine.high %v4776, %v4792
        %v4844 = vunpack.c.l.s4 1934713408
        %v4845 = vunpack.c.0.s8 %v4844
        %v4846 = vlaneseq
        %v4847 = vshrl.u32 %v4846, 7
        %v4848 = vsub.s32 %v4845, %v4847
        %v4849 = vrot.slane %v4841, %v4848
        %v4851 = vunpack.c.l.s4 1934713408
        %v4852 = vunpack.c.0.s8 %v4851
        %v4853 = vlaneseq
        %v4854 = vshrl.u32 %v4853, 7
        %v4855 = vsub.s32 %v4852, %v4854
        %v4856 = vrot.slane %v4842, %v4855
        %v4857 = vcombine.low %v4801, %v4833
        %v4858 = vcombine.high %v4801, %v4833
        %v4859 = vcombine.low %v4808, %v4840
        %v4860 = vcombine.high %v4808, %v4840
        %v4861 = vcombine.low %v4817, %v4849
        %v4862 = vcombine.high %v4817, %v4849
        %v4863 = vcombine.low %v4824, %v4856
        %v4864 = vcombine.high %v4824, %v4856
        %v4865 = vcombine.low %v4857, %v4859
        %v4866 = vcombine.high %v4857, %v4859
        %v4868 = vunpack.c.l.s4 1983009808
        %v4869 = vunpack.c.0.s8 %v4868
        %v4870 = vlaneseq
        %v4871 = vshrl.u32 %v4870, 7
        %v4872 = vsub.s32 %v4869, %v4871
        %v4873 = vrot.slane %v4865, %v4872
        %v4875 = vunpack.c.l.s4 1983009808
        %v4876 = vunpack.c.0.s8 %v4875
        %v4877 = vlaneseq
        %v4878 = vshrl.u32 %v4877, 7
        %v4879 = vsub.s32 %v4876, %v4878
        %v4880 = vrot.slane %v4866, %v4879
        %v4881 = vcombine.low %v4858, %v4860
        %v4882 = vcombine.high %v4858, %v4860
        %v4884 = vunpack.c.l.s4 1983009808
        %v4885 = vunpack.c.0.s8 %v4884
        %v4886 = vlaneseq
        %v4887 = vshrl.u32 %v4886, 7
        %v4888 = vsub.s32 %v4885, %v4887
        %v4889 = vrot.slane %v4881, %v4888
        %v4891 = vunpack.c.l.s4 1983009808
        %v4892 = vunpack.c.0.s8 %v4891
        %v4893 = vlaneseq
        %v4894 = vshrl.u32 %v4893, 7
        %v4895 = vsub.s32 %v4892, %v4894
        %v4896 = vrot.slane %v4882, %v4895
        %v4897 = vcombine.low %v4861, %v4863
        %v4898 = vcombine.high %v4861, %v4863
        %v4900 = vunpack.c.l.s4 1983009808
        %v4901 = vunpack.c.0.s8 %v4900
        %v4902 = vlaneseq
        %v4903 = vshrl.u32 %v4902, 7
        %v4904 = vsub.s32 %v4901, %v4903
        %v4905 = vrot.slane %v4897, %v4904
        %v4907 = vunpack.c.l.s4 1983009808
        %v4908 = vunpack.c.0.s8 %v4907
        %v4909 = vlaneseq
        %v4910 = vshrl.u32 %v4909, 7
        %v4911 = vsub.s32 %v4908, %v4910
        %v4912 = vrot.slane %v4898, %v4911
        %v4913 = vcombine.low %v4862, %v4864
        %v4914 = vcombine.high %v4862, %v4864
        %v4916 = vunpack.c.l.s4 1983009808
        %v4917 = vunpack.c.0.s8 %v4916
        %v4918 = vlaneseq
        %v4919 = vshrl.u32 %v4918, 7
        %v4920 = vsub.s32 %v4917, %v4919
        %v4921 = vrot.slane %v4913, %v4920
        %v4923 = vunpack.c.l.s4 1983009808
        %v4924 = vunpack.c.0.s8 %v4923
        %v4925 = vlaneseq
        %v4926 = vshrl.u32 %v4925, 7
        %v4927 = vsub.s32 %v4924, %v4926
        %v4928 = vrot.slane %v4914, %v4927
        %v4929 = vcombine.low %v4873, %v4889
        %v4930 = vcombine.high %v4873, %v4889
        %v4932 = vunpack.c.l.s4 1934713408
        %v4933 = vunpack.c.0.s8 %v4932
        %v4934 = vlaneseq
        %v4935 = vshrl.u32 %v4934, 7
        %v4936 = vsub.s32 %v4933, %v4935
        %v4937 = vrot.slane %v4929, %v4936
        %v4939 = vunpack.c.l.s4 1934713408
        %v4940 = vunpack.c.0.s8 %v4939
        %v4941 = vlaneseq
        %v4942 = vshrl.u32 %v4941, 7
        %v4943 = vsub.s32 %v4940, %v4942
        %v4944 = vrot.slane %v4930, %v4943
        %v4945 = vcombine.low %v4880, %v4896
        %v4946 = vcombine.high %v4880, %v4896
        %v4948 = vunpack.c.l.s4 1934713408
        %v4949 = vunpack.c.0.s8 %v4948
        %v4950 = vlaneseq
        %v4951 = vshrl.u32 %v4950, 7
        %v4952 = vsub.s32 %v4949, %v4951
        %v4953 = vrot.slane %v4945, %v4952
        %v4955 = vunpack.c.l.s4 1934713408
        %v4956 = vunpack.c.0.s8 %v4955
        %v4957 = vlaneseq
        %v4958 = vshrl.u32 %v4957, 7
        %v4959 = vsub.s32 %v4956, %v4958
        %v4960 = vrot.slane %v4946, %v4959
        %v4961 = vcombine.low %v4905, %v4921
        %v4962 = vcombine.high %v4905, %v4921
        %v4964 = vunpack.c.l.s4 1934713408
        %v4965 = vunpack.c.0.s8 %v4964
        %v4966 = vlaneseq
        %v4967 = vshrl.u32 %v4966, 7
        %v4968 = vsub.s32 %v4965, %v4967
        %v4969 = vrot.slane %v4961, %v4968
        %v4971 = vunpack.c.l.s4 1934713408
        %v4972 = vunpack.c.0.s8 %v4971
        %v4973 = vlaneseq
        %v4974 = vshrl.u32 %v4973, 7
        %v4975 = vsub.s32 %v4972, %v4974
        %v4976 = vrot.slane %v4962, %v4975
        %v4977 = vcombine.low %v4912, %v4928
        %v4978 = vcombine.high %v4912, %v4928
        %v4980 = vunpack.c.l.s4 1934713408
        %v4981 = vunpack.c.0.s8 %v4980
        %v4982 = vlaneseq
        %v4983 = vshrl.u32 %v4982, 7
        %v4984 = vsub.s32 %v4981, %v4983
        %v4985 = vrot.slane %v4977, %v4984
        %v4987 = vunpack.c.l.s4 1934713408
        %v4988 = vunpack.c.0.s8 %v4987
        %v4989 = vlaneseq
        %v4990 = vshrl.u32 %v4989, 7
        %v4991 = vsub.s32 %v4988, %v4990
        %v4992 = vrot.slane %v4978, %v4991
        %v4993 = vcombine.low %v4937, %v4969
        %v4994 = vcombine.high %v4937, %v4969
        %v4995 = vcombine.low %v4944, %v4976
        %v4996 = vcombine.high %v4944, %v4976
        %v4997 = vcombine.low %v4953, %v4985
        %v4998 = vcombine.high %v4953, %v4985
        %v4999 = vcombine.low %v4960, %v4992
        %v5000 = vcombine.high %v4960, %v4992
        %5002 = vrot.lane.b32.xlu0 %v4994, 8
        %v5003 = vpop.permute.xlu0 %5002
        %5006 = vrot.lane.b32.xlu0 %v4995, 16
        %v5007 = vpop.permute.xlu0 %5006
        %5010 = vrot.lane.b32.xlu0 %v4996, 24
        %v5011 = vpop.permute.xlu0 %5010
        %5014 = vrot.lane.b32.xlu0 %v4997, 32
        %v5015 = vpop.permute.xlu0 %5014
        %5018 = vrot.lane.b32.xlu0 %v4998, 40
        %v5019 = vpop.permute.xlu0 %5018
        %5022 = vrot.lane.b32.xlu0 %v4999, 48
        %v5023 = vpop.permute.xlu0 %5022
        %5026 = vrot.lane.b32.xlu0 %v5000, 56
        %v5027 = vpop.permute.xlu0 %5026
        %v5029 = vsel %vm3482, %v4993, %v5003
        %v5030 = vsel %vm3484, %v5029, %v5007
        %v5031 = vsel %vm3486, %v5030, %v5011
        %v5032 = vsel %vm3488, %v5031, %v5015
        %v5033 = vsel %vm2419, %v5032, %v5019
        %v5034 = vsel %vm3491, %v5033, %v5023
        %v5035 = vsel %vm3493, %v5034, %v5027
        %v5036 = vsel %vm3495, %v5035, 0.0
        %5037 = vadd.xlane.f32.xlu0 %v5036
        %v5038 = vpop.xlane.xlu0 %5037
        %v5039 = vmul.f32 %v5035, %v5035
        %v5040 = vsel %vm3495, %v5039, 0.0
        %5041 = vadd.xlane.f32.xlu0 %v5040
        %v5042 = vpop.xlane.xlu0 %5041
        %v5043 = vsel %vm2307, %v5038, %v5042
        %v5044 = vld [vmem:[%s10] sm:$0xff]
        %v5046 = vsel %vm3482, %v5044, 0
        %5048 = vmatprep.subr.mxu0 0.0
        %5049 = vmatpush1.msra.mxu0 %v5043
        %5050 = vmatprep.subr.mxu0 0.0
        %5051 = vmatpush1.msra.mxu0 0.0
        %5052 = vmatprep.subr.mxu0 0.0
        %5053 = vmatpush1.msra.mxu0 0.0
        %5054 = vmatprep.subr.mxu0 0.0
        %5055 = vmatpush1.msra.mxu0 0.0
        %5056 = vmatprep.subr.mxu0 0.0
        %5057 = vmatpush1.msra.mxu0 0.0
        %5058 = vmatprep.subr.mxu0 0.0
        %5059 = vmatpush1.msra.mxu0 0.0
        %5060 = vmatprep.subr.mxu0 0.0
        %5061 = vmatpush1.msra.mxu0 0.0
        %5062 = vmatprep.subr.mxu0 0.0
        %5063 = vmatpush1.msra.mxu0 0.0
        %5064 = vmatprep.subr.mxu0 0.0
        %5065 = vmatpush1.msra.mxu0 0.0
        %5066 = vmatprep.subr.mxu0 0.0
        %5067 = vmatpush1.msra.mxu0 0.0
        %5068 = vmatprep.subr.mxu0 0.0
        %5069 = vmatpush1.msra.mxu0 0.0
        %5070 = vmatprep.subr.mxu0 0.0
        %5071 = vmatpush1.msra.mxu0 0.0
        %5072 = vmatprep.subr.mxu0 0.0
        %5073 = vmatpush1.msra.mxu0 0.0
        %5074 = vmatprep.subr.mxu0 0.0
        %5075 = vmatpush1.msra.mxu0 0.0
        %5076 = vmatprep.subr.mxu0 0.0
        %5077 = vmatpush1.msra.mxu0 0.0
        %5078 = vmatprep.subr.mxu0 0.0
        %5079 = vmatpush1.msra.mxu0 0.0
        %5080 = vmatprep.subr.mxu0 0.0
        %5081 = vmatpush1.msra.mxu0 0.0
        %5082 = vmatprep.subr.mxu0 0.0
        %5083 = vmatpush1.msra.mxu0 0.0
        %5084 = vmatprep.subr.mxu0 0.0
        %5085 = vmatpush1.msra.mxu0 0.0
        %5086 = vmatprep.subr.mxu0 0.0
        %5087 = vmatpush1.msra.mxu0 0.0
        %5088 = vmatprep.subr.mxu0 0.0
        %5089 = vmatpush1.msra.mxu0 0.0
        %5090 = vmatprep.subr.mxu0 0.0
        %5091 = vmatpush1.msra.mxu0 0.0
        %5092 = vmatprep.subr.mxu0 0.0
        %5093 = vmatpush1.msra.mxu0 0.0
        %5094 = vmatprep.subr.mxu0 0.0
        %5095 = vmatpush1.msra.mxu0 0.0
        %5096 = vmatprep.subr.mxu0 0.0
        %5097 = vmatpush1.msra.mxu0 0.0
        %5098 = vmatprep.subr.mxu0 0.0
        %5099 = vmatpush1.msra.mxu0 0.0
        %5100 = vmatprep.subr.mxu0 0.0
        %5101 = vmatpush1.msra.mxu0 0.0
        %5102 = vmatprep.subr.mxu0 0.0
        %5103 = vmatpush1.msra.mxu0 0.0
        %5104 = vmatprep.subr.mxu0 0.0
        %5105 = vmatpush1.msra.mxu0 0.0
        %5106 = vmatprep.subr.mxu0 0.0
        %5107 = vmatpush1.msra.mxu0 0.0
        %5108 = vmatprep.subr.mxu0 0.0
        %5109 = vmatpush1.msra.mxu0 0.0
        %5110 = vmatprep.subr.mxu0 0.0
        %5111 = vmatpush1.msra.mxu0 0.0
        %5112 = vmatprep.mubr.f32.mxu0 0.0
        %5113 = vmatmul.mubr.f32.gmra.mrb[0].mxu0 %v5046
        %v5114 = vpop.f32.mrb[0].mxu0
        %v5115 = vadd.f32 0.0, %v5114
        %v5116 = vpop.f32.mrb[0].mxu0
        %5117 = vdwg.mxu0
        %v5118 = vmul.f32 %v5115, %v5115
        %5120 = vrot.lane.b32.xlu0 %v5118, 1
        %v5121 = vpop.permute.xlu0 %5120
        %v5123 = vsub.f32 %v5115, %v5121
        %v5124 = vadd.f32 %v5123, 1e-05
        %v5125 = vrsqrt.pop %v5124
        %v5126 = vld [vmem:[%s8] sm:$0xff]
        %5128 = vrot.lane.b32.xlu0 %v5126, 1
        %v5129 = vpop.permute.xlu0 %5128
        %v5131 = vmul.f32 %v5125, %v5129
        %v5132 = vld [vmem:[%s9] sm:$0xff]
        %5134 = vrot.lane.b32.xlu0 %v5131, 127
        %v5135 = vpop.permute.xlu0 %5134
        %v5137 = vmul.f32 %v5115, %v5135
        %v5138 = vsub.f32 %v5132, %v5137
        %5139 = vset.pattern.permute.xlu0 1
        %5140 = vperm.xlu0 %5139, %v5131
        %v5141 = vpop.permute.xlu0 %5140
        %v5143 = vmul.f32 %v5035, %v5141
        %5145 = vset.pattern.permute.xlu0 0
        %5146 = vperm.xlu0 %5145, %v5138
        %v5147 = vpop.permute.xlu0 %5146
        %v5149 = vadd.f32 %v5143, %v5147
        %5150 = vst.msk [vmem:[%s379] sm:$0xff] %vm3495, %v5149
        %s5151 = sand.u32 %s269, 1
        %s5152 = scalar_lea.sflag [#allocation3], %s5151
        %s5153 = sand.u32 %s269, 1
        %s5154 = smul.addr %s5153, 8
        %s5155 = scalar_lea.vmem [#allocation2], %s5154
        // Predicated region
        $region65: #{tpu_custom_call.1} parent=63 // pred_check
          %p5156 = pneg %p279
        $region66: #{tpu_custom_call.1} parent=63 // pred_check_branch
          %5158 = sbr.rel (%p5156) target = $region68
        $region67: #{tpu_custom_call.1} parent=63 // pred_region
          %s5160 = ssub.s32 128, 128
          %5161 = vsyncadd %s5152, %s5160
          %s5162 = smul.addr %s25, 128
          %s5163 = scalar_lea.hbm %s11, %s5162
          %s5165 = sshll.u32 %s5155, 4
          %s5166 = int_to_ptr.vmem [resolvable:$true] %s5165
          %5168 = dma.vmem_to_hbm [thread:$0]  %s5166, 128, %s5163, %s5152
        $region68: #{tpu_custom_call.1} parent=63 // pred_fallthru
          _
      $region64: #{tpu_custom_call.1} parent=5 // pred_fallthru
        _
      %p5169 = scmp.le.s32.totalorder 2, %s20
      // Predicated region
      $region69: #{tpu_custom_call.1} parent=5 // pred_check
        %p5170 = pneg %p5169
      $region70: #{tpu_custom_call.1} parent=5 // pred_check_branch
        %5172 = sbr.rel (%p5170) target = $region72
      $region71: #{tpu_custom_call.1} parent=5 // pred_region
        %s5173 = ssub.s32 %s20, 2
        // Predicated region
        $region73: #{tpu_custom_call.1} parent=71 // pred_check
          %p5174 = pneg %p285
        $region74: #{tpu_custom_call.1} parent=71 // pred_check_branch
          %5176 = sbr.rel (%p5174) target = $region76
        $region75: #{tpu_custom_call.1} parent=71 // pred_region
          %s5177 = sand.u32 %s270, 1
          %s5178 = scalar_lea.sflag [#allocation3], %s5177
          %s5179 = sand.u32 %s270, 1
          %s5180 = smul.addr %s5179, 8
          %s5181 = scalar_lea.vmem [#allocation2], %s5180
          %5182 = dma.done %s5178, 128
        $region76: #{tpu_custom_call.1} parent=71 // pred_fallthru
          _
      $region72: #{tpu_custom_call.1} parent=5 // pred_fallthru
        _
    $region6: #{tpu_custom_call.1} parent=1 // loop_footer
      %s24 = sadd.s32 1, %s20
    $region7: #{tpu_custom_call.1} parent=1 // loop_footer_branch
      %19 = sbr.rel target = $region3
    $region8: #{tpu_custom_call.1} parent=1 // loop_exit
      _
    %5183 = vsyncpa [#allocation3], 1
    %s5184 = scalar_lea.sflag [#allocation3], 1
    %5185 = vsyncpa %s5184, 1

</llo_original>
